<compile_context>
chip_gen: v5e
topology: v5e:2x2
jax: 0.10.0
libtpu: 0.0.40
codegen_flags: <defaults>
</compile_context>

<pallas_src>
import math

import jax
import jax.numpy as jnp
from jax import lax
from jax.experimental import pallas as pl
from jax.experimental.pallas import tpu as pltpu

LRELU_SLOPE = 0.01
BN_EPS = 1e-5


def _vmem_limit_bytes():
    """Generation-aware scoped-VMEM budget (v5e/v6e: 128 MiB, v7x: 64 MiB)."""
    try:
        cap = int(pltpu.get_tpu_info().vmem_capacity_bytes)
        return max(32 << 20, min(cap - (16 << 20), 100 << 20))
    except Exception:
        return 64 << 20


VMEM_LIMIT = _vmem_limit_bytes()


# ---------------------------------------------------------------------------
# Kernel factories
# ---------------------------------------------------------------------------
def make_conv_kernel(nsrc, apply_prologue, *, H, W, m_total):
    """Fused [lazy BN+LeakyReLU per source] -> im2col -> single 3x3-conv dot.

    Ref order: x_0..x_{n-1}, w, [stats_s, gamma_s, beta_s]*n (if prologue),
    mask, y_out, stats_out, col_scratch.
    Activations are flat padded (C, P) with P a multiple of 128; halo and
    lane-pad positions are zero.
    """
    Wp = W + 2
    Lv = (H - 1) * Wp + W          # span of flat positions holding conv outputs
    inv_m = 1.0 / float(m_total)   # 1 / (N*H*W) for BN batch statistics

    def kernel(*refs):
        x_refs = refs[0:nsrc]
        w_ref = refs[nsrc]
        pos = nsrc + 1
        bn_refs = ()
        if apply_prologue:
            bn_refs = refs[pos:pos + 3 * nsrc]
            pos += 3 * nsrc
        mask_ref = refs[pos]
        y_ref = refs[pos + 1]
        st_ref = refs[pos + 2]
        col_ref = refs[pos + 3]

        cout = y_ref.shape[1]
        P = y_ref.shape[2]
        mask = mask_ref[...]                                    # (1, P) f32

        # ---- prologue: apply previous layers' BN + LeakyReLU lazily, then
        #      scatter the 9 shifted conv taps of every source into the single
        #      bf16 im2col scratch (one deep contraction instead of 9*n dots).
        base = 0
        for s in range(nsrc):
            cs = x_refs[s].shape[1]
            if apply_prologue:
                x = x_refs[s][0].astype(jnp.float32)            # (cs, P)
                st3 = bn_refs[3 * s]                            # (N, cs, 2) partials
                tot = st3[0]
                for n in range(1, st3.shape[0]):                # tiny in-kernel N-reduce
                    tot = tot + st3[n]
                g = bn_refs[3 * s + 1][...]                     # (cs, 1)
                be = bn_refs[3 * s + 2][...]                    # (cs, 1)
                mean = tot[:, 0:1] * inv_m
                var = jnp.maximum(tot[:, 1:2] * inv_m - mean * mean, 0.0)
                scale = g * lax.rsqrt(var + BN_EPS)
                shift = be - mean * scale
                z = x * scale + shift
                f = jnp.where(z >= 0, z, LRELU_SLOPE * z) * mask   # zero halo + pad
                fb = f.astype(jnp.bfloat16)
            else:
                fb = x_refs[s][0]                               # raw image, zero halo
            for t in range(9):
                dy, dx = divmod(t, 3)
                start = dy * Wp + dx
                col_ref[base + t * cs:base + (t + 1) * cs, :] = fb[:, start:start + Lv]
            base += 9 * cs

        # ---- single deep MXU contraction (bf16 operands, f32 accumulate)
        acc = jnp.dot(w_ref[...], col_ref[...], preferred_element_type=jnp.float32)
        yv = acc * mask[:, Wp + 1:Wp + 1 + Lv]                  # zero junk halo cols

        # ---- per-batch-item per-channel BN partials (f32, before bf16 cast)
        st_ref[0, :, 0:1] = jnp.sum(yv, axis=1, keepdims=True)
        st_ref[0, :, 1:2] = jnp.sum(yv * yv, axis=1, keepdims=True)

        # ---- store pre-BN conv output in bf16, flat padded layout, zero halo
        yb = yv.astype(jnp.bfloat16)
        y_ref[0, :, 0:Wp + 1] = jnp.zeros((cout, Wp + 1), jnp.bfloat16)
        y_ref[0, :, Wp + 1:Wp + 1 + Lv] = yb
        y_ref[0, :, Wp + 1 + Lv:P] = jnp.zeros((cout, P - Wp - 1 - Lv), jnp.bfloat16)

    return kernel


def make_pool_kernel(*, H, W, m_total):
    """Layer-5 BN + LeakyReLU + global average pool + Linear(L -> 1)."""
    inv_m = 1.0 / float(m_total)
    inv_hw = 1.0 / float(H * W)

    def kernel(y_ref, st_ref, g_ref, be_ref, mask_ref, wl_ref, bl_ref, o_ref):
        y = y_ref[0].astype(jnp.float32)                        # (L, P)
        tot = st_ref[0]
        for n in range(1, st_ref.shape[0]):
            tot = tot + st_ref[n]                               # (L, 2)
        mean = tot[:, 0:1] * inv_m
        var = jnp.maximum(tot[:, 1:2] * inv_m - mean * mean, 0.0)
        scale = g_ref[...] * lax.rsqrt(var + BN_EPS)
        shift = be_ref[...] - mean * scale
        z = y * scale + shift
        f = jnp.where(z >= 0, z, LRELU_SLOPE * z) * mask_ref[...]
        pooled = jnp.sum(f, axis=1, keepdims=True) * inv_hw     # (L, 1)
        o_ref[0] = jnp.sum(wl_ref[...] * pooled, keepdims=True) + bl_ref[...]

    return kernel


# ---------------------------------------------------------------------------
# pallas_call wrappers
# ---------------------------------------------------------------------------
def conv_layer(xs, bn_inputs, w_mat, mask, *, H, W, N, m_total, apply_prologue):
    """One conv layer.  xs: list of flat padded pre-BN sources (N, C_s, P) bf16.

    Returns (y, partials): y is the pre-BN conv output (bf16, same layout) and
    partials is the raw per-batch-item (N, Cout, 2) [sum, sum_sq] tensor, which
    the *consumer* kernel reduces over N (no host-side glue reductions).
    """
    P = xs[0].shape[2]
    cout, kdim = w_mat.shape
    nsrc = len(xs)
    assert sum(9 * x.shape[1] for x in xs) == kdim
    Lv = (H - 1) * (W + 2) + W

    kernel = make_conv_kernel(nsrc, apply_prologue, H=H, W=W, m_total=m_total)

    in_specs, args = [], []
    for x in xs:
        in_specs.append(pl.BlockSpec((1, x.shape[1], P), lambda n: (n, 0, 0)))
        args.append(x)
    in_specs.append(pl.BlockSpec(w_mat.shape, lambda n: (0, 0)))
    args.append(w_mat)
    if apply_prologue:
        for (st, g, be) in bn_inputs:
            in_specs.append(pl.BlockSpec(st.shape, lambda n: (0, 0, 0)))
            in_specs.append(pl.BlockSpec(g.shape, lambda n: (0, 0)))
            in_specs.append(pl.BlockSpec(be.shape, lambda n: (0, 0)))
            args.extend([st, g, be])
    in_specs.append(pl.BlockSpec((1, P), lambda n: (0, 0)))
    args.append(mask)

    y, part = pl.pallas_call(
        kernel,
        out_shape=(jax.ShapeDtypeStruct((N, cout, P), jnp.bfloat16),
                   jax.ShapeDtypeStruct((N, cout, 2), jnp.float32)),
        grid=(N,),
        in_specs=in_specs,
        out_specs=(pl.BlockSpec((1, cout, P), lambda n: (n, 0, 0)),
                   pl.BlockSpec((1, cout, 2), lambda n: (n, 0, 0))),
        scratch_shapes=[pltpu.VMEM((kdim, Lv), jnp.bfloat16)],
        compiler_params=pltpu.CompilerParams(
            dimension_semantics=("parallel",),
            vmem_limit_bytes=VMEM_LIMIT),
    )(*args)
    return y, part


def pool_linear(y5, st5, gamma5, beta5, mask, lin_w, lin_b, *, H, W, N, m_total):
    _, L, P = y5.shape
    kernel = make_pool_kernel(H=H, W=W, m_total=m_total)
    out = pl.pallas_call(
        kernel,
        out_shape=jax.ShapeDtypeStruct((N, 1, 1), jnp.float32),
        grid=(N,),
        in_specs=[
            pl.BlockSpec((1, L, P), lambda n: (n, 0, 0)),
            pl.BlockSpec(st5.shape, lambda n: (0, 0, 0)),
            pl.BlockSpec((L, 1), lambda n: (0, 0)),
            pl.BlockSpec((L, 1), lambda n: (0, 0)),
            pl.BlockSpec((1, P), lambda n: (0, 0)),
            pl.BlockSpec((L, 1), lambda n: (0, 0)),
            pl.BlockSpec((1, 1), lambda n: (0, 0)),
        ],
        out_specs=pl.BlockSpec((1, 1, 1), lambda n: (n, 0, 0)),
        compiler_params=pltpu.CompilerParams(
            dimension_semantics=("parallel",),
            vmem_limit_bytes=VMEM_LIMIT),
    )(y5, st5, gamma5, beta5, mask,
      lin_w.reshape(-1, 1), lin_b.reshape(1, 1))
    return out.reshape(N, 1)


# ---------------------------------------------------------------------------
# Host-side layout / parameter prep (pure data movement)
# ---------------------------------------------------------------------------
def interior_mask(H, W, P):
    Hp, Wp = H + 2, W + 2
    m = jnp.zeros((Hp, Wp), jnp.float32).at[1:H + 1, 1:W + 1].set(1.0)
    m = m.reshape(1, Hp * Wp)
    return jnp.pad(m, ((0, 0), (0, P - Hp * Wp)))


def prep_weight(w_oihw, split_sizes, pad_sizes=None):
    """OIHW conv weight, split by in-channel group -> one (Cout, 9*sumC) bf16."""
    cout = w_oihw.shape[0]
    pad_sizes = pad_sizes or split_sizes
    blocks, off = [], 0
    for cs, cs_pad in zip(split_sizes, pad_sizes):
        ws = w_oihw[:, off:off + cs]                            # (Cout, cs, 3, 3)
        if cs_pad != cs:
            ws = jnp.pad(ws, ((0, 0), (0, cs_pad - cs), (0, 0), (0, 0)))
        blk = jnp.transpose(ws, (0, 2, 3, 1)).reshape(cout, 9 * cs_pad)
        blocks.append(blk)
        off += cs
    return jnp.concatenate(blocks, axis=1).astype(jnp.bfloat16)


def conv_layer_params(key, cin, cout, k=3):
    k1, k2 = jax.random.split(key)
    bound = 1.0 / math.sqrt(cin * k * k)
    w = jax.random.uniform(k1, (cout, cin, k, k), jnp.float32, -bound, bound)
    b = jax.random.uniform(k2, (cout,), jnp.float32, -bound, bound)
    gamma = jnp.ones((cout,), jnp.float32)
    beta = jnp.zeros((cout,), jnp.float32)
    return dict(w=w, b=b, gamma=gamma, beta=beta)


def make_params(key, channels, message_length):
    keys = jax.random.split(key, 7)
    params = {
        "l1": conv_layer_params(keys[0], 3, channels),
        "l2": conv_layer_params(keys[1], channels, channels),
        "l3": conv_layer_params(keys[2], 2 * channels, channels),
        "l4": conv_layer_params(keys[3], 3 * channels, channels),
        "l5": conv_layer_params(keys[4], channels, message_length),
    }
    bound = 1.0 / math.sqrt(message_length)
    params["lin_w"] = jax.random.uniform(
        keys[5], (1, message_length), jnp.float32, -bound, bound)
    params["lin_b"] = jax.random.uniform(keys[6], (1,), jnp.float32, -bound, bound)
    return params


# ---------------------------------------------------------------------------
# Forward pass (Pallas-backed)
# ---------------------------------------------------------------------------
def discriminator_forward(image_nchw, params):
    N, cin, H, W = image_nchw.shape
    Hp, Wp = H + 2, W + 2
    HpWp = Hp * Wp
    P = ((HpWp + 127) // 128) * 128            # lane-aligned flat spatial length
    M = N * H * W
    cin_pad = ((cin + 7) // 8) * 8             # sublane-aligned image channels
    mask = interior_mask(H, W, P)
    C = params["l1"]["w"].shape[0]

    # Raw image: pad channels (exact, weights padded with zeros), pad spatially
    # (conv zero padding), flatten, pad lanes, cast to bf16.
    x0 = jnp.pad(image_nchw.astype(jnp.float32),
                 ((0, 0), (0, cin_pad - cin), (1, 1), (1, 1)))
    x0 = x0.reshape(N, cin_pad, HpWp)
    x0 = jnp.pad(x0, ((0, 0), (0, 0), (0, P - HpWp))).astype(jnp.bfloat16)

    def bn_vecs(name):
        p = params[name]
        return (p["gamma"].reshape(-1, 1).astype(jnp.float32),
                p["beta"].reshape(-1, 1).astype(jnp.float32))

    kw = dict(H=H, W=W, N=N, m_total=M)

    # NOTE: conv biases are intentionally dropped from the compute path: they
    # cancel exactly against the training-mode BatchNorm mean subtraction.
    w1 = prep_weight(params["l1"]["w"], [cin], [cin_pad])
    y1, st1 = conv_layer([x0], None, w1, mask, apply_prologue=False, **kw)
    g1, b1 = bn_vecs("l1")

    w2 = prep_weight(params["l2"]["w"], [C])
    y2, st2 = conv_layer([y1], [(st1, g1, b1)], w2, mask,
                         apply_prologue=True, **kw)
    g2, b2 = bn_vecs("l2")

    # third_layer(cat[f0, f1]) without any HBM concat.
    w3 = prep_weight(params["l3"]["w"], [C, C])
    y3, st3 = conv_layer([y1, y2], [(st1, g1, b1), (st2, g2, b2)], w3, mask,
                         apply_prologue=True, **kw)
    g3, b3 = bn_vecs("l3")

    # fourth_layer(cat[f0, f1, f2]).
    w4 = prep_weight(params["l4"]["w"], [C, C, C])
    y4, st4 = conv_layer([y1, y2, y3],
                         [(st1, g1, b1), (st2, g2, b2), (st3, g3, b3)], w4, mask,
                         apply_prologue=True, **kw)
    g4, b4 = bn_vecs("l4")

    w5 = prep_weight(params["l5"]["w"], [C])
    y5, st5 = conv_layer([y4], [(st4, g4, b4)], w5, mask,
                         apply_prologue=True, **kw)
    g5, b5 = bn_vecs("l5")

    return pool_linear(y5, st5, g5, b5, mask,
                       params["lin_w"], params["lin_b"], **kw)


# ---------------------------------------------------------------------------
# Pure-JAX reference (faithful PyTorch semantics, fp32, with conv bias)
# ---------------------------------------------------------------------------
def ref_conv_bn_lrelu(x_nhwc, p):
    w_hwio = jnp.transpose(p["w"], (2, 3, 1, 0))
    y = lax.conv_general_dilated(
        x_nhwc, w_hwio, window_strides=(1, 1), padding="SAME",
        dimension_numbers=("NHWC", "HWIO", "NHWC")) + p["b"]
    mean = jnp.mean(y, axis=(0, 1, 2))
    var = jnp.mean(jnp.square(y - mean), axis=(0, 1, 2))
    z = p["gamma"] * (y - mean) * lax.rsqrt(var + BN_EPS) + p["beta"]
    return jnp.where(z >= 0, z, LRELU_SLOPE * z)


def ref_forward(image_nchw, params):
    x = jnp.transpose(image_nchw, (0, 2, 3, 1))
    f0 = ref_conv_bn_lrelu(x, params["l1"])
    f1 = ref_conv_bn_lrelu(f0, params["l2"])
    f2 = ref_conv_bn_lrelu(jnp.concatenate([f0, f1], axis=-1), params["l3"])
    f3 = ref_conv_bn_lrelu(jnp.concatenate([f0, f1, f2], axis=-1), params["l4"])
    x5 = ref_conv_bn_lrelu(f3, params["l5"])
    pooled = jnp.mean(x5, axis=(1, 2))
    return pooled @ params["lin_w"].T + params["lin_b"]


# ---------------------------------------------------------------------------
if __name__ == "__main__":
    # Small HiDDeN-like config: discriminator_channels=8, message_length=8.
    N, H, W = 2, 16, 16
    CHANNELS = 8
    MSG_LEN = 8

    key = jax.random.PRNGKey(0)
    k_img, k_par = jax.random.split(key)
    image = jax.random.normal(k_img, (N, 3, H, W), jnp.float32)  # PyTorch NCHW
    params = make_params(k_par, CHANNELS, MSG_LEN)

    fwd = jax.jit(discriminator_forward)
    out = jax.block_until_ready(fwd(image, params))
    assert out.shape == (N, 1), out.shape

    ref = jax.block_until_ready(ref_forward(image, params))
    # bf16 MXU operands and bf16 activation storage (f32 accumulation/stats)
    # -> looser tolerance than a pure-f32 path; structural errors would be
    # orders of magnitude larger than this.
    if not jnp.allclose(out, ref, rtol=3e-2, atol=3e-2):
        raise AssertionError(f"mismatch: pallas={out} ref={ref}")

    print("KERNEL_OK")
</pallas_src>

<mosaic_0001>
module attributes {stable_mosaic.version = 11 : i64} {
  func.func @kernel(%arg0: i32, %arg1: memref<1x8x384xbf16, #tpu.memory_space<vmem>>, %arg2: memref<8x72xbf16, #tpu.memory_space<vmem>>, %arg3: memref<1x384xf32, #tpu.memory_space<vmem>>, %arg4: memref<1x8x384xbf16, #tpu.memory_space<vmem>>, %arg5: memref<1x8x2xf32, #tpu.memory_space<vmem>>, %arg6: memref<72x286xbf16, #tpu.memory_space<vmem>>) attributes {dimension_semantics = [#tpu.dimension_semantics<parallel>], iteration_bounds = array<i64: 2>, scalar_prefetch = 0 : i64, scratch_operands = 1 : i64, tpu.core_type = #tpu.core_type<tc>, window_params = [{transform_indices = @transform_0, window_bounds = array<i64: 1, 8, 384>}, {pipeline_mode = #tpu.pipeline_mode<synchronous>, transform_indices = @transform_1, window_bounds = array<i64: 8, 72>}, {pipeline_mode = #tpu.pipeline_mode<synchronous>, transform_indices = @transform_2, window_bounds = array<i64: 1, 384>}, {transform_indices = @transform_3, window_bounds = array<i64: 1, 8, 384>}, {transform_indices = @transform_4, window_bounds = array<i64: 1, 8, 2>}]} {
    %c0 = arith.constant 0 : index
    %c0_0 = arith.constant 0 : index
    %0 = vector.load %arg3[%c0, %c0_0] : memref<1x384xf32, #tpu.memory_space<vmem>>, vector<1x384xf32>
    %c0_1 = arith.constant 0 : index
    %c0_2 = arith.constant 0 : index
    %c0_3 = arith.constant 0 : index
    %1 = vector.load %arg1[%c0_1, %c0_2, %c0_3] : memref<1x8x384xbf16, #tpu.memory_space<vmem>>, vector<1x8x384xbf16>
    %2 = vector.shape_cast %1 : vector<1x8x384xbf16> to vector<8x384xbf16>
    %3 = vector.extract_strided_slice %2 {offsets = [0, 0], sizes = [8, 286], strides = [1, 1]} : vector<8x384xbf16> to vector<8x286xbf16>
    %c0_4 = arith.constant 0 : index
    %c0_5 = arith.constant 0 : index
    %4 = vector.load %arg6[%c0_4, %c0_5] : memref<72x286xbf16, #tpu.memory_space<vmem>>, vector<8x286xbf16>
    tpu.vector_store %arg6[%c0_4, %c0_5], %3 {strides = array<i32>} : memref<72x286xbf16, #tpu.memory_space<vmem>>, vector<8x286xbf16>,
    %5 = vector.extract_strided_slice %2 {offsets = [0, 1], sizes = [8, 286], strides = [1, 1]} : vector<8x384xbf16> to vector<8x286xbf16>
    %c8 = arith.constant 8 : index
    %c0_6 = arith.constant 0 : index
    %6 = vector.load %arg6[%c8, %c0_6] : memref<72x286xbf16, #tpu.memory_space<vmem>>, vector<8x286xbf16>
    tpu.vector_store %arg6[%c8, %c0_6], %5 {strides = array<i32>} : memref<72x286xbf16, #tpu.memory_space<vmem>>, vector<8x286xbf16>,
    %7 = vector.extract_strided_slice %2 {offsets = [0, 2], sizes = [8, 286], strides = [1, 1]} : vector<8x384xbf16> to vector<8x286xbf16>
    %c16 = arith.constant 16 : index
    %c0_7 = arith.constant 0 : index
    %8 = vector.load %arg6[%c16, %c0_7] : memref<72x286xbf16, #tpu.memory_space<vmem>>, vector<8x286xbf16>
    tpu.vector_store %arg6[%c16, %c0_7], %7 {strides = array<i32>} : memref<72x286xbf16, #tpu.memory_space<vmem>>, vector<8x286xbf16>,
    %9 = vector.extract_strided_slice %2 {offsets = [0, 18], sizes = [8, 286], strides = [1, 1]} : vector<8x384xbf16> to vector<8x286xbf16>
    %c24 = arith.constant 24 : index
    %c0_8 = arith.constant 0 : index
    %10 = vector.load %arg6[%c24, %c0_8] : memref<72x286xbf16, #tpu.memory_space<vmem>>, vector<8x286xbf16>
    tpu.vector_store %arg6[%c24, %c0_8], %9 {strides = array<i32>} : memref<72x286xbf16, #tpu.memory_space<vmem>>, vector<8x286xbf16>,
    %11 = vector.extract_strided_slice %2 {offsets = [0, 19], sizes = [8, 286], strides = [1, 1]} : vector<8x384xbf16> to vector<8x286xbf16>
    %c32 = arith.constant 32 : index
    %c0_9 = arith.constant 0 : index
    %12 = vector.load %arg6[%c32, %c0_9] : memref<72x286xbf16, #tpu.memory_space<vmem>>, vector<8x286xbf16>
    tpu.vector_store %arg6[%c32, %c0_9], %11 {strides = array<i32>} : memref<72x286xbf16, #tpu.memory_space<vmem>>, vector<8x286xbf16>,
    %13 = vector.extract_strided_slice %2 {offsets = [0, 20], sizes = [8, 286], strides = [1, 1]} : vector<8x384xbf16> to vector<8x286xbf16>
    %c40 = arith.constant 40 : index
    %c0_10 = arith.constant 0 : index
    %14 = vector.load %arg6[%c40, %c0_10] : memref<72x286xbf16, #tpu.memory_space<vmem>>, vector<8x286xbf16>
    tpu.vector_store %arg6[%c40, %c0_10], %13 {strides = array<i32>} : memref<72x286xbf16, #tpu.memory_space<vmem>>, vector<8x286xbf16>,
    %15 = vector.extract_strided_slice %2 {offsets = [0, 36], sizes = [8, 286], strides = [1, 1]} : vector<8x384xbf16> to vector<8x286xbf16>
    %c48 = arith.constant 48 : index
    %c0_11 = arith.constant 0 : index
    %16 = vector.load %arg6[%c48, %c0_11] : memref<72x286xbf16, #tpu.memory_space<vmem>>, vector<8x286xbf16>
    tpu.vector_store %arg6[%c48, %c0_11], %15 {strides = array<i32>} : memref<72x286xbf16, #tpu.memory_space<vmem>>, vector<8x286xbf16>,
    %17 = vector.extract_strided_slice %2 {offsets = [0, 37], sizes = [8, 286], strides = [1, 1]} : vector<8x384xbf16> to vector<8x286xbf16>
    %c56 = arith.constant 56 : index
    %c0_12 = arith.constant 0 : index
    %18 = vector.load %arg6[%c56, %c0_12] : memref<72x286xbf16, #tpu.memory_space<vmem>>, vector<8x286xbf16>
    tpu.vector_store %arg6[%c56, %c0_12], %17 {strides = array<i32>} : memref<72x286xbf16, #tpu.memory_space<vmem>>, vector<8x286xbf16>,
    %19 = vector.extract_strided_slice %2 {offsets = [0, 38], sizes = [8, 286], strides = [1, 1]} : vector<8x384xbf16> to vector<8x286xbf16>
    %c64 = arith.constant 64 : index
    %c0_13 = arith.constant 0 : index
    %20 = vector.load %arg6[%c64, %c0_13] : memref<72x286xbf16, #tpu.memory_space<vmem>>, vector<8x286xbf16>
    tpu.vector_store %arg6[%c64, %c0_13], %19 {strides = array<i32>} : memref<72x286xbf16, #tpu.memory_space<vmem>>, vector<8x286xbf16>,
    %c0_14 = arith.constant 0 : index
    %c0_15 = arith.constant 0 : index
    %21 = vector.load %arg2[%c0_14, %c0_15] : memref<8x72xbf16, #tpu.memory_space<vmem>>, vector<8x72xbf16>
    %c0_16 = arith.constant 0 : index
    %c0_17 = arith.constant 0 : index
    %22 = vector.load %arg6[%c0_16, %c0_17] : memref<72x286xbf16, #tpu.memory_space<vmem>>, vector<72x286xbf16>
    %cst = arith.constant dense<0.000000e+00> : vector<8x286xf32>
    %23 = tpu.matmul %21, %22, %cst {dimension_numbers = #tpu.dot_dimension_numbers<[1], [0], [0], [1], [0, 0, 1, 1], [], []>} : vector<8x72xbf16>, vector<72x286xbf16>, vector<8x286xf32> -> vector<8x286xf32>
    %24 = vector.extract_strided_slice %0 {offsets = [0, 19], sizes = [1, 286], strides = [1, 1]} : vector<1x384xf32> to vector<1x286xf32>
    %25 = vector.broadcast %24 : vector<1x286xf32> to vector<8x286xf32>
    %26 = arith.mulf %23, %25 : vector<8x286xf32>
    %cst_18 = arith.constant dense<0.000000e+00> : vector<8xf32>
    %27 = vector.multi_reduction <add>, %26, %cst_18 [1] : vector<8x286xf32> to vector<8xf32>
    %28 = vector.shape_cast %27 : vector<8xf32> to vector<8x1xf32>
    %c0_19 = arith.constant 0 : index
    %c0_20 = arith.constant 0 : index
    %c0_21 = arith.constant 0 : index
    %29 = vector.load %arg5[%c0_19, %c0_20, %c0_21] : memref<1x8x2xf32, #tpu.memory_space<vmem>>, vector<1x8x1xf32>
    %30 = vector.shape_cast %29 : vector<1x8x1xf32> to vector<8x1xf32>
    %31 = vector.shape_cast %28 : vector<8x1xf32> to vector<1x8x1xf32>
    tpu.vector_store %arg5[%c0_19, %c0_20, %c0_21], %31 {strides = array<i32>} : memref<1x8x2xf32, #tpu.memory_space<vmem>>, vector<1x8x1xf32>,
    %32 = arith.mulf %26, %26 : vector<8x286xf32>
    %cst_22 = arith.constant dense<0.000000e+00> : vector<8xf32>
    %33 = vector.multi_reduction <add>, %32, %cst_22 [1] : vector<8x286xf32> to vector<8xf32>
    %34 = vector.shape_cast %33 : vector<8xf32> to vector<8x1xf32>
    %c0_23 = arith.constant 0 : index
    %c0_24 = arith.constant 0 : index
    %c1 = arith.constant 1 : index
    %35 = vector.load %arg5[%c0_23, %c0_24, %c1] : memref<1x8x2xf32, #tpu.memory_space<vmem>>, vector<1x8x1xf32>
    %36 = vector.shape_cast %35 : vector<1x8x1xf32> to vector<8x1xf32>
    %37 = vector.shape_cast %34 : vector<8x1xf32> to vector<1x8x1xf32>
    tpu.vector_store %arg5[%c0_23, %c0_24, %c1], %37 {strides = array<i32>} : memref<1x8x2xf32, #tpu.memory_space<vmem>>, vector<1x8x1xf32>,
    %38 = arith.truncf %26 : vector<8x286xf32> to vector<8x286xbf16>
    %cst_25 = arith.constant 0.000000e+00 : bf16
    %39 = vector.broadcast %cst_25 : bf16 to vector<8x19xbf16>
    %c0_26 = arith.constant 0 : index
    %c0_27 = arith.constant 0 : index
    %c0_28 = arith.constant 0 : index
    %40 = vector.load %arg4[%c0_26, %c0_27, %c0_28] : memref<1x8x384xbf16, #tpu.memory_space<vmem>>, vector<1x8x19xbf16>
    %41 = vector.shape_cast %40 : vector<1x8x19xbf16> to vector<8x19xbf16>
    %42 = vector.shape_cast %39 : vector<8x19xbf16> to vector<1x8x19xbf16>
    tpu.vector_store %arg4[%c0_26, %c0_27, %c0_28], %42 {strides = array<i32>} : memref<1x8x384xbf16, #tpu.memory_space<vmem>>, vector<1x8x19xbf16>,
    %c0_29 = arith.constant 0 : index
    %c0_30 = arith.constant 0 : index
    %c19 = arith.constant 19 : index
    %43 = vector.load %arg4[%c0_29, %c0_30, %c19] : memref<1x8x384xbf16, #tpu.memory_space<vmem>>, vector<1x8x286xbf16>
    %44 = vector.shape_cast %43 : vector<1x8x286xbf16> to vector<8x286xbf16>
    %45 = vector.shape_cast %38 : vector<8x286xbf16> to vector<1x8x286xbf16>
    tpu.vector_store %arg4[%c0_29, %c0_30, %c19], %45 {strides = array<i32>} : memref<1x8x384xbf16, #tpu.memory_space<vmem>>, vector<1x8x286xbf16>,
    %cst_31 = arith.constant 0.000000e+00 : bf16
    %46 = vector.broadcast %cst_31 : bf16 to vector<8x79xbf16>
    %c0_32 = arith.constant 0 : index
    %c0_33 = arith.constant 0 : index
    %c305 = arith.constant 305 : index
    %47 = vector.load %arg4[%c0_32, %c0_33, %c305] : memref<1x8x384xbf16, #tpu.memory_space<vmem>>, vector<1x8x79xbf16>
    %48 = vector.shape_cast %47 : vector<1x8x79xbf16> to vector<8x79xbf16>
    %49 = vector.shape_cast %46 : vector<8x79xbf16> to vector<1x8x79xbf16>
    tpu.vector_store %arg4[%c0_32, %c0_33, %c305], %49 {strides = array<i32>} : memref<1x8x384xbf16, #tpu.memory_space<vmem>>, vector<1x8x79xbf16>,
    return
  }
  func.func @transform_0(%arg0: i32) -> (i32, i32, i32) {
    %c0_i32 = arith.constant 0 : i32
    %c0_i32_0 = arith.constant 0 : i32
    %c0_i32_1 = arith.constant 0 : i32
    return %arg0, %c0_i32, %c0_i32_0 : i32, i32, i32
  }
  func.func @transform_1(%arg0: i32) -> (i32, i32) {
    %c0_i32 = arith.constant 0 : i32
    %c0_i32_0 = arith.constant 0 : i32
    %c0_i32_1 = arith.constant 0 : i32
    return %c0_i32, %c0_i32_0 : i32, i32
  }
  func.func @transform_2(%arg0: i32) -> (i32, i32) {
    %c0_i32 = arith.constant 0 : i32
    %c0_i32_0 = arith.constant 0 : i32
    %c0_i32_1 = arith.constant 0 : i32
    return %c0_i32, %c0_i32_0 : i32, i32
  }
  func.func @transform_3(%arg0: i32) -> (i32, i32, i32) {
    %c0_i32 = arith.constant 0 : i32
    %c0_i32_0 = arith.constant 0 : i32
    %c0_i32_1 = arith.constant 0 : i32
    return %arg0, %c0_i32, %c0_i32_0 : i32, i32, i32
  }
  func.func @transform_4(%arg0: i32) -> (i32, i32, i32) {
    %c0_i32 = arith.constant 0 : i32
    %c0_i32_0 = arith.constant 0 : i32
    %c0_i32_1 = arith.constant 0 : i32
    return %arg0, %c0_i32, %c0_i32_0 : i32, i32, i32
  }
}

module attributes {stable_mosaic.version = 11 : i64} {
  func.func @kernel(%arg0: i32, %arg1: memref<1x8x384xbf16, #tpu.memory_space<vmem>>, %arg2: memref<8x72xbf16, #tpu.memory_space<vmem>>, %arg3: memref<2x8x2xf32, #tpu.memory_space<vmem>>, %arg4: memref<8x1xf32, #tpu.memory_space<vmem>>, %arg5: memref<8x1xf32, #tpu.memory_space<vmem>>, %arg6: memref<1x384xf32, #tpu.memory_space<vmem>>, %arg7: memref<1x8x384xbf16, #tpu.memory_space<vmem>>, %arg8: memref<1x8x2xf32, #tpu.memory_space<vmem>>, %arg9: memref<72x286xbf16, #tpu.memory_space<vmem>>) attributes {dimension_semantics = [#tpu.dimension_semantics<parallel>], iteration_bounds = array<i64: 2>, scalar_prefetch = 0 : i64, scratch_operands = 1 : i64, tpu.core_type = #tpu.core_type<tc>, window_params = [{transform_indices = @transform_0, window_bounds = array<i64: 1, 8, 384>}, {pipeline_mode = #tpu.pipeline_mode<synchronous>, transform_indices = @transform_1, window_bounds = array<i64: 8, 72>}, {pipeline_mode = #tpu.pipeline_mode<synchronous>, transform_indices = @transform_2, window_bounds = array<i64: 2, 8, 2>}, {pipeline_mode = #tpu.pipeline_mode<synchronous>, transform_indices = @transform_3, window_bounds = array<i64: 8, 1>}, {pipeline_mode = #tpu.pipeline_mode<synchronous>, transform_indices = @transform_4, window_bounds = array<i64: 8, 1>}, {pipeline_mode = #tpu.pipeline_mode<synchronous>, transform_indices = @transform_5, window_bounds = array<i64: 1, 384>}, {transform_indices = @transform_6, window_bounds = array<i64: 1, 8, 384>}, {transform_indices = @transform_7, window_bounds = array<i64: 1, 8, 2>}]} {
    %c0 = arith.constant 0 : index
    %c0_0 = arith.constant 0 : index
    %0 = vector.load %arg6[%c0, %c0_0] : memref<1x384xf32, #tpu.memory_space<vmem>>, vector<1x384xf32>
    %c0_1 = arith.constant 0 : index
    %c0_2 = arith.constant 0 : index
    %c0_3 = arith.constant 0 : index
    %1 = vector.load %arg1[%c0_1, %c0_2, %c0_3] : memref<1x8x384xbf16, #tpu.memory_space<vmem>>, vector<1x8x384xbf16>
    %2 = vector.shape_cast %1 : vector<1x8x384xbf16> to vector<8x384xbf16>
    %3 = arith.extf %2 : vector<8x384xbf16> to vector<8x384xf32>
    %c0_4 = arith.constant 0 : index
    %c0_5 = arith.constant 0 : index
    %c0_6 = arith.constant 0 : index
    %4 = vector.load %arg3[%c0_4, %c0_5, %c0_6] : memref<2x8x2xf32, #tpu.memory_space<vmem>>, vector<1x8x2xf32>
    %5 = vector.shape_cast %4 : vector<1x8x2xf32> to vector<8x2xf32>
    %c1 = arith.constant 1 : index
    %c0_7 = arith.constant 0 : index
    %c0_8 = arith.constant 0 : index
    %6 = vector.load %arg3[%c1, %c0_7, %c0_8] : memref<2x8x2xf32, #tpu.memory_space<vmem>>, vector<1x8x2xf32>
    %7 = vector.shape_cast %6 : vector<1x8x2xf32> to vector<8x2xf32>
    %8 = arith.addf %5, %7 : vector<8x2xf32>
    %c0_9 = arith.constant 0 : index
    %c0_10 = arith.constant 0 : index
    %9 = vector.load %arg4[%c0_9, %c0_10] : memref<8x1xf32, #tpu.memory_space<vmem>>, vector<8x1xf32>
    %c0_11 = arith.constant 0 : index
    %c0_12 = arith.constant 0 : index
    %10 = vector.load %arg5[%c0_11, %c0_12] : memref<8x1xf32, #tpu.memory_space<vmem>>, vector<8x1xf32>
    %11 = vector.extract_strided_slice %8 {offsets = [0, 0], sizes = [8, 1], strides = [1, 1]} : vector<8x2xf32> to vector<8x1xf32>
    %cst = arith.constant 0.001953125 : f32
    %12 = vector.broadcast %cst : f32 to vector<8x1xf32>
    %13 = arith.mulf %11, %12 : vector<8x1xf32>
    %14 = vector.extract_strided_slice %8 {offsets = [0, 1], sizes = [8, 1], strides = [1, 1]} : vector<8x2xf32> to vector<8x1xf32>
    %cst_13 = arith.constant 0.001953125 : f32
    %15 = vector.broadcast %cst_13 : f32 to vector<8x1xf32>
    %16 = arith.mulf %14, %15 : vector<8x1xf32>
    %17 = arith.mulf %13, %13 : vector<8x1xf32>
    %18 = arith.subf %16, %17 : vector<8x1xf32>
    %cst_14 = arith.constant 0.000000e+00 : f32
    %19 = vector.broadcast %cst_14 : f32 to vector<8x1xf32>
    %20 = arith.maximumf %18, %19 : vector<8x1xf32>
    %cst_15 = arith.constant 9.99999974E-6 : f32
    %21 = vector.broadcast %cst_15 : f32 to vector<8x1xf32>
    %22 = arith.addf %20, %21 : vector<8x1xf32>
    %23 = math.rsqrt %22 : vector<8x1xf32>
    %24 = arith.mulf %9, %23 : vector<8x1xf32>
    %25 = arith.mulf %13, %24 : vector<8x1xf32>
    %26 = arith.subf %10, %25 : vector<8x1xf32>
    %27 = vector.broadcast %24 : vector<8x1xf32> to vector<8x384xf32>
    %28 = arith.mulf %3, %27 : vector<8x384xf32>
    %29 = vector.broadcast %26 : vector<8x1xf32> to vector<8x384xf32>
    %30 = arith.addf %28, %29 : vector<8x384xf32>
    %cst_16 = arith.constant 0.000000e+00 : f32
    %31 = vector.broadcast %cst_16 : f32 to vector<8x384xf32>
    %32 = arith.cmpf oge, %30, %31 : vector<8x384xf32>
    %cst_17 = arith.constant 0.00999999977 : f32
    %33 = vector.broadcast %cst_17 : f32 to vector<8x384xf32>
    %34 = arith.mulf %33, %30 : vector<8x384xf32>
    %35 = arith.select %32, %30, %34 : vector<8x384xi1>, vector<8x384xf32>
    %36 = vector.broadcast %0 : vector<1x384xf32> to vector<8x384xf32>
    %37 = arith.mulf %35, %36 : vector<8x384xf32>
    %38 = arith.truncf %37 : vector<8x384xf32> to vector<8x384xbf16>
    %39 = vector.extract_strided_slice %38 {offsets = [0, 0], sizes = [8, 286], strides = [1, 1]} : vector<8x384xbf16> to vector<8x286xbf16>
    %c0_18 = arith.constant 0 : index
    %c0_19 = arith.constant 0 : index
    %40 = vector.load %arg9[%c0_18, %c0_19] : memref<72x286xbf16, #tpu.memory_space<vmem>>, vector<8x286xbf16>
    tpu.vector_store %arg9[%c0_18, %c0_19], %39 {strides = array<i32>} : memref<72x286xbf16, #tpu.memory_space<vmem>>, vector<8x286xbf16>,
    %41 = vector.extract_strided_slice %38 {offsets = [0, 1], sizes = [8, 286], strides = [1, 1]} : vector<8x384xbf16> to vector<8x286xbf16>
    %c8 = arith.constant 8 : index
    %c0_20 = arith.constant 0 : index
    %42 = vector.load %arg9[%c8, %c0_20] : memref<72x286xbf16, #tpu.memory_space<vmem>>, vector<8x286xbf16>
    tpu.vector_store %arg9[%c8, %c0_20], %41 {strides = array<i32>} : memref<72x286xbf16, #tpu.memory_space<vmem>>, vector<8x286xbf16>,
    %43 = vector.extract_strided_slice %38 {offsets = [0, 2], sizes = [8, 286], strides = [1, 1]} : vector<8x384xbf16> to vector<8x286xbf16>
    %c16 = arith.constant 16 : index
    %c0_21 = arith.constant 0 : index
    %44 = vector.load %arg9[%c16, %c0_21] : memref<72x286xbf16, #tpu.memory_space<vmem>>, vector<8x286xbf16>
    tpu.vector_store %arg9[%c16, %c0_21], %43 {strides = array<i32>} : memref<72x286xbf16, #tpu.memory_space<vmem>>, vector<8x286xbf16>,
    %45 = vector.extract_strided_slice %38 {offsets = [0, 18], sizes = [8, 286], strides = [1, 1]} : vector<8x384xbf16> to vector<8x286xbf16>
    %c24 = arith.constant 24 : index
    %c0_22 = arith.constant 0 : index
    %46 = vector.load %arg9[%c24, %c0_22] : memref<72x286xbf16, #tpu.memory_space<vmem>>, vector<8x286xbf16>
    tpu.vector_store %arg9[%c24, %c0_22], %45 {strides = array<i32>} : memref<72x286xbf16, #tpu.memory_space<vmem>>, vector<8x286xbf16>,
    %47 = vector.extract_strided_slice %38 {offsets = [0, 19], sizes = [8, 286], strides = [1, 1]} : vector<8x384xbf16> to vector<8x286xbf16>
    %c32 = arith.constant 32 : index
    %c0_23 = arith.constant 0 : index
    %48 = vector.load %arg9[%c32, %c0_23] : memref<72x286xbf16, #tpu.memory_space<vmem>>, vector<8x286xbf16>
    tpu.vector_store %arg9[%c32, %c0_23], %47 {strides = array<i32>} : memref<72x286xbf16, #tpu.memory_space<vmem>>, vector<8x286xbf16>,
    %49 = vector.extract_strided_slice %38 {offsets = [0, 20], sizes = [8, 286], strides = [1, 1]} : vector<8x384xbf16> to vector<8x286xbf16>
    %c40 = arith.constant 40 : index
    %c0_24 = arith.constant 0 : index
    %50 = vector.load %arg9[%c40, %c0_24] : memref<72x286xbf16, #tpu.memory_space<vmem>>, vector<8x286xbf16>
    tpu.vector_store %arg9[%c40, %c0_24], %49 {strides = array<i32>} : memref<72x286xbf16, #tpu.memory_space<vmem>>, vector<8x286xbf16>,
    %51 = vector.extract_strided_slice %38 {offsets = [0, 36], sizes = [8, 286], strides = [1, 1]} : vector<8x384xbf16> to vector<8x286xbf16>
    %c48 = arith.constant 48 : index
    %c0_25 = arith.constant 0 : index
    %52 = vector.load %arg9[%c48, %c0_25] : memref<72x286xbf16, #tpu.memory_space<vmem>>, vector<8x286xbf16>
    tpu.vector_store %arg9[%c48, %c0_25], %51 {strides = array<i32>} : memref<72x286xbf16, #tpu.memory_space<vmem>>, vector<8x286xbf16>,
    %53 = vector.extract_strided_slice %38 {offsets = [0, 37], sizes = [8, 286], strides = [1, 1]} : vector<8x384xbf16> to vector<8x286xbf16>
    %c56 = arith.constant 56 : index
    %c0_26 = arith.constant 0 : index
    %54 = vector.load %arg9[%c56, %c0_26] : memref<72x286xbf16, #tpu.memory_space<vmem>>, vector<8x286xbf16>
    tpu.vector_store %arg9[%c56, %c0_26], %53 {strides = array<i32>} : memref<72x286xbf16, #tpu.memory_space<vmem>>, vector<8x286xbf16>,
    %55 = vector.extract_strided_slice %38 {offsets = [0, 38], sizes = [8, 286], strides = [1, 1]} : vector<8x384xbf16> to vector<8x286xbf16>
    %c64 = arith.constant 64 : index
    %c0_27 = arith.constant 0 : index
    %56 = vector.load %arg9[%c64, %c0_27] : memref<72x286xbf16, #tpu.memory_space<vmem>>, vector<8x286xbf16>
    tpu.vector_store %arg9[%c64, %c0_27], %55 {strides = array<i32>} : memref<72x286xbf16, #tpu.memory_space<vmem>>, vector<8x286xbf16>,
    %c0_28 = arith.constant 0 : index
    %c0_29 = arith.constant 0 : index
    %57 = vector.load %arg2[%c0_28, %c0_29] : memref<8x72xbf16, #tpu.memory_space<vmem>>, vector<8x72xbf16>
    %c0_30 = arith.constant 0 : index
    %c0_31 = arith.constant 0 : index
    %58 = vector.load %arg9[%c0_30, %c0_31] : memref<72x286xbf16, #tpu.memory_space<vmem>>, vector<72x286xbf16>
    %cst_32 = arith.constant dense<0.000000e+00> : vector<8x286xf32>
    %59 = tpu.matmul %57, %58, %cst_32 {dimension_numbers = #tpu.dot_dimension_numbers<[1], [0], [0], [1], [0, 0, 1, 1], [], []>} : vector<8x72xbf16>, vector<72x286xbf16>, vector<8x286xf32> -> vector<8x286xf32>
    %60 = vector.extract_strided_slice %0 {offsets = [0, 19], sizes = [1, 286], strides = [1, 1]} : vector<1x384xf32> to vector<1x286xf32>
    %61 = vector.broadcast %60 : vector<1x286xf32> to vector<8x286xf32>
    %62 = arith.mulf %59, %61 : vector<8x286xf32>
    %cst_33 = arith.constant dense<0.000000e+00> : vector<8xf32>
    %63 = vector.multi_reduction <add>, %62, %cst_33 [1] : vector<8x286xf32> to vector<8xf32>
    %64 = vector.shape_cast %63 : vector<8xf32> to vector<8x1xf32>
    %c0_34 = arith.constant 0 : index
    %c0_35 = arith.constant 0 : index
    %c0_36 = arith.constant 0 : index
    %65 = vector.load %arg8[%c0_34, %c0_35, %c0_36] : memref<1x8x2xf32, #tpu.memory_space<vmem>>, vector<1x8x1xf32>
    %66 = vector.shape_cast %65 : vector<1x8x1xf32> to vector<8x1xf32>
    %67 = vector.shape_cast %64 : vector<8x1xf32> to vector<1x8x1xf32>
    tpu.vector_store %arg8[%c0_34, %c0_35, %c0_36], %67 {strides = array<i32>} : memref<1x8x2xf32, #tpu.memory_space<vmem>>, vector<1x8x1xf32>,
    %68 = arith.mulf %62, %62 : vector<8x286xf32>
    %cst_37 = arith.constant dense<0.000000e+00> : vector<8xf32>
    %69 = vector.multi_reduction <add>, %68, %cst_37 [1] : vector<8x286xf32> to vector<8xf32>
    %70 = vector.shape_cast %69 : vector<8xf32> to vector<8x1xf32>
    %c0_38 = arith.constant 0 : index
    %c0_39 = arith.constant 0 : index
    %c1_40 = arith.constant 1 : index
    %71 = vector.load %arg8[%c0_38, %c0_39, %c1_40] : memref<1x8x2xf32, #tpu.memory_space<vmem>>, vector<1x8x1xf32>
    %72 = vector.shape_cast %71 : vector<1x8x1xf32> to vector<8x1xf32>
    %73 = vector.shape_cast %70 : vector<8x1xf32> to vector<1x8x1xf32>
    tpu.vector_store %arg8[%c0_38, %c0_39, %c1_40], %73 {strides = array<i32>} : memref<1x8x2xf32, #tpu.memory_space<vmem>>, vector<1x8x1xf32>,
    %74 = arith.truncf %62 : vector<8x286xf32> to vector<8x286xbf16>
    %cst_41 = arith.constant 0.000000e+00 : bf16
    %75 = vector.broadcast %cst_41 : bf16 to vector<8x19xbf16>
    %c0_42 = arith.constant 0 : index
    %c0_43 = arith.constant 0 : index
    %c0_44 = arith.constant 0 : index
    %76 = vector.load %arg7[%c0_42, %c0_43, %c0_44] : memref<1x8x384xbf16, #tpu.memory_space<vmem>>, vector<1x8x19xbf16>
    %77 = vector.shape_cast %76 : vector<1x8x19xbf16> to vector<8x19xbf16>
    %78 = vector.shape_cast %75 : vector<8x19xbf16> to vector<1x8x19xbf16>
    tpu.vector_store %arg7[%c0_42, %c0_43, %c0_44], %78 {strides = array<i32>} : memref<1x8x384xbf16, #tpu.memory_space<vmem>>, vector<1x8x19xbf16>,
    %c0_45 = arith.constant 0 : index
    %c0_46 = arith.constant 0 : index
    %c19 = arith.constant 19 : index
    %79 = vector.load %arg7[%c0_45, %c0_46, %c19] : memref<1x8x384xbf16, #tpu.memory_space<vmem>>, vector<1x8x286xbf16>
    %80 = vector.shape_cast %79 : vector<1x8x286xbf16> to vector<8x286xbf16>
    %81 = vector.shape_cast %74 : vector<8x286xbf16> to vector<1x8x286xbf16>
    tpu.vector_store %arg7[%c0_45, %c0_46, %c19], %81 {strides = array<i32>} : memref<1x8x384xbf16, #tpu.memory_space<vmem>>, vector<1x8x286xbf16>,
    %cst_47 = arith.constant 0.000000e+00 : bf16
    %82 = vector.broadcast %cst_47 : bf16 to vector<8x79xbf16>
    %c0_48 = arith.constant 0 : index
    %c0_49 = arith.constant 0 : index
    %c305 = arith.constant 305 : index
    %83 = vector.load %arg7[%c0_48, %c0_49, %c305] : memref<1x8x384xbf16, #tpu.memory_space<vmem>>, vector<1x8x79xbf16>
    %84 = vector.shape_cast %83 : vector<1x8x79xbf16> to vector<8x79xbf16>
    %85 = vector.shape_cast %82 : vector<8x79xbf16> to vector<1x8x79xbf16>
    tpu.vector_store %arg7[%c0_48, %c0_49, %c305], %85 {strides = array<i32>} : memref<1x8x384xbf16, #tpu.memory_space<vmem>>, vector<1x8x79xbf16>,
    return
  }
  func.func @transform_0(%arg0: i32) -> (i32, i32, i32) {
    %c0_i32 = arith.constant 0 : i32
    %c0_i32_0 = arith.constant 0 : i32
    %c0_i32_1 = arith.constant 0 : i32
    return %arg0, %c0_i32, %c0_i32_0 : i32, i32, i32
  }
  func.func @transform_1(%arg0: i32) -> (i32, i32) {
    %c0_i32 = arith.constant 0 : i32
    %c0_i32_0 = arith.constant 0 : i32
    %c0_i32_1 = arith.constant 0 : i32
    return %c0_i32, %c0_i32_0 : i32, i32
  }
  func.func @transform_2(%arg0: i32) -> (i32, i32, i32) {
    %c0_i32 = arith.constant 0 : i32
    %c0_i32_0 = arith.constant 0 : i32
    %c0_i32_1 = arith.constant 0 : i32
    %c0_i32_2 = arith.constant 0 : i32
    return %c0_i32, %c0_i32_0, %c0_i32_1 : i32, i32, i32
  }
  func.func @transform_3(%arg0: i32) -> (i32, i32) {
    %c0_i32 = arith.constant 0 : i32
    %c0_i32_0 = arith.constant 0 : i32
    %c0_i32_1 = arith.constant 0 : i32
    return %c0_i32, %c0_i32_0 : i32, i32
  }
  func.func @transform_4(%arg0: i32) -> (i32, i32) {
    %c0_i32 = arith.constant 0 : i32
    %c0_i32_0 = arith.constant 0 : i32
    %c0_i32_1 = arith.constant 0 : i32
    return %c0_i32, %c0_i32_0 : i32, i32
  }
  func.func @transform_5(%arg0: i32) -> (i32, i32) {
    %c0_i32 = arith.constant 0 : i32
    %c0_i32_0 = arith.constant 0 : i32
    %c0_i32_1 = arith.constant 0 : i32
    return %c0_i32, %c0_i32_0 : i32, i32
  }
  func.func @transform_6(%arg0: i32) -> (i32, i32, i32) {
    %c0_i32 = arith.constant 0 : i32
    %c0_i32_0 = arith.constant 0 : i32
    %c0_i32_1 = arith.constant 0 : i32
    return %arg0, %c0_i32, %c0_i32_0 : i32, i32, i32
  }
  func.func @transform_7(%arg0: i32) -> (i32, i32, i32) {
    %c0_i32 = arith.constant 0 : i32
    %c0_i32_0 = arith.constant 0 : i32
    %c0_i32_1 = arith.constant 0 : i32
    return %arg0, %c0_i32, %c0_i32_0 : i32, i32, i32
  }
}

module attributes {stable_mosaic.version = 11 : i64} {
  func.func @kernel(%arg0: i32, %arg1: memref<1x8x384xbf16, #tpu.memory_space<vmem>>, %arg2: memref<1x8x384xbf16, #tpu.memory_space<vmem>>, %arg3: memref<8x144xbf16, #tpu.memory_space<vmem>>, %arg4: memref<2x8x2xf32, #tpu.memory_space<vmem>>, %arg5: memref<8x1xf32, #tpu.memory_space<vmem>>, %arg6: memref<8x1xf32, #tpu.memory_space<vmem>>, %arg7: memref<2x8x2xf32, #tpu.memory_space<vmem>>, %arg8: memref<8x1xf32, #tpu.memory_space<vmem>>, %arg9: memref<8x1xf32, #tpu.memory_space<vmem>>, %arg10: memref<1x384xf32, #tpu.memory_space<vmem>>, %arg11: memref<1x8x384xbf16, #tpu.memory_space<vmem>>, %arg12: memref<1x8x2xf32, #tpu.memory_space<vmem>>, %arg13: memref<144x286xbf16, #tpu.memory_space<vmem>>) attributes {dimension_semantics = [#tpu.dimension_semantics<parallel>], iteration_bounds = array<i64: 2>, scalar_prefetch = 0 : i64, scratch_operands = 1 : i64, tpu.core_type = #tpu.core_type<tc>, window_params = [{transform_indices = @transform_0, window_bounds = array<i64: 1, 8, 384>}, {transform_indices = @transform_1, window_bounds = array<i64: 1, 8, 384>}, {pipeline_mode = #tpu.pipeline_mode<synchronous>, transform_indices = @transform_2, window_bounds = array<i64: 8, 144>}, {pipeline_mode = #tpu.pipeline_mode<synchronous>, transform_indices = @transform_3, window_bounds = array<i64: 2, 8, 2>}, {pipeline_mode = #tpu.pipeline_mode<synchronous>, transform_indices = @transform_4, window_bounds = array<i64: 8, 1>}, {pipeline_mode = #tpu.pipeline_mode<synchronous>, transform_indices = @transform_5, window_bounds = array<i64: 8, 1>}, {pipeline_mode = #tpu.pipeline_mode<synchronous>, transform_indices = @transform_6, window_bounds = array<i64: 2, 8, 2>}, {pipeline_mode = #tpu.pipeline_mode<synchronous>, transform_indices = @transform_7, window_bounds = array<i64: 8, 1>}, {pipeline_mode = #tpu.pipeline_mode<synchronous>, transform_indices = @transform_8, window_bounds = array<i64: 8, 1>}, {pipeline_mode = #tpu.pipeline_mode<synchronous>, transform_indices = @transform_9, window_bounds = array<i64: 1, 384>}, {transform_indices = @transform_10, window_bounds = array<i64: 1, 8, 384>}, {transform_indices = @transform_11, window_bounds = array<i64: 1, 8, 2>}]} {
    %c0 = arith.constant 0 : index
    %c0_0 = arith.constant 0 : index
    %0 = vector.load %arg10[%c0, %c0_0] : memref<1x384xf32, #tpu.memory_space<vmem>>, vector<1x384xf32>
    %c0_1 = arith.constant 0 : index
    %c0_2 = arith.constant 0 : index
    %c0_3 = arith.constant 0 : index
    %1 = vector.load %arg1[%c0_1, %c0_2, %c0_3] : memref<1x8x384xbf16, #tpu.memory_space<vmem>>, vector<1x8x384xbf16>
    %2 = vector.shape_cast %1 : vector<1x8x384xbf16> to vector<8x384xbf16>
    %3 = arith.extf %2 : vector<8x384xbf16> to vector<8x384xf32>
    %c0_4 = arith.constant 0 : index
    %c0_5 = arith.constant 0 : index
    %c0_6 = arith.constant 0 : index
    %4 = vector.load %arg4[%c0_4, %c0_5, %c0_6] : memref<2x8x2xf32, #tpu.memory_space<vmem>>, vector<1x8x2xf32>
    %5 = vector.shape_cast %4 : vector<1x8x2xf32> to vector<8x2xf32>
    %c1 = arith.constant 1 : index
    %c0_7 = arith.constant 0 : index
    %c0_8 = arith.constant 0 : index
    %6 = vector.load %arg4[%c1, %c0_7, %c0_8] : memref<2x8x2xf32, #tpu.memory_space<vmem>>, vector<1x8x2xf32>
    %7 = vector.shape_cast %6 : vector<1x8x2xf32> to vector<8x2xf32>
    %8 = arith.addf %5, %7 : vector<8x2xf32>
    %c0_9 = arith.constant 0 : index
    %c0_10 = arith.constant 0 : index
    %9 = vector.load %arg5[%c0_9, %c0_10] : memref<8x1xf32, #tpu.memory_space<vmem>>, vector<8x1xf32>
    %c0_11 = arith.constant 0 : index
    %c0_12 = arith.constant 0 : index
    %10 = vector.load %arg6[%c0_11, %c0_12] : memref<8x1xf32, #tpu.memory_space<vmem>>, vector<8x1xf32>
    %11 = vector.extract_strided_slice %8 {offsets = [0, 0], sizes = [8, 1], strides = [1, 1]} : vector<8x2xf32> to vector<8x1xf32>
    %cst = arith.constant 0.001953125 : f32
    %12 = vector.broadcast %cst : f32 to vector<8x1xf32>
    %13 = arith.mulf %11, %12 : vector<8x1xf32>
    %14 = vector.extract_strided_slice %8 {offsets = [0, 1], sizes = [8, 1], strides = [1, 1]} : vector<8x2xf32> to vector<8x1xf32>
    %cst_13 = arith.constant 0.001953125 : f32
    %15 = vector.broadcast %cst_13 : f32 to vector<8x1xf32>
    %16 = arith.mulf %14, %15 : vector<8x1xf32>
    %17 = arith.mulf %13, %13 : vector<8x1xf32>
    %18 = arith.subf %16, %17 : vector<8x1xf32>
    %cst_14 = arith.constant 0.000000e+00 : f32
    %19 = vector.broadcast %cst_14 : f32 to vector<8x1xf32>
    %20 = arith.maximumf %18, %19 : vector<8x1xf32>
    %cst_15 = arith.constant 9.99999974E-6 : f32
    %21 = vector.broadcast %cst_15 : f32 to vector<8x1xf32>
    %22 = arith.addf %20, %21 : vector<8x1xf32>
    %23 = math.rsqrt %22 : vector<8x1xf32>
    %24 = arith.mulf %9, %23 : vector<8x1xf32>
    %25 = arith.mulf %13, %24 : vector<8x1xf32>
    %26 = arith.subf %10, %25 : vector<8x1xf32>
    %27 = vector.broadcast %24 : vector<8x1xf32> to vector<8x384xf32>
    %28 = arith.mulf %3, %27 : vector<8x384xf32>
    %29 = vector.broadcast %26 : vector<8x1xf32> to vector<8x384xf32>
    %30 = arith.addf %28, %29 : vector<8x384xf32>
    %cst_16 = arith.constant 0.000000e+00 : f32
    %31 = vector.broadcast %cst_16 : f32 to vector<8x384xf32>
    %32 = arith.cmpf oge, %30, %31 : vector<8x384xf32>
    %cst_17 = arith.constant 0.00999999977 : f32
    %33 = vector.broadcast %cst_17 : f32 to vector<8x384xf32>
    %34 = arith.mulf %33, %30 : vector<8x384xf32>
    %35 = arith.select %32, %30, %34 : vector<8x384xi1>, vector<8x384xf32>
    %36 = vector.broadcast %0 : vector<1x384xf32> to vector<8x384xf32>
    %37 = arith.mulf %35, %36 : vector<8x384xf32>
    %38 = arith.truncf %37 : vector<8x384xf32> to vector<8x384xbf16>
    %39 = vector.extract_strided_slice %38 {offsets = [0, 0], sizes = [8, 286], strides = [1, 1]} : vector<8x384xbf16> to vector<8x286xbf16>
    %c0_18 = arith.constant 0 : index
    %c0_19 = arith.constant 0 : index
    %40 = vector.load %arg13[%c0_18, %c0_19] : memref<144x286xbf16, #tpu.memory_space<vmem>>, vector<8x286xbf16>
    tpu.vector_store %arg13[%c0_18, %c0_19], %39 {strides = array<i32>} : memref<144x286xbf16, #tpu.memory_space<vmem>>, vector<8x286xbf16>,
    %41 = vector.extract_strided_slice %38 {offsets = [0, 1], sizes = [8, 286], strides = [1, 1]} : vector<8x384xbf16> to vector<8x286xbf16>
    %c8 = arith.constant 8 : index
    %c0_20 = arith.constant 0 : index
    %42 = vector.load %arg13[%c8, %c0_20] : memref<144x286xbf16, #tpu.memory_space<vmem>>, vector<8x286xbf16>
    tpu.vector_store %arg13[%c8, %c0_20], %41 {strides = array<i32>} : memref<144x286xbf16, #tpu.memory_space<vmem>>, vector<8x286xbf16>,
    %43 = vector.extract_strided_slice %38 {offsets = [0, 2], sizes = [8, 286], strides = [1, 1]} : vector<8x384xbf16> to vector<8x286xbf16>
    %c16 = arith.constant 16 : index
    %c0_21 = arith.constant 0 : index
    %44 = vector.load %arg13[%c16, %c0_21] : memref<144x286xbf16, #tpu.memory_space<vmem>>, vector<8x286xbf16>
    tpu.vector_store %arg13[%c16, %c0_21], %43 {strides = array<i32>} : memref<144x286xbf16, #tpu.memory_space<vmem>>, vector<8x286xbf16>,
    %45 = vector.extract_strided_slice %38 {offsets = [0, 18], sizes = [8, 286], strides = [1, 1]} : vector<8x384xbf16> to vector<8x286xbf16>
    %c24 = arith.constant 24 : index
    %c0_22 = arith.constant 0 : index
    %46 = vector.load %arg13[%c24, %c0_22] : memref<144x286xbf16, #tpu.memory_space<vmem>>, vector<8x286xbf16>
    tpu.vector_store %arg13[%c24, %c0_22], %45 {strides = array<i32>} : memref<144x286xbf16, #tpu.memory_space<vmem>>, vector<8x286xbf16>,
    %47 = vector.extract_strided_slice %38 {offsets = [0, 19], sizes = [8, 286], strides = [1, 1]} : vector<8x384xbf16> to vector<8x286xbf16>
    %c32 = arith.constant 32 : index
    %c0_23 = arith.constant 0 : index
    %48 = vector.load %arg13[%c32, %c0_23] : memref<144x286xbf16, #tpu.memory_space<vmem>>, vector<8x286xbf16>
    tpu.vector_store %arg13[%c32, %c0_23], %47 {strides = array<i32>} : memref<144x286xbf16, #tpu.memory_space<vmem>>, vector<8x286xbf16>,
    %49 = vector.extract_strided_slice %38 {offsets = [0, 20], sizes = [8, 286], strides = [1, 1]} : vector<8x384xbf16> to vector<8x286xbf16>
    %c40 = arith.constant 40 : index
    %c0_24 = arith.constant 0 : index
    %50 = vector.load %arg13[%c40, %c0_24] : memref<144x286xbf16, #tpu.memory_space<vmem>>, vector<8x286xbf16>
    tpu.vector_store %arg13[%c40, %c0_24], %49 {strides = array<i32>} : memref<144x286xbf16, #tpu.memory_space<vmem>>, vector<8x286xbf16>,
    %51 = vector.extract_strided_slice %38 {offsets = [0, 36], sizes = [8, 286], strides = [1, 1]} : vector<8x384xbf16> to vector<8x286xbf16>
    %c48 = arith.constant 48 : index
    %c0_25 = arith.constant 0 : index
    %52 = vector.load %arg13[%c48, %c0_25] : memref<144x286xbf16, #tpu.memory_space<vmem>>, vector<8x286xbf16>
    tpu.vector_store %arg13[%c48, %c0_25], %51 {strides = array<i32>} : memref<144x286xbf16, #tpu.memory_space<vmem>>, vector<8x286xbf16>,
    %53 = vector.extract_strided_slice %38 {offsets = [0, 37], sizes = [8, 286], strides = [1, 1]} : vector<8x384xbf16> to vector<8x286xbf16>
    %c56 = arith.constant 56 : index
    %c0_26 = arith.constant 0 : index
    %54 = vector.load %arg13[%c56, %c0_26] : memref<144x286xbf16, #tpu.memory_space<vmem>>, vector<8x286xbf16>
    tpu.vector_store %arg13[%c56, %c0_26], %53 {strides = array<i32>} : memref<144x286xbf16, #tpu.memory_space<vmem>>, vector<8x286xbf16>,
    %55 = vector.extract_strided_slice %38 {offsets = [0, 38], sizes = [8, 286], strides = [1, 1]} : vector<8x384xbf16> to vector<8x286xbf16>
    %c64 = arith.constant 64 : index
    %c0_27 = arith.constant 0 : index
    %56 = vector.load %arg13[%c64, %c0_27] : memref<144x286xbf16, #tpu.memory_space<vmem>>, vector<8x286xbf16>
    tpu.vector_store %arg13[%c64, %c0_27], %55 {strides = array<i32>} : memref<144x286xbf16, #tpu.memory_space<vmem>>, vector<8x286xbf16>,
    %c0_28 = arith.constant 0 : index
    %c0_29 = arith.constant 0 : index
    %c0_30 = arith.constant 0 : index
    %57 = vector.load %arg2[%c0_28, %c0_29, %c0_30] : memref<1x8x384xbf16, #tpu.memory_space<vmem>>, vector<1x8x384xbf16>
    %58 = vector.shape_cast %57 : vector<1x8x384xbf16> to vector<8x384xbf16>
    %59 = arith.extf %58 : vector<8x384xbf16> to vector<8x384xf32>
    %c0_31 = arith.constant 0 : index
    %c0_32 = arith.constant 0 : index
    %c0_33 = arith.constant 0 : index
    %60 = vector.load %arg7[%c0_31, %c0_32, %c0_33] : memref<2x8x2xf32, #tpu.memory_space<vmem>>, vector<1x8x2xf32>
    %61 = vector.shape_cast %60 : vector<1x8x2xf32> to vector<8x2xf32>
    %c1_34 = arith.constant 1 : index
    %c0_35 = arith.constant 0 : index
    %c0_36 = arith.constant 0 : index
    %62 = vector.load %arg7[%c1_34, %c0_35, %c0_36] : memref<2x8x2xf32, #tpu.memory_space<vmem>>, vector<1x8x2xf32>
    %63 = vector.shape_cast %62 : vector<1x8x2xf32> to vector<8x2xf32>
    %64 = arith.addf %61, %63 : vector<8x2xf32>
    %c0_37 = arith.constant 0 : index
    %c0_38 = arith.constant 0 : index
    %65 = vector.load %arg8[%c0_37, %c0_38] : memref<8x1xf32, #tpu.memory_space<vmem>>, vector<8x1xf32>
    %c0_39 = arith.constant 0 : index
    %c0_40 = arith.constant 0 : index
    %66 = vector.load %arg9[%c0_39, %c0_40] : memref<8x1xf32, #tpu.memory_space<vmem>>, vector<8x1xf32>
    %67 = vector.extract_strided_slice %64 {offsets = [0, 0], sizes = [8, 1], strides = [1, 1]} : vector<8x2xf32> to vector<8x1xf32>
    %cst_41 = arith.constant 0.001953125 : f32
    %68 = vector.broadcast %cst_41 : f32 to vector<8x1xf32>
    %69 = arith.mulf %67, %68 : vector<8x1xf32>
    %70 = vector.extract_strided_slice %64 {offsets = [0, 1], sizes = [8, 1], strides = [1, 1]} : vector<8x2xf32> to vector<8x1xf32>
    %cst_42 = arith.constant 0.001953125 : f32
    %71 = vector.broadcast %cst_42 : f32 to vector<8x1xf32>
    %72 = arith.mulf %70, %71 : vector<8x1xf32>
    %73 = arith.mulf %69, %69 : vector<8x1xf32>
    %74 = arith.subf %72, %73 : vector<8x1xf32>
    %cst_43 = arith.constant 0.000000e+00 : f32
    %75 = vector.broadcast %cst_43 : f32 to vector<8x1xf32>
    %76 = arith.maximumf %74, %75 : vector<8x1xf32>
    %cst_44 = arith.constant 9.99999974E-6 : f32
    %77 = vector.broadcast %cst_44 : f32 to vector<8x1xf32>
    %78 = arith.addf %76, %77 : vector<8x1xf32>
    %79 = math.rsqrt %78 : vector<8x1xf32>
    %80 = arith.mulf %65, %79 : vector<8x1xf32>
    %81 = arith.mulf %69, %80 : vector<8x1xf32>
    %82 = arith.subf %66, %81 : vector<8x1xf32>
    %83 = vector.broadcast %80 : vector<8x1xf32> to vector<8x384xf32>
    %84 = arith.mulf %59, %83 : vector<8x384xf32>
    %85 = vector.broadcast %82 : vector<8x1xf32> to vector<8x384xf32>
    %86 = arith.addf %84, %85 : vector<8x384xf32>
    %cst_45 = arith.constant 0.000000e+00 : f32
    %87 = vector.broadcast %cst_45 : f32 to vector<8x384xf32>
    %88 = arith.cmpf oge, %86, %87 : vector<8x384xf32>
    %cst_46 = arith.constant 0.00999999977 : f32
    %89 = vector.broadcast %cst_46 : f32 to vector<8x384xf32>
    %90 = arith.mulf %89, %86 : vector<8x384xf32>
    %91 = arith.select %88, %86, %90 : vector<8x384xi1>, vector<8x384xf32>
    %92 = vector.broadcast %0 : vector<1x384xf32> to vector<8x384xf32>
    %93 = arith.mulf %91, %92 : vector<8x384xf32>
    %94 = arith.truncf %93 : vector<8x384xf32> to vector<8x384xbf16>
    %95 = vector.extract_strided_slice %94 {offsets = [0, 0], sizes = [8, 286], strides = [1, 1]} : vector<8x384xbf16> to vector<8x286xbf16>
    %c72 = arith.constant 72 : index
    %c0_47 = arith.constant 0 : index
    %96 = vector.load %arg13[%c72, %c0_47] : memref<144x286xbf16, #tpu.memory_space<vmem>>, vector<8x286xbf16>
    tpu.vector_store %arg13[%c72, %c0_47], %95 {strides = array<i32>} : memref<144x286xbf16, #tpu.memory_space<vmem>>, vector<8x286xbf16>,
    %97 = vector.extract_strided_slice %94 {offsets = [0, 1], sizes = [8, 286], strides = [1, 1]} : vector<8x384xbf16> to vector<8x286xbf16>
    %c80 = arith.constant 80 : index
    %c0_48 = arith.constant 0 : index
    %98 = vector.load %arg13[%c80, %c0_48] : memref<144x286xbf16, #tpu.memory_space<vmem>>, vector<8x286xbf16>
    tpu.vector_store %arg13[%c80, %c0_48], %97 {strides = array<i32>} : memref<144x286xbf16, #tpu.memory_space<vmem>>, vector<8x286xbf16>,
    %99 = vector.extract_strided_slice %94 {offsets = [0, 2], sizes = [8, 286], strides = [1, 1]} : vector<8x384xbf16> to vector<8x286xbf16>
    %c88 = arith.constant 88 : index
    %c0_49 = arith.constant 0 : index
    %100 = vector.load %arg13[%c88, %c0_49] : memref<144x286xbf16, #tpu.memory_space<vmem>>, vector<8x286xbf16>
    tpu.vector_store %arg13[%c88, %c0_49], %99 {strides = array<i32>} : memref<144x286xbf16, #tpu.memory_space<vmem>>, vector<8x286xbf16>,
    %101 = vector.extract_strided_slice %94 {offsets = [0, 18], sizes = [8, 286], strides = [1, 1]} : vector<8x384xbf16> to vector<8x286xbf16>
    %c96 = arith.constant 96 : index
    %c0_50 = arith.constant 0 : index
    %102 = vector.load %arg13[%c96, %c0_50] : memref<144x286xbf16, #tpu.memory_space<vmem>>, vector<8x286xbf16>
    tpu.vector_store %arg13[%c96, %c0_50], %101 {strides = array<i32>} : memref<144x286xbf16, #tpu.memory_space<vmem>>, vector<8x286xbf16>,
    %103 = vector.extract_strided_slice %94 {offsets = [0, 19], sizes = [8, 286], strides = [1, 1]} : vector<8x384xbf16> to vector<8x286xbf16>
    %c104 = arith.constant 104 : index
    %c0_51 = arith.constant 0 : index
    %104 = vector.load %arg13[%c104, %c0_51] : memref<144x286xbf16, #tpu.memory_space<vmem>>, vector<8x286xbf16>
    tpu.vector_store %arg13[%c104, %c0_51], %103 {strides = array<i32>} : memref<144x286xbf16, #tpu.memory_space<vmem>>, vector<8x286xbf16>,
    %105 = vector.extract_strided_slice %94 {offsets = [0, 20], sizes = [8, 286], strides = [1, 1]} : vector<8x384xbf16> to vector<8x286xbf16>
    %c112 = arith.constant 112 : index
    %c0_52 = arith.constant 0 : index
    %106 = vector.load %arg13[%c112, %c0_52] : memref<144x286xbf16, #tpu.memory_space<vmem>>, vector<8x286xbf16>
    tpu.vector_store %arg13[%c112, %c0_52], %105 {strides = array<i32>} : memref<144x286xbf16, #tpu.memory_space<vmem>>, vector<8x286xbf16>,
    %107 = vector.extract_strided_slice %94 {offsets = [0, 36], sizes = [8, 286], strides = [1, 1]} : vector<8x384xbf16> to vector<8x286xbf16>
    %c120 = arith.constant 120 : index
    %c0_53 = arith.constant 0 : index
    %108 = vector.load %arg13[%c120, %c0_53] : memref<144x286xbf16, #tpu.memory_space<vmem>>, vector<8x286xbf16>
    tpu.vector_store %arg13[%c120, %c0_53], %107 {strides = array<i32>} : memref<144x286xbf16, #tpu.memory_space<vmem>>, vector<8x286xbf16>,
    %109 = vector.extract_strided_slice %94 {offsets = [0, 37], sizes = [8, 286], strides = [1, 1]} : vector<8x384xbf16> to vector<8x286xbf16>
    %c128 = arith.constant 128 : index
    %c0_54 = arith.constant 0 : index
    %110 = vector.load %arg13[%c128, %c0_54] : memref<144x286xbf16, #tpu.memory_space<vmem>>, vector<8x286xbf16>
    tpu.vector_store %arg13[%c128, %c0_54], %109 {strides = array<i32>} : memref<144x286xbf16, #tpu.memory_space<vmem>>, vector<8x286xbf16>,
    %111 = vector.extract_strided_slice %94 {offsets = [0, 38], sizes = [8, 286], strides = [1, 1]} : vector<8x384xbf16> to vector<8x286xbf16>
    %c136 = arith.constant 136 : index
    %c0_55 = arith.constant 0 : index
    %112 = vector.load %arg13[%c136, %c0_55] : memref<144x286xbf16, #tpu.memory_space<vmem>>, vector<8x286xbf16>
    tpu.vector_store %arg13[%c136, %c0_55], %111 {strides = array<i32>} : memref<144x286xbf16, #tpu.memory_space<vmem>>, vector<8x286xbf16>,
    %c0_56 = arith.constant 0 : index
    %c0_57 = arith.constant 0 : index
    %113 = vector.load %arg3[%c0_56, %c0_57] : memref<8x144xbf16, #tpu.memory_space<vmem>>, vector<8x144xbf16>
    %c0_58 = arith.constant 0 : index
    %c0_59 = arith.constant 0 : index
    %114 = vector.load %arg13[%c0_58, %c0_59] : memref<144x286xbf16, #tpu.memory_space<vmem>>, vector<144x286xbf16>
    %cst_60 = arith.constant dense<0.000000e+00> : vector<8x286xf32>
    %115 = tpu.matmul %113, %114, %cst_60 {dimension_numbers = #tpu.dot_dimension_numbers<[1], [0], [0], [1], [0, 0, 1, 1], [], []>} : vector<8x144xbf16>, vector<144x286xbf16>, vector<8x286xf32> -> vector<8x286xf32>
    %116 = vector.extract_strided_slice %0 {offsets = [0, 19], sizes = [1, 286], strides = [1, 1]} : vector<1x384xf32> to vector<1x286xf32>
    %117 = vector.broadcast %116 : vector<1x286xf32> to vector<8x286xf32>
    %118 = arith.mulf %115, %117 : vector<8x286xf32>
    %cst_61 = arith.constant dense<0.000000e+00> : vector<8xf32>
    %119 = vector.multi_reduction <add>, %118, %cst_61 [1] : vector<8x286xf32> to vector<8xf32>
    %120 = vector.shape_cast %119 : vector<8xf32> to vector<8x1xf32>
    %c0_62 = arith.constant 0 : index
    %c0_63 = arith.constant 0 : index
    %c0_64 = arith.constant 0 : index
    %121 = vector.load %arg12[%c0_62, %c0_63, %c0_64] : memref<1x8x2xf32, #tpu.memory_space<vmem>>, vector<1x8x1xf32>
    %122 = vector.shape_cast %121 : vector<1x8x1xf32> to vector<8x1xf32>
    %123 = vector.shape_cast %120 : vector<8x1xf32> to vector<1x8x1xf32>
    tpu.vector_store %arg12[%c0_62, %c0_63, %c0_64], %123 {strides = array<i32>} : memref<1x8x2xf32, #tpu.memory_space<vmem>>, vector<1x8x1xf32>,
    %124 = arith.mulf %118, %118 : vector<8x286xf32>
    %cst_65 = arith.constant dense<0.000000e+00> : vector<8xf32>
    %125 = vector.multi_reduction <add>, %124, %cst_65 [1] : vector<8x286xf32> to vector<8xf32>
    %126 = vector.shape_cast %125 : vector<8xf32> to vector<8x1xf32>
    %c0_66 = arith.constant 0 : index
    %c0_67 = arith.constant 0 : index
    %c1_68 = arith.constant 1 : index
    %127 = vector.load %arg12[%c0_66, %c0_67, %c1_68] : memref<1x8x2xf32, #tpu.memory_space<vmem>>, vector<1x8x1xf32>
    %128 = vector.shape_cast %127 : vector<1x8x1xf32> to vector<8x1xf32>
    %129 = vector.shape_cast %126 : vector<8x1xf32> to vector<1x8x1xf32>
    tpu.vector_store %arg12[%c0_66, %c0_67, %c1_68], %129 {strides = array<i32>} : memref<1x8x2xf32, #tpu.memory_space<vmem>>, vector<1x8x1xf32>,
    %130 = arith.truncf %118 : vector<8x286xf32> to vector<8x286xbf16>
    %cst_69 = arith.constant 0.000000e+00 : bf16
    %131 = vector.broadcast %cst_69 : bf16 to vector<8x19xbf16>
    %c0_70 = arith.constant 0 : index
    %c0_71 = arith.constant 0 : index
    %c0_72 = arith.constant 0 : index
    %132 = vector.load %arg11[%c0_70, %c0_71, %c0_72] : memref<1x8x384xbf16, #tpu.memory_space<vmem>>, vector<1x8x19xbf16>
    %133 = vector.shape_cast %132 : vector<1x8x19xbf16> to vector<8x19xbf16>
    %134 = vector.shape_cast %131 : vector<8x19xbf16> to vector<1x8x19xbf16>
    tpu.vector_store %arg11[%c0_70, %c0_71, %c0_72], %134 {strides = array<i32>} : memref<1x8x384xbf16, #tpu.memory_space<vmem>>, vector<1x8x19xbf16>,
    %c0_73 = arith.constant 0 : index
    %c0_74 = arith.constant 0 : index
    %c19 = arith.constant 19 : index
    %135 = vector.load %arg11[%c0_73, %c0_74, %c19] : memref<1x8x384xbf16, #tpu.memory_space<vmem>>, vector<1x8x286xbf16>
    %136 = vector.shape_cast %135 : vector<1x8x286xbf16> to vector<8x286xbf16>
    %137 = vector.shape_cast %130 : vector<8x286xbf16> to vector<1x8x286xbf16>
    tpu.vector_store %arg11[%c0_73, %c0_74, %c19], %137 {strides = array<i32>} : memref<1x8x384xbf16, #tpu.memory_space<vmem>>, vector<1x8x286xbf16>,
    %cst_75 = arith.constant 0.000000e+00 : bf16
    %138 = vector.broadcast %cst_75 : bf16 to vector<8x79xbf16>
    %c0_76 = arith.constant 0 : index
    %c0_77 = arith.constant 0 : index
    %c305 = arith.constant 305 : index
    %139 = vector.load %arg11[%c0_76, %c0_77, %c305] : memref<1x8x384xbf16, #tpu.memory_space<vmem>>, vector<1x8x79xbf16>
    %140 = vector.shape_cast %139 : vector<1x8x79xbf16> to vector<8x79xbf16>
    %141 = vector.shape_cast %138 : vector<8x79xbf16> to vector<1x8x79xbf16>
    tpu.vector_store %arg11[%c0_76, %c0_77, %c305], %141 {strides = array<i32>} : memref<1x8x384xbf16, #tpu.memory_space<vmem>>, vector<1x8x79xbf16>,
    return
  }
  func.func @transform_0(%arg0: i32) -> (i32, i32, i32) {
    %c0_i32 = arith.constant 0 : i32
    %c0_i32_0 = arith.constant 0 : i32
    %c0_i32_1 = arith.constant 0 : i32
    return %arg0, %c0_i32, %c0_i32_0 : i32, i32, i32
  }
  func.func @transform_1(%arg0: i32) -> (i32, i32, i32) {
    %c0_i32 = arith.constant 0 : i32
    %c0_i32_0 = arith.constant 0 : i32
    %c0_i32_1 = arith.constant 0 : i32
    return %arg0, %c0_i32, %c0_i32_0 : i32, i32, i32
  }
  func.func @transform_2(%arg0: i32) -> (i32, i32) {
    %c0_i32 = arith.constant 0 : i32
    %c0_i32_0 = arith.constant 0 : i32
    %c0_i32_1 = arith.constant 0 : i32
    return %c0_i32, %c0_i32_0 : i32, i32
  }
  func.func @transform_3(%arg0: i32) -> (i32, i32, i32) {
    %c0_i32 = arith.constant 0 : i32
    %c0_i32_0 = arith.constant 0 : i32
    %c0_i32_1 = arith.constant 0 : i32
    %c0_i32_2 = arith.constant 0 : i32
    return %c0_i32, %c0_i32_0, %c0_i32_1 : i32, i32, i32
  }
  func.func @transform_4(%arg0: i32) -> (i32, i32) {
    %c0_i32 = arith.constant 0 : i32
    %c0_i32_0 = arith.constant 0 : i32
    %c0_i32_1 = arith.constant 0 : i32
    return %c0_i32, %c0_i32_0 : i32, i32
  }
  func.func @transform_5(%arg0: i32) -> (i32, i32) {
    %c0_i32 = arith.constant 0 : i32
    %c0_i32_0 = arith.constant 0 : i32
    %c0_i32_1 = arith.constant 0 : i32
    return %c0_i32, %c0_i32_0 : i32, i32
  }
  func.func @transform_6(%arg0: i32) -> (i32, i32, i32) {
    %c0_i32 = arith.constant 0 : i32
    %c0_i32_0 = arith.constant 0 : i32
    %c0_i32_1 = arith.constant 0 : i32
    %c0_i32_2 = arith.constant 0 : i32
    return %c0_i32, %c0_i32_0, %c0_i32_1 : i32, i32, i32
  }
  func.func @transform_7(%arg0: i32) -> (i32, i32) {
    %c0_i32 = arith.constant 0 : i32
    %c0_i32_0 = arith.constant 0 : i32
    %c0_i32_1 = arith.constant 0 : i32
    return %c0_i32, %c0_i32_0 : i32, i32
  }
  func.func @transform_8(%arg0: i32) -> (i32, i32) {
    %c0_i32 = arith.constant 0 : i32
    %c0_i32_0 = arith.constant 0 : i32
    %c0_i32_1 = arith.constant 0 : i32
    return %c0_i32, %c0_i32_0 : i32, i32
  }
  func.func @transform_9(%arg0: i32) -> (i32, i32) {
    %c0_i32 = arith.constant 0 : i32
    %c0_i32_0 = arith.constant 0 : i32
    %c0_i32_1 = arith.constant 0 : i32
    return %c0_i32, %c0_i32_0 : i32, i32
  }
  func.func @transform_10(%arg0: i32) -> (i32, i32, i32) {
    %c0_i32 = arith.constant 0 : i32
    %c0_i32_0 = arith.constant 0 : i32
    %c0_i32_1 = arith.constant 0 : i32
    return %arg0, %c0_i32, %c0_i32_0 : i32, i32, i32
  }
  func.func @transform_11(%arg0: i32) -> (i32, i32, i32) {
    %c0_i32 = arith.constant 0 : i32
    %c0_i32_0 = arith.constant 0 : i32
    %c0_i32_1 = arith.constant 0 : i32
    return %arg0, %c0_i32, %c0_i32_0 : i32, i32, i32
  }
}

module attributes {stable_mosaic.version = 11 : i64} {
  func.func @kernel(%arg0: i32, %arg1: memref<1x8x384xbf16, #tpu.memory_space<vmem>>, %arg2: memref<1x8x384xbf16, #tpu.memory_space<vmem>>, %arg3: memref<1x8x384xbf16, #tpu.memory_space<vmem>>, %arg4: memref<8x216xbf16, #tpu.memory_space<vmem>>, %arg5: memref<2x8x2xf32, #tpu.memory_space<vmem>>, %arg6: memref<8x1xf32, #tpu.memory_space<vmem>>, %arg7: memref<8x1xf32, #tpu.memory_space<vmem>>, %arg8: memref<2x8x2xf32, #tpu.memory_space<vmem>>, %arg9: memref<8x1xf32, #tpu.memory_space<vmem>>, %arg10: memref<8x1xf32, #tpu.memory_space<vmem>>, %arg11: memref<2x8x2xf32, #tpu.memory_space<vmem>>, %arg12: memref<8x1xf32, #tpu.memory_space<vmem>>, %arg13: memref<8x1xf32, #tpu.memory_space<vmem>>, %arg14: memref<1x384xf32, #tpu.memory_space<vmem>>, %arg15: memref<1x8x384xbf16, #tpu.memory_space<vmem>>, %arg16: memref<1x8x2xf32, #tpu.memory_space<vmem>>, %arg17: memref<216x286xbf16, #tpu.memory_space<vmem>>) attributes {dimension_semantics = [#tpu.dimension_semantics<parallel>], iteration_bounds = array<i64: 2>, scalar_prefetch = 0 : i64, scratch_operands = 1 : i64, tpu.core_type = #tpu.core_type<tc>, window_params = [{transform_indices = @transform_0, window_bounds = array<i64: 1, 8, 384>}, {transform_indices = @transform_1, window_bounds = array<i64: 1, 8, 384>}, {transform_indices = @transform_2, window_bounds = array<i64: 1, 8, 384>}, {pipeline_mode = #tpu.pipeline_mode<synchronous>, transform_indices = @transform_3, window_bounds = array<i64: 8, 216>}, {pipeline_mode = #tpu.pipeline_mode<synchronous>, transform_indices = @transform_4, window_bounds = array<i64: 2, 8, 2>}, {pipeline_mode = #tpu.pipeline_mode<synchronous>, transform_indices = @transform_5, window_bounds = array<i64: 8, 1>}, {pipeline_mode = #tpu.pipeline_mode<synchronous>, transform_indices = @transform_6, window_bounds = array<i64: 8, 1>}, {pipeline_mode = #tpu.pipeline_mode<synchronous>, transform_indices = @transform_7, window_bounds = array<i64: 2, 8, 2>}, {pipeline_mode = #tpu.pipeline_mode<synchronous>, transform_indices = @transform_8, window_bounds = array<i64: 8, 1>}, {pipeline_mode = #tpu.pipeline_mode<synchronous>, transform_indices = @transform_9, window_bounds = array<i64: 8, 1>}, {pipeline_mode = #tpu.pipeline_mode<synchronous>, transform_indices = @transform_10, window_bounds = array<i64: 2, 8, 2>}, {pipeline_mode = #tpu.pipeline_mode<synchronous>, transform_indices = @transform_11, window_bounds = array<i64: 8, 1>}, {pipeline_mode = #tpu.pipeline_mode<synchronous>, transform_indices = @transform_12, window_bounds = array<i64: 8, 1>}, {pipeline_mode = #tpu.pipeline_mode<synchronous>, transform_indices = @transform_13, window_bounds = array<i64: 1, 384>}, {transform_indices = @transform_14, window_bounds = array<i64: 1, 8, 384>}, {transform_indices = @transform_15, window_bounds = array<i64: 1, 8, 2>}]} {
    %c0 = arith.constant 0 : index
    %c0_0 = arith.constant 0 : index
    %0 = vector.load %arg14[%c0, %c0_0] : memref<1x384xf32, #tpu.memory_space<vmem>>, vector<1x384xf32>
    %c0_1 = arith.constant 0 : index
    %c0_2 = arith.constant 0 : index
    %c0_3 = arith.constant 0 : index
    %1 = vector.load %arg1[%c0_1, %c0_2, %c0_3] : memref<1x8x384xbf16, #tpu.memory_space<vmem>>, vector<1x8x384xbf16>
    %2 = vector.shape_cast %1 : vector<1x8x384xbf16> to vector<8x384xbf16>
    %3 = arith.extf %2 : vector<8x384xbf16> to vector<8x384xf32>
    %c0_4 = arith.constant 0 : index
    %c0_5 = arith.constant 0 : index
    %c0_6 = arith.constant 0 : index
    %4 = vector.load %arg5[%c0_4, %c0_5, %c0_6] : memref<2x8x2xf32, #tpu.memory_space<vmem>>, vector<1x8x2xf32>
    %5 = vector.shape_cast %4 : vector<1x8x2xf32> to vector<8x2xf32>
    %c1 = arith.constant 1 : index
    %c0_7 = arith.constant 0 : index
    %c0_8 = arith.constant 0 : index
    %6 = vector.load %arg5[%c1, %c0_7, %c0_8] : memref<2x8x2xf32, #tpu.memory_space<vmem>>, vector<1x8x2xf32>
    %7 = vector.shape_cast %6 : vector<1x8x2xf32> to vector<8x2xf32>
    %8 = arith.addf %5, %7 : vector<8x2xf32>
    %c0_9 = arith.constant 0 : index
    %c0_10 = arith.constant 0 : index
    %9 = vector.load %arg6[%c0_9, %c0_10] : memref<8x1xf32, #tpu.memory_space<vmem>>, vector<8x1xf32>
    %c0_11 = arith.constant 0 : index
    %c0_12 = arith.constant 0 : index
    %10 = vector.load %arg7[%c0_11, %c0_12] : memref<8x1xf32, #tpu.memory_space<vmem>>, vector<8x1xf32>
    %11 = vector.extract_strided_slice %8 {offsets = [0, 0], sizes = [8, 1], strides = [1, 1]} : vector<8x2xf32> to vector<8x1xf32>
    %cst = arith.constant 0.001953125 : f32
    %12 = vector.broadcast %cst : f32 to vector<8x1xf32>
    %13 = arith.mulf %11, %12 : vector<8x1xf32>
    %14 = vector.extract_strided_slice %8 {offsets = [0, 1], sizes = [8, 1], strides = [1, 1]} : vector<8x2xf32> to vector<8x1xf32>
    %cst_13 = arith.constant 0.001953125 : f32
    %15 = vector.broadcast %cst_13 : f32 to vector<8x1xf32>
    %16 = arith.mulf %14, %15 : vector<8x1xf32>
    %17 = arith.mulf %13, %13 : vector<8x1xf32>
    %18 = arith.subf %16, %17 : vector<8x1xf32>
    %cst_14 = arith.constant 0.000000e+00 : f32
    %19 = vector.broadcast %cst_14 : f32 to vector<8x1xf32>
    %20 = arith.maximumf %18, %19 : vector<8x1xf32>
    %cst_15 = arith.constant 9.99999974E-6 : f32
    %21 = vector.broadcast %cst_15 : f32 to vector<8x1xf32>
    %22 = arith.addf %20, %21 : vector<8x1xf32>
    %23 = math.rsqrt %22 : vector<8x1xf32>
    %24 = arith.mulf %9, %23 : vector<8x1xf32>
    %25 = arith.mulf %13, %24 : vector<8x1xf32>
    %26 = arith.subf %10, %25 : vector<8x1xf32>
    %27 = vector.broadcast %24 : vector<8x1xf32> to vector<8x384xf32>
    %28 = arith.mulf %3, %27 : vector<8x384xf32>
    %29 = vector.broadcast %26 : vector<8x1xf32> to vector<8x384xf32>
    %30 = arith.addf %28, %29 : vector<8x384xf32>
    %cst_16 = arith.constant 0.000000e+00 : f32
    %31 = vector.broadcast %cst_16 : f32 to vector<8x384xf32>
    %32 = arith.cmpf oge, %30, %31 : vector<8x384xf32>
    %cst_17 = arith.constant 0.00999999977 : f32
    %33 = vector.broadcast %cst_17 : f32 to vector<8x384xf32>
    %34 = arith.mulf %33, %30 : vector<8x384xf32>
    %35 = arith.select %32, %30, %34 : vector<8x384xi1>, vector<8x384xf32>
    %36 = vector.broadcast %0 : vector<1x384xf32> to vector<8x384xf32>
    %37 = arith.mulf %35, %36 : vector<8x384xf32>
    %38 = arith.truncf %37 : vector<8x384xf32> to vector<8x384xbf16>
    %39 = vector.extract_strided_slice %38 {offsets = [0, 0], sizes = [8, 286], strides = [1, 1]} : vector<8x384xbf16> to vector<8x286xbf16>
    %c0_18 = arith.constant 0 : index
    %c0_19 = arith.constant 0 : index
    %40 = vector.load %arg17[%c0_18, %c0_19] : memref<216x286xbf16, #tpu.memory_space<vmem>>, vector<8x286xbf16>
    tpu.vector_store %arg17[%c0_18, %c0_19], %39 {strides = array<i32>} : memref<216x286xbf16, #tpu.memory_space<vmem>>, vector<8x286xbf16>,
    %41 = vector.extract_strided_slice %38 {offsets = [0, 1], sizes = [8, 286], strides = [1, 1]} : vector<8x384xbf16> to vector<8x286xbf16>
    %c8 = arith.constant 8 : index
    %c0_20 = arith.constant 0 : index
    %42 = vector.load %arg17[%c8, %c0_20] : memref<216x286xbf16, #tpu.memory_space<vmem>>, vector<8x286xbf16>
    tpu.vector_store %arg17[%c8, %c0_20], %41 {strides = array<i32>} : memref<216x286xbf16, #tpu.memory_space<vmem>>, vector<8x286xbf16>,
    %43 = vector.extract_strided_slice %38 {offsets = [0, 2], sizes = [8, 286], strides = [1, 1]} : vector<8x384xbf16> to vector<8x286xbf16>
    %c16 = arith.constant 16 : index
    %c0_21 = arith.constant 0 : index
    %44 = vector.load %arg17[%c16, %c0_21] : memref<216x286xbf16, #tpu.memory_space<vmem>>, vector<8x286xbf16>
    tpu.vector_store %arg17[%c16, %c0_21], %43 {strides = array<i32>} : memref<216x286xbf16, #tpu.memory_space<vmem>>, vector<8x286xbf16>,
    %45 = vector.extract_strided_slice %38 {offsets = [0, 18], sizes = [8, 286], strides = [1, 1]} : vector<8x384xbf16> to vector<8x286xbf16>
    %c24 = arith.constant 24 : index
    %c0_22 = arith.constant 0 : index
    %46 = vector.load %arg17[%c24, %c0_22] : memref<216x286xbf16, #tpu.memory_space<vmem>>, vector<8x286xbf16>
    tpu.vector_store %arg17[%c24, %c0_22], %45 {strides = array<i32>} : memref<216x286xbf16, #tpu.memory_space<vmem>>, vector<8x286xbf16>,
    %47 = vector.extract_strided_slice %38 {offsets = [0, 19], sizes = [8, 286], strides = [1, 1]} : vector<8x384xbf16> to vector<8x286xbf16>
    %c32 = arith.constant 32 : index
    %c0_23 = arith.constant 0 : index
    %48 = vector.load %arg17[%c32, %c0_23] : memref<216x286xbf16, #tpu.memory_space<vmem>>, vector<8x286xbf16>
    tpu.vector_store %arg17[%c32, %c0_23], %47 {strides = array<i32>} : memref<216x286xbf16, #tpu.memory_space<vmem>>, vector<8x286xbf16>,
    %49 = vector.extract_strided_slice %38 {offsets = [0, 20], sizes = [8, 286], strides = [1, 1]} : vector<8x384xbf16> to vector<8x286xbf16>
    %c40 = arith.constant 40 : index
    %c0_24 = arith.constant 0 : index
    %50 = vector.load %arg17[%c40, %c0_24] : memref<216x286xbf16, #tpu.memory_space<vmem>>, vector<8x286xbf16>
    tpu.vector_store %arg17[%c40, %c0_24], %49 {strides = array<i32>} : memref<216x286xbf16, #tpu.memory_space<vmem>>, vector<8x286xbf16>,
    %51 = vector.extract_strided_slice %38 {offsets = [0, 36], sizes = [8, 286], strides = [1, 1]} : vector<8x384xbf16> to vector<8x286xbf16>
    %c48 = arith.constant 48 : index
    %c0_25 = arith.constant 0 : index
    %52 = vector.load %arg17[%c48, %c0_25] : memref<216x286xbf16, #tpu.memory_space<vmem>>, vector<8x286xbf16>
    tpu.vector_store %arg17[%c48, %c0_25], %51 {strides = array<i32>} : memref<216x286xbf16, #tpu.memory_space<vmem>>, vector<8x286xbf16>,
    %53 = vector.extract_strided_slice %38 {offsets = [0, 37], sizes = [8, 286], strides = [1, 1]} : vector<8x384xbf16> to vector<8x286xbf16>
    %c56 = arith.constant 56 : index
    %c0_26 = arith.constant 0 : index
    %54 = vector.load %arg17[%c56, %c0_26] : memref<216x286xbf16, #tpu.memory_space<vmem>>, vector<8x286xbf16>
    tpu.vector_store %arg17[%c56, %c0_26], %53 {strides = array<i32>} : memref<216x286xbf16, #tpu.memory_space<vmem>>, vector<8x286xbf16>,
    %55 = vector.extract_strided_slice %38 {offsets = [0, 38], sizes = [8, 286], strides = [1, 1]} : vector<8x384xbf16> to vector<8x286xbf16>
    %c64 = arith.constant 64 : index
    %c0_27 = arith.constant 0 : index
    %56 = vector.load %arg17[%c64, %c0_27] : memref<216x286xbf16, #tpu.memory_space<vmem>>, vector<8x286xbf16>
    tpu.vector_store %arg17[%c64, %c0_27], %55 {strides = array<i32>} : memref<216x286xbf16, #tpu.memory_space<vmem>>, vector<8x286xbf16>,
    %c0_28 = arith.constant 0 : index
    %c0_29 = arith.constant 0 : index
    %c0_30 = arith.constant 0 : index
    %57 = vector.load %arg2[%c0_28, %c0_29, %c0_30] : memref<1x8x384xbf16, #tpu.memory_space<vmem>>, vector<1x8x384xbf16>
    %58 = vector.shape_cast %57 : vector<1x8x384xbf16> to vector<8x384xbf16>
    %59 = arith.extf %58 : vector<8x384xbf16> to vector<8x384xf32>
    %c0_31 = arith.constant 0 : index
    %c0_32 = arith.constant 0 : index
    %c0_33 = arith.constant 0 : index
    %60 = vector.load %arg8[%c0_31, %c0_32, %c0_33] : memref<2x8x2xf32, #tpu.memory_space<vmem>>, vector<1x8x2xf32>
    %61 = vector.shape_cast %60 : vector<1x8x2xf32> to vector<8x2xf32>
    %c1_34 = arith.constant 1 : index
    %c0_35 = arith.constant 0 : index
    %c0_36 = arith.constant 0 : index
    %62 = vector.load %arg8[%c1_34, %c0_35, %c0_36] : memref<2x8x2xf32, #tpu.memory_space<vmem>>, vector<1x8x2xf32>
    %63 = vector.shape_cast %62 : vector<1x8x2xf32> to vector<8x2xf32>
    %64 = arith.addf %61, %63 : vector<8x2xf32>
    %c0_37 = arith.constant 0 : index
    %c0_38 = arith.constant 0 : index
    %65 = vector.load %arg9[%c0_37, %c0_38] : memref<8x1xf32, #tpu.memory_space<vmem>>, vector<8x1xf32>
    %c0_39 = arith.constant 0 : index
    %c0_40 = arith.constant 0 : index
    %66 = vector.load %arg10[%c0_39, %c0_40] : memref<8x1xf32, #tpu.memory_space<vmem>>, vector<8x1xf32>
    %67 = vector.extract_strided_slice %64 {offsets = [0, 0], sizes = [8, 1], strides = [1, 1]} : vector<8x2xf32> to vector<8x1xf32>
    %cst_41 = arith.constant 0.001953125 : f32
    %68 = vector.broadcast %cst_41 : f32 to vector<8x1xf32>
    %69 = arith.mulf %67, %68 : vector<8x1xf32>
    %70 = vector.extract_strided_slice %64 {offsets = [0, 1], sizes = [8, 1], strides = [1, 1]} : vector<8x2xf32> to vector<8x1xf32>
    %cst_42 = arith.constant 0.001953125 : f32
    %71 = vector.broadcast %cst_42 : f32 to vector<8x1xf32>
    %72 = arith.mulf %70, %71 : vector<8x1xf32>
    %73 = arith.mulf %69, %69 : vector<8x1xf32>
    %74 = arith.subf %72, %73 : vector<8x1xf32>
    %cst_43 = arith.constant 0.000000e+00 : f32
    %75 = vector.broadcast %cst_43 : f32 to vector<8x1xf32>
    %76 = arith.maximumf %74, %75 : vector<8x1xf32>
    %cst_44 = arith.constant 9.99999974E-6 : f32
    %77 = vector.broadcast %cst_44 : f32 to vector<8x1xf32>
    %78 = arith.addf %76, %77 : vector<8x1xf32>
    %79 = math.rsqrt %78 : vector<8x1xf32>
    %80 = arith.mulf %65, %79 : vector<8x1xf32>
    %81 = arith.mulf %69, %80 : vector<8x1xf32>
    %82 = arith.subf %66, %81 : vector<8x1xf32>
    %83 = vector.broadcast %80 : vector<8x1xf32> to vector<8x384xf32>
    %84 = arith.mulf %59, %83 : vector<8x384xf32>
    %85 = vector.broadcast %82 : vector<8x1xf32> to vector<8x384xf32>
    %86 = arith.addf %84, %85 : vector<8x384xf32>
    %cst_45 = arith.constant 0.000000e+00 : f32
    %87 = vector.broadcast %cst_45 : f32 to vector<8x384xf32>
    %88 = arith.cmpf oge, %86, %87 : vector<8x384xf32>
    %cst_46 = arith.constant 0.00999999977 : f32
    %89 = vector.broadcast %cst_46 : f32 to vector<8x384xf32>
    %90 = arith.mulf %89, %86 : vector<8x384xf32>
    %91 = arith.select %88, %86, %90 : vector<8x384xi1>, vector<8x384xf32>
    %92 = vector.broadcast %0 : vector<1x384xf32> to vector<8x384xf32>
    %93 = arith.mulf %91, %92 : vector<8x384xf32>
    %94 = arith.truncf %93 : vector<8x384xf32> to vector<8x384xbf16>
    %95 = vector.extract_strided_slice %94 {offsets = [0, 0], sizes = [8, 286], strides = [1, 1]} : vector<8x384xbf16> to vector<8x286xbf16>
    %c72 = arith.constant 72 : index
    %c0_47 = arith.constant 0 : index
    %96 = vector.load %arg17[%c72, %c0_47] : memref<216x286xbf16, #tpu.memory_space<vmem>>, vector<8x286xbf16>
    tpu.vector_store %arg17[%c72, %c0_47], %95 {strides = array<i32>} : memref<216x286xbf16, #tpu.memory_space<vmem>>, vector<8x286xbf16>,
    %97 = vector.extract_strided_slice %94 {offsets = [0, 1], sizes = [8, 286], strides = [1, 1]} : vector<8x384xbf16> to vector<8x286xbf16>
    %c80 = arith.constant 80 : index
    %c0_48 = arith.constant 0 : index
    %98 = vector.load %arg17[%c80, %c0_48] : memref<216x286xbf16, #tpu.memory_space<vmem>>, vector<8x286xbf16>
    tpu.vector_store %arg17[%c80, %c0_48], %97 {strides = array<i32>} : memref<216x286xbf16, #tpu.memory_space<vmem>>, vector<8x286xbf16>,
    %99 = vector.extract_strided_slice %94 {offsets = [0, 2], sizes = [8, 286], strides = [1, 1]} : vector<8x384xbf16> to vector<8x286xbf16>
    %c88 = arith.constant 88 : index
    %c0_49 = arith.constant 0 : index
    %100 = vector.load %arg17[%c88, %c0_49] : memref<216x286xbf16, #tpu.memory_space<vmem>>, vector<8x286xbf16>
    tpu.vector_store %arg17[%c88, %c0_49], %99 {strides = array<i32>} : memref<216x286xbf16, #tpu.memory_space<vmem>>, vector<8x286xbf16>,
    %101 = vector.extract_strided_slice %94 {offsets = [0, 18], sizes = [8, 286], strides = [1, 1]} : vector<8x384xbf16> to vector<8x286xbf16>
    %c96 = arith.constant 96 : index
    %c0_50 = arith.constant 0 : index
    %102 = vector.load %arg17[%c96, %c0_50] : memref<216x286xbf16, #tpu.memory_space<vmem>>, vector<8x286xbf16>
    tpu.vector_store %arg17[%c96, %c0_50], %101 {strides = array<i32>} : memref<216x286xbf16, #tpu.memory_space<vmem>>, vector<8x286xbf16>,
    %103 = vector.extract_strided_slice %94 {offsets = [0, 19], sizes = [8, 286], strides = [1, 1]} : vector<8x384xbf16> to vector<8x286xbf16>
    %c104 = arith.constant 104 : index
    %c0_51 = arith.constant 0 : index
    %104 = vector.load %arg17[%c104, %c0_51] : memref<216x286xbf16, #tpu.memory_space<vmem>>, vector<8x286xbf16>
    tpu.vector_store %arg17[%c104, %c0_51], %103 {strides = array<i32>} : memref<216x286xbf16, #tpu.memory_space<vmem>>, vector<8x286xbf16>,
    %105 = vector.extract_strided_slice %94 {offsets = [0, 20], sizes = [8, 286], strides = [1, 1]} : vector<8x384xbf16> to vector<8x286xbf16>
    %c112 = arith.constant 112 : index
    %c0_52 = arith.constant 0 : index
    %106 = vector.load %arg17[%c112, %c0_52] : memref<216x286xbf16, #tpu.memory_space<vmem>>, vector<8x286xbf16>
    tpu.vector_store %arg17[%c112, %c0_52], %105 {strides = array<i32>} : memref<216x286xbf16, #tpu.memory_space<vmem>>, vector<8x286xbf16>,
    %107 = vector.extract_strided_slice %94 {offsets = [0, 36], sizes = [8, 286], strides = [1, 1]} : vector<8x384xbf16> to vector<8x286xbf16>
    %c120 = arith.constant 120 : index
    %c0_53 = arith.constant 0 : index
    %108 = vector.load %arg17[%c120, %c0_53] : memref<216x286xbf16, #tpu.memory_space<vmem>>, vector<8x286xbf16>
    tpu.vector_store %arg17[%c120, %c0_53], %107 {strides = array<i32>} : memref<216x286xbf16, #tpu.memory_space<vmem>>, vector<8x286xbf16>,
    %109 = vector.extract_strided_slice %94 {offsets = [0, 37], sizes = [8, 286], strides = [1, 1]} : vector<8x384xbf16> to vector<8x286xbf16>
    %c128 = arith.constant 128 : index
    %c0_54 = arith.constant 0 : index
    %110 = vector.load %arg17[%c128, %c0_54] : memref<216x286xbf16, #tpu.memory_space<vmem>>, vector<8x286xbf16>
    tpu.vector_store %arg17[%c128, %c0_54], %109 {strides = array<i32>} : memref<216x286xbf16, #tpu.memory_space<vmem>>, vector<8x286xbf16>,
    %111 = vector.extract_strided_slice %94 {offsets = [0, 38], sizes = [8, 286], strides = [1, 1]} : vector<8x384xbf16> to vector<8x286xbf16>
    %c136 = arith.constant 136 : index
    %c0_55 = arith.constant 0 : index
    %112 = vector.load %arg17[%c136, %c0_55] : memref<216x286xbf16, #tpu.memory_space<vmem>>, vector<8x286xbf16>
    tpu.vector_store %arg17[%c136, %c0_55], %111 {strides = array<i32>} : memref<216x286xbf16, #tpu.memory_space<vmem>>, vector<8x286xbf16>,
    %c0_56 = arith.constant 0 : index
    %c0_57 = arith.constant 0 : index
    %c0_58 = arith.constant 0 : index
    %113 = vector.load %arg3[%c0_56, %c0_57, %c0_58] : memref<1x8x384xbf16, #tpu.memory_space<vmem>>, vector<1x8x384xbf16>
    %114 = vector.shape_cast %113 : vector<1x8x384xbf16> to vector<8x384xbf16>
    %115 = arith.extf %114 : vector<8x384xbf16> to vector<8x384xf32>
    %c0_59 = arith.constant 0 : index
    %c0_60 = arith.constant 0 : index
    %c0_61 = arith.constant 0 : index
    %116 = vector.load %arg11[%c0_59, %c0_60, %c0_61] : memref<2x8x2xf32, #tpu.memory_space<vmem>>, vector<1x8x2xf32>
    %117 = vector.shape_cast %116 : vector<1x8x2xf32> to vector<8x2xf32>
    %c1_62 = arith.constant 1 : index
    %c0_63 = arith.constant 0 : index
    %c0_64 = arith.constant 0 : index
    %118 = vector.load %arg11[%c1_62, %c0_63, %c0_64] : memref<2x8x2xf32, #tpu.memory_space<vmem>>, vector<1x8x2xf32>
    %119 = vector.shape_cast %118 : vector<1x8x2xf32> to vector<8x2xf32>
    %120 = arith.addf %117, %119 : vector<8x2xf32>
    %c0_65 = arith.constant 0 : index
    %c0_66 = arith.constant 0 : index
    %121 = vector.load %arg12[%c0_65, %c0_66] : memref<8x1xf32, #tpu.memory_space<vmem>>, vector<8x1xf32>
    %c0_67 = arith.constant 0 : index
    %c0_68 = arith.constant 0 : index
    %122 = vector.load %arg13[%c0_67, %c0_68] : memref<8x1xf32, #tpu.memory_space<vmem>>, vector<8x1xf32>
    %123 = vector.extract_strided_slice %120 {offsets = [0, 0], sizes = [8, 1], strides = [1, 1]} : vector<8x2xf32> to vector<8x1xf32>
    %cst_69 = arith.constant 0.001953125 : f32
    %124 = vector.broadcast %cst_69 : f32 to vector<8x1xf32>
    %125 = arith.mulf %123, %124 : vector<8x1xf32>
    %126 = vector.extract_strided_slice %120 {offsets = [0, 1], sizes = [8, 1], strides = [1, 1]} : vector<8x2xf32> to vector<8x1xf32>
    %cst_70 = arith.constant 0.001953125 : f32
    %127 = vector.broadcast %cst_70 : f32 to vector<8x1xf32>
    %128 = arith.mulf %126, %127 : vector<8x1xf32>
    %129 = arith.mulf %125, %125 : vector<8x1xf32>
    %130 = arith.subf %128, %129 : vector<8x1xf32>
    %cst_71 = arith.constant 0.000000e+00 : f32
    %131 = vector.broadcast %cst_71 : f32 to vector<8x1xf32>
    %132 = arith.maximumf %130, %131 : vector<8x1xf32>
    %cst_72 = arith.constant 9.99999974E-6 : f32
    %133 = vector.broadcast %cst_72 : f32 to vector<8x1xf32>
    %134 = arith.addf %132, %133 : vector<8x1xf32>
    %135 = math.rsqrt %134 : vector<8x1xf32>
    %136 = arith.mulf %121, %135 : vector<8x1xf32>
    %137 = arith.mulf %125, %136 : vector<8x1xf32>
    %138 = arith.subf %122, %137 : vector<8x1xf32>
    %139 = vector.broadcast %136 : vector<8x1xf32> to vector<8x384xf32>
    %140 = arith.mulf %115, %139 : vector<8x384xf32>
    %141 = vector.broadcast %138 : vector<8x1xf32> to vector<8x384xf32>
    %142 = arith.addf %140, %141 : vector<8x384xf32>
    %cst_73 = arith.constant 0.000000e+00 : f32
    %143 = vector.broadcast %cst_73 : f32 to vector<8x384xf32>
    %144 = arith.cmpf oge, %142, %143 : vector<8x384xf32>
    %cst_74 = arith.constant 0.00999999977 : f32
    %145 = vector.broadcast %cst_74 : f32 to vector<8x384xf32>
    %146 = arith.mulf %145, %142 : vector<8x384xf32>
    %147 = arith.select %144, %142, %146 : vector<8x384xi1>, vector<8x384xf32>
    %148 = vector.broadcast %0 : vector<1x384xf32> to vector<8x384xf32>
    %149 = arith.mulf %147, %148 : vector<8x384xf32>
    %150 = arith.truncf %149 : vector<8x384xf32> to vector<8x384xbf16>
    %151 = vector.extract_strided_slice %150 {offsets = [0, 0], sizes = [8, 286], strides = [1, 1]} : vector<8x384xbf16> to vector<8x286xbf16>
    %c144 = arith.constant 144 : index
    %c0_75 = arith.constant 0 : index
    %152 = vector.load %arg17[%c144, %c0_75] : memref<216x286xbf16, #tpu.memory_space<vmem>>, vector<8x286xbf16>
    tpu.vector_store %arg17[%c144, %c0_75], %151 {strides = array<i32>} : memref<216x286xbf16, #tpu.memory_space<vmem>>, vector<8x286xbf16>,
    %153 = vector.extract_strided_slice %150 {offsets = [0, 1], sizes = [8, 286], strides = [1, 1]} : vector<8x384xbf16> to vector<8x286xbf16>
    %c152 = arith.constant 152 : index
    %c0_76 = arith.constant 0 : index
    %154 = vector.load %arg17[%c152, %c0_76] : memref<216x286xbf16, #tpu.memory_space<vmem>>, vector<8x286xbf16>
    tpu.vector_store %arg17[%c152, %c0_76], %153 {strides = array<i32>} : memref<216x286xbf16, #tpu.memory_space<vmem>>, vector<8x286xbf16>,
    %155 = vector.extract_strided_slice %150 {offsets = [0, 2], sizes = [8, 286], strides = [1, 1]} : vector<8x384xbf16> to vector<8x286xbf16>
    %c160 = arith.constant 160 : index
    %c0_77 = arith.constant 0 : index
    %156 = vector.load %arg17[%c160, %c0_77] : memref<216x286xbf16, #tpu.memory_space<vmem>>, vector<8x286xbf16>
    tpu.vector_store %arg17[%c160, %c0_77], %155 {strides = array<i32>} : memref<216x286xbf16, #tpu.memory_space<vmem>>, vector<8x286xbf16>,
    %157 = vector.extract_strided_slice %150 {offsets = [0, 18], sizes = [8, 286], strides = [1, 1]} : vector<8x384xbf16> to vector<8x286xbf16>
    %c168 = arith.constant 168 : index
    %c0_78 = arith.constant 0 : index
    %158 = vector.load %arg17[%c168, %c0_78] : memref<216x286xbf16, #tpu.memory_space<vmem>>, vector<8x286xbf16>
    tpu.vector_store %arg17[%c168, %c0_78], %157 {strides = array<i32>} : memref<216x286xbf16, #tpu.memory_space<vmem>>, vector<8x286xbf16>,
    %159 = vector.extract_strided_slice %150 {offsets = [0, 19], sizes = [8, 286], strides = [1, 1]} : vector<8x384xbf16> to vector<8x286xbf16>
    %c176 = arith.constant 176 : index
    %c0_79 = arith.constant 0 : index
    %160 = vector.load %arg17[%c176, %c0_79] : memref<216x286xbf16, #tpu.memory_space<vmem>>, vector<8x286xbf16>
    tpu.vector_store %arg17[%c176, %c0_79], %159 {strides = array<i32>} : memref<216x286xbf16, #tpu.memory_space<vmem>>, vector<8x286xbf16>,
    %161 = vector.extract_strided_slice %150 {offsets = [0, 20], sizes = [8, 286], strides = [1, 1]} : vector<8x384xbf16> to vector<8x286xbf16>
    %c184 = arith.constant 184 : index
    %c0_80 = arith.constant 0 : index
    %162 = vector.load %arg17[%c184, %c0_80] : memref<216x286xbf16, #tpu.memory_space<vmem>>, vector<8x286xbf16>
    tpu.vector_store %arg17[%c184, %c0_80], %161 {strides = array<i32>} : memref<216x286xbf16, #tpu.memory_space<vmem>>, vector<8x286xbf16>,
    %163 = vector.extract_strided_slice %150 {offsets = [0, 36], sizes = [8, 286], strides = [1, 1]} : vector<8x384xbf16> to vector<8x286xbf16>
    %c192 = arith.constant 192 : index
    %c0_81 = arith.constant 0 : index
    %164 = vector.load %arg17[%c192, %c0_81] : memref<216x286xbf16, #tpu.memory_space<vmem>>, vector<8x286xbf16>
    tpu.vector_store %arg17[%c192, %c0_81], %163 {strides = array<i32>} : memref<216x286xbf16, #tpu.memory_space<vmem>>, vector<8x286xbf16>,
    %165 = vector.extract_strided_slice %150 {offsets = [0, 37], sizes = [8, 286], strides = [1, 1]} : vector<8x384xbf16> to vector<8x286xbf16>
    %c200 = arith.constant 200 : index
    %c0_82 = arith.constant 0 : index
    %166 = vector.load %arg17[%c200, %c0_82] : memref<216x286xbf16, #tpu.memory_space<vmem>>, vector<8x286xbf16>
    tpu.vector_store %arg17[%c200, %c0_82], %165 {strides = array<i32>} : memref<216x286xbf16, #tpu.memory_space<vmem>>, vector<8x286xbf16>,
    %167 = vector.extract_strided_slice %150 {offsets = [0, 38], sizes = [8, 286], strides = [1, 1]} : vector<8x384xbf16> to vector<8x286xbf16>
    %c208 = arith.constant 208 : index
    %c0_83 = arith.constant 0 : index
    %168 = vector.load %arg17[%c208, %c0_83] : memref<216x286xbf16, #tpu.memory_space<vmem>>, vector<8x286xbf16>
    tpu.vector_store %arg17[%c208, %c0_83], %167 {strides = array<i32>} : memref<216x286xbf16, #tpu.memory_space<vmem>>, vector<8x286xbf16>,
    %c0_84 = arith.constant 0 : index
    %c0_85 = arith.constant 0 : index
    %169 = vector.load %arg4[%c0_84, %c0_85] : memref<8x216xbf16, #tpu.memory_space<vmem>>, vector<8x216xbf16>
    %c0_86 = arith.constant 0 : index
    %c0_87 = arith.constant 0 : index
    %170 = vector.load %arg17[%c0_86, %c0_87] : memref<216x286xbf16, #tpu.memory_space<vmem>>, vector<216x286xbf16>
    %cst_88 = arith.constant dense<0.000000e+00> : vector<8x286xf32>
    %171 = tpu.matmul %169, %170, %cst_88 {dimension_numbers = #tpu.dot_dimension_numbers<[1], [0], [0], [1], [0, 0, 1, 1], [], []>} : vector<8x216xbf16>, vector<216x286xbf16>, vector<8x286xf32> -> vector<8x286xf32>
    %172 = vector.extract_strided_slice %0 {offsets = [0, 19], sizes = [1, 286], strides = [1, 1]} : vector<1x384xf32> to vector<1x286xf32>
    %173 = vector.broadcast %172 : vector<1x286xf32> to vector<8x286xf32>
    %174 = arith.mulf %171, %173 : vector<8x286xf32>
    %cst_89 = arith.constant dense<0.000000e+00> : vector<8xf32>
    %175 = vector.multi_reduction <add>, %174, %cst_89 [1] : vector<8x286xf32> to vector<8xf32>
    %176 = vector.shape_cast %175 : vector<8xf32> to vector<8x1xf32>
    %c0_90 = arith.constant 0 : index
    %c0_91 = arith.constant 0 : index
    %c0_92 = arith.constant 0 : index
    %177 = vector.load %arg16[%c0_90, %c0_91, %c0_92] : memref<1x8x2xf32, #tpu.memory_space<vmem>>, vector<1x8x1xf32>
    %178 = vector.shape_cast %177 : vector<1x8x1xf32> to vector<8x1xf32>
    %179 = vector.shape_cast %176 : vector<8x1xf32> to vector<1x8x1xf32>
    tpu.vector_store %arg16[%c0_90, %c0_91, %c0_92], %179 {strides = array<i32>} : memref<1x8x2xf32, #tpu.memory_space<vmem>>, vector<1x8x1xf32>,
    %180 = arith.mulf %174, %174 : vector<8x286xf32>
    %cst_93 = arith.constant dense<0.000000e+00> : vector<8xf32>
    %181 = vector.multi_reduction <add>, %180, %cst_93 [1] : vector<8x286xf32> to vector<8xf32>
    %182 = vector.shape_cast %181 : vector<8xf32> to vector<8x1xf32>
    %c0_94 = arith.constant 0 : index
    %c0_95 = arith.constant 0 : index
    %c1_96 = arith.constant 1 : index
    %183 = vector.load %arg16[%c0_94, %c0_95, %c1_96] : memref<1x8x2xf32, #tpu.memory_space<vmem>>, vector<1x8x1xf32>
    %184 = vector.shape_cast %183 : vector<1x8x1xf32> to vector<8x1xf32>
    %185 = vector.shape_cast %182 : vector<8x1xf32> to vector<1x8x1xf32>
    tpu.vector_store %arg16[%c0_94, %c0_95, %c1_96], %185 {strides = array<i32>} : memref<1x8x2xf32, #tpu.memory_space<vmem>>, vector<1x8x1xf32>,
    %186 = arith.truncf %174 : vector<8x286xf32> to vector<8x286xbf16>
    %cst_97 = arith.constant 0.000000e+00 : bf16
    %187 = vector.broadcast %cst_97 : bf16 to vector<8x19xbf16>
    %c0_98 = arith.constant 0 : index
    %c0_99 = arith.constant 0 : index
    %c0_100 = arith.constant 0 : index
    %188 = vector.load %arg15[%c0_98, %c0_99, %c0_100] : memref<1x8x384xbf16, #tpu.memory_space<vmem>>, vector<1x8x19xbf16>
    %189 = vector.shape_cast %188 : vector<1x8x19xbf16> to vector<8x19xbf16>
    %190 = vector.shape_cast %187 : vector<8x19xbf16> to vector<1x8x19xbf16>
    tpu.vector_store %arg15[%c0_98, %c0_99, %c0_100], %190 {strides = array<i32>} : memref<1x8x384xbf16, #tpu.memory_space<vmem>>, vector<1x8x19xbf16>,
    %c0_101 = arith.constant 0 : index
    %c0_102 = arith.constant 0 : index
    %c19 = arith.constant 19 : index
    %191 = vector.load %arg15[%c0_101, %c0_102, %c19] : memref<1x8x384xbf16, #tpu.memory_space<vmem>>, vector<1x8x286xbf16>
    %192 = vector.shape_cast %191 : vector<1x8x286xbf16> to vector<8x286xbf16>
    %193 = vector.shape_cast %186 : vector<8x286xbf16> to vector<1x8x286xbf16>
    tpu.vector_store %arg15[%c0_101, %c0_102, %c19], %193 {strides = array<i32>} : memref<1x8x384xbf16, #tpu.memory_space<vmem>>, vector<1x8x286xbf16>,
    %cst_103 = arith.constant 0.000000e+00 : bf16
    %194 = vector.broadcast %cst_103 : bf16 to vector<8x79xbf16>
    %c0_104 = arith.constant 0 : index
    %c0_105 = arith.constant 0 : index
    %c305 = arith.constant 305 : index
    %195 = vector.load %arg15[%c0_104, %c0_105, %c305] : memref<1x8x384xbf16, #tpu.memory_space<vmem>>, vector<1x8x79xbf16>
    %196 = vector.shape_cast %195 : vector<1x8x79xbf16> to vector<8x79xbf16>
    %197 = vector.shape_cast %194 : vector<8x79xbf16> to vector<1x8x79xbf16>
    tpu.vector_store %arg15[%c0_104, %c0_105, %c305], %197 {strides = array<i32>} : memref<1x8x384xbf16, #tpu.memory_space<vmem>>, vector<1x8x79xbf16>,
    return
  }
  func.func @transform_0(%arg0: i32) -> (i32, i32, i32) {
    %c0_i32 = arith.constant 0 : i32
    %c0_i32_0 = arith.constant 0 : i32
    %c0_i32_1 = arith.constant 0 : i32
    return %arg0, %c0_i32, %c0_i32_0 : i32, i32, i32
  }
  func.func @transform_1(%arg0: i32) -> (i32, i32, i32) {
    %c0_i32 = arith.constant 0 : i32
    %c0_i32_0 = arith.constant 0 : i32
    %c0_i32_1 = arith.constant 0 : i32
    return %arg0, %c0_i32, %c0_i32_0 : i32, i32, i32
  }
  func.func @transform_2(%arg0: i32) -> (i32, i32, i32) {
    %c0_i32 = arith.constant 0 : i32
    %c0_i32_0 = arith.constant 0 : i32
    %c0_i32_1 = arith.constant 0 : i32
    return %arg0, %c0_i32, %c0_i32_0 : i32, i32, i32
  }
  func.func @transform_3(%arg0: i32) -> (i32, i32) {
    %c0_i32 = arith.constant 0 : i32
    %c0_i32_0 = arith.constant 0 : i32
    %c0_i32_1 = arith.constant 0 : i32
    return %c0_i32, %c0_i32_0 : i32, i32
  }
  func.func @transform_4(%arg0: i32) -> (i32, i32, i32) {
    %c0_i32 = arith.constant 0 : i32
    %c0_i32_0 = arith.constant 0 : i32
    %c0_i32_1 = arith.constant 0 : i32
    %c0_i32_2 = arith.constant 0 : i32
    return %c0_i32, %c0_i32_0, %c0_i32_1 : i32, i32, i32
  }
  func.func @transform_5(%arg0: i32) -> (i32, i32) {
    %c0_i32 = arith.constant 0 : i32
    %c0_i32_0 = arith.constant 0 : i32
    %c0_i32_1 = arith.constant 0 : i32
    return %c0_i32, %c0_i32_0 : i32, i32
  }
  func.func @transform_6(%arg0: i32) -> (i32, i32) {
    %c0_i32 = arith.constant 0 : i32
    %c0_i32_0 = arith.constant 0 : i32
    %c0_i32_1 = arith.constant 0 : i32
    return %c0_i32, %c0_i32_0 : i32, i32
  }
  func.func @transform_7(%arg0: i32) -> (i32, i32, i32) {
    %c0_i32 = arith.constant 0 : i32
    %c0_i32_0 = arith.constant 0 : i32
    %c0_i32_1 = arith.constant 0 : i32
    %c0_i32_2 = arith.constant 0 : i32
    return %c0_i32, %c0_i32_0, %c0_i32_1 : i32, i32, i32
  }
  func.func @transform_8(%arg0: i32) -> (i32, i32) {
    %c0_i32 = arith.constant 0 : i32
    %c0_i32_0 = arith.constant 0 : i32
    %c0_i32_1 = arith.constant 0 : i32
    return %c0_i32, %c0_i32_0 : i32, i32
  }
  func.func @transform_9(%arg0: i32) -> (i32, i32) {
    %c0_i32 = arith.constant 0 : i32
    %c0_i32_0 = arith.constant 0 : i32
    %c0_i32_1 = arith.constant 0 : i32
    return %c0_i32, %c0_i32_0 : i32, i32
  }
  func.func @transform_10(%arg0: i32) -> (i32, i32, i32) {
    %c0_i32 = arith.constant 0 : i32
    %c0_i32_0 = arith.constant 0 : i32
    %c0_i32_1 = arith.constant 0 : i32
    %c0_i32_2 = arith.constant 0 : i32
    return %c0_i32, %c0_i32_0, %c0_i32_1 : i32, i32, i32
  }
  func.func @transform_11(%arg0: i32) -> (i32, i32) {
    %c0_i32 = arith.constant 0 : i32
    %c0_i32_0 = arith.constant 0 : i32
    %c0_i32_1 = arith.constant 0 : i32
    return %c0_i32, %c0_i32_0 : i32, i32
  }
  func.func @transform_12(%arg0: i32) -> (i32, i32) {
    %c0_i32 = arith.constant 0 : i32
    %c0_i32_0 = arith.constant 0 : i32
    %c0_i32_1 = arith.constant 0 : i32
    return %c0_i32, %c0_i32_0 : i32, i32
  }
  func.func @transform_13(%arg0: i32) -> (i32, i32) {
    %c0_i32 = arith.constant 0 : i32
    %c0_i32_0 = arith.constant 0 : i32
    %c0_i32_1 = arith.constant 0 : i32
    return %c0_i32, %c0_i32_0 : i32, i32
  }
  func.func @transform_14(%arg0: i32) -> (i32, i32, i32) {
    %c0_i32 = arith.constant 0 : i32
    %c0_i32_0 = arith.constant 0 : i32
    %c0_i32_1 = arith.constant 0 : i32
    return %arg0, %c0_i32, %c0_i32_0 : i32, i32, i32
  }
  func.func @transform_15(%arg0: i32) -> (i32, i32, i32) {
    %c0_i32 = arith.constant 0 : i32
    %c0_i32_0 = arith.constant 0 : i32
    %c0_i32_1 = arith.constant 0 : i32
    return %arg0, %c0_i32, %c0_i32_0 : i32, i32, i32
  }
}

module attributes {stable_mosaic.version = 11 : i64} {
  func.func @kernel(%arg0: i32, %arg1: memref<1x8x384xbf16, #tpu.memory_space<vmem>>, %arg2: memref<2x8x2xf32, #tpu.memory_space<vmem>>, %arg3: memref<8x1xf32, #tpu.memory_space<vmem>>, %arg4: memref<8x1xf32, #tpu.memory_space<vmem>>, %arg5: memref<1x384xf32, #tpu.memory_space<vmem>>, %arg6: memref<8x1xf32, #tpu.memory_space<vmem>>, %arg7: memref<1x1xf32, #tpu.memory_space<vmem>>, %arg8: memref<1x1x1xf32, #tpu.memory_space<vmem>>) attributes {dimension_semantics = [#tpu.dimension_semantics<parallel>], iteration_bounds = array<i64: 2>, scalar_prefetch = 0 : i64, scratch_operands = 0 : i64, tpu.core_type = #tpu.core_type<tc>, window_params = [{transform_indices = @transform_0, window_bounds = array<i64: 1, 8, 384>}, {pipeline_mode = #tpu.pipeline_mode<synchronous>, transform_indices = @transform_1, window_bounds = array<i64: 2, 8, 2>}, {pipeline_mode = #tpu.pipeline_mode<synchronous>, transform_indices = @transform_2, window_bounds = array<i64: 8, 1>}, {pipeline_mode = #tpu.pipeline_mode<synchronous>, transform_indices = @transform_3, window_bounds = array<i64: 8, 1>}, {pipeline_mode = #tpu.pipeline_mode<synchronous>, transform_indices = @transform_4, window_bounds = array<i64: 1, 384>}, {pipeline_mode = #tpu.pipeline_mode<synchronous>, transform_indices = @transform_5, window_bounds = array<i64: 8, 1>}, {pipeline_mode = #tpu.pipeline_mode<synchronous>, transform_indices = @transform_6, window_bounds = array<i64: 1, 1>}, {transform_indices = @transform_7, window_bounds = array<i64: 1, 1, 1>}]} {
    %c0 = arith.constant 0 : index
    %c0_0 = arith.constant 0 : index
    %c0_1 = arith.constant 0 : index
    %0 = vector.load %arg1[%c0, %c0_0, %c0_1] : memref<1x8x384xbf16, #tpu.memory_space<vmem>>, vector<1x8x384xbf16>
    %1 = vector.shape_cast %0 : vector<1x8x384xbf16> to vector<8x384xbf16>
    %2 = arith.extf %1 : vector<8x384xbf16> to vector<8x384xf32>
    %c0_2 = arith.constant 0 : index
    %c0_3 = arith.constant 0 : index
    %c0_4 = arith.constant 0 : index
    %3 = vector.load %arg2[%c0_2, %c0_3, %c0_4] : memref<2x8x2xf32, #tpu.memory_space<vmem>>, vector<1x8x2xf32>
    %4 = vector.shape_cast %3 : vector<1x8x2xf32> to vector<8x2xf32>
    %c1 = arith.constant 1 : index
    %c0_5 = arith.constant 0 : index
    %c0_6 = arith.constant 0 : index
    %5 = vector.load %arg2[%c1, %c0_5, %c0_6] : memref<2x8x2xf32, #tpu.memory_space<vmem>>, vector<1x8x2xf32>
    %6 = vector.shape_cast %5 : vector<1x8x2xf32> to vector<8x2xf32>
    %7 = arith.addf %4, %6 : vector<8x2xf32>
    %8 = vector.extract_strided_slice %7 {offsets = [0, 0], sizes = [8, 1], strides = [1, 1]} : vector<8x2xf32> to vector<8x1xf32>
    %cst = arith.constant 0.001953125 : f32
    %9 = vector.broadcast %cst : f32 to vector<8x1xf32>
    %10 = arith.mulf %8, %9 : vector<8x1xf32>
    %11 = vector.extract_strided_slice %7 {offsets = [0, 1], sizes = [8, 1], strides = [1, 1]} : vector<8x2xf32> to vector<8x1xf32>
    %cst_7 = arith.constant 0.001953125 : f32
    %12 = vector.broadcast %cst_7 : f32 to vector<8x1xf32>
    %13 = arith.mulf %11, %12 : vector<8x1xf32>
    %14 = arith.mulf %10, %10 : vector<8x1xf32>
    %15 = arith.subf %13, %14 : vector<8x1xf32>
    %cst_8 = arith.constant 0.000000e+00 : f32
    %16 = vector.broadcast %cst_8 : f32 to vector<8x1xf32>
    %17 = arith.maximumf %15, %16 : vector<8x1xf32>
    %c0_9 = arith.constant 0 : index
    %c0_10 = arith.constant 0 : index
    %18 = vector.load %arg3[%c0_9, %c0_10] : memref<8x1xf32, #tpu.memory_space<vmem>>, vector<8x1xf32>
    %cst_11 = arith.constant 9.99999974E-6 : f32
    %19 = vector.broadcast %cst_11 : f32 to vector<8x1xf32>
    %20 = arith.addf %17, %19 : vector<8x1xf32>
    %21 = math.rsqrt %20 : vector<8x1xf32>
    %22 = arith.mulf %18, %21 : vector<8x1xf32>
    %c0_12 = arith.constant 0 : index
    %c0_13 = arith.constant 0 : index
    %23 = vector.load %arg4[%c0_12, %c0_13] : memref<8x1xf32, #tpu.memory_space<vmem>>, vector<8x1xf32>
    %24 = arith.mulf %10, %22 : vector<8x1xf32>
    %25 = arith.subf %23, %24 : vector<8x1xf32>
    %26 = vector.broadcast %22 : vector<8x1xf32> to vector<8x384xf32>
    %27 = arith.mulf %2, %26 : vector<8x384xf32>
    %28 = vector.broadcast %25 : vector<8x1xf32> to vector<8x384xf32>
    %29 = arith.addf %27, %28 : vector<8x384xf32>
    %cst_14 = arith.constant 0.000000e+00 : f32
    %30 = vector.broadcast %cst_14 : f32 to vector<8x384xf32>
    %31 = arith.cmpf oge, %29, %30 : vector<8x384xf32>
    %cst_15 = arith.constant 0.00999999977 : f32
    %32 = vector.broadcast %cst_15 : f32 to vector<8x384xf32>
    %33 = arith.mulf %32, %29 : vector<8x384xf32>
    %34 = arith.select %31, %29, %33 : vector<8x384xi1>, vector<8x384xf32>
    %c0_16 = arith.constant 0 : index
    %c0_17 = arith.constant 0 : index
    %35 = vector.load %arg5[%c0_16, %c0_17] : memref<1x384xf32, #tpu.memory_space<vmem>>, vector<1x384xf32>
    %36 = vector.broadcast %35 : vector<1x384xf32> to vector<8x384xf32>
    %37 = arith.mulf %34, %36 : vector<8x384xf32>
    %cst_18 = arith.constant dense<0.000000e+00> : vector<8xf32>
    %38 = vector.multi_reduction <add>, %37, %cst_18 [1] : vector<8x384xf32> to vector<8xf32>
    %39 = vector.shape_cast %38 : vector<8xf32> to vector<8x1xf32>
    %cst_19 = arith.constant 3.906250e-03 : f32
    %40 = vector.broadcast %cst_19 : f32 to vector<8x1xf32>
    %41 = arith.mulf %39, %40 : vector<8x1xf32>
    %c0_20 = arith.constant 0 : index
    %c0_21 = arith.constant 0 : index
    %42 = vector.load %arg6[%c0_20, %c0_21] : memref<8x1xf32, #tpu.memory_space<vmem>>, vector<8x1xf32>
    %43 = arith.mulf %42, %41 : vector<8x1xf32>
    %44 = vector.shape_cast %43 : vector<8x1xf32> to vector<1x8x1xf32>
    %cst_22 = arith.constant dense<0.000000e+00> : vector<1xf32>
    %45 = vector.multi_reduction <add>, %44, %cst_22 [1, 2] : vector<1x8x1xf32> to vector<1xf32>
    %46 = vector.shape_cast %45 : vector<1xf32> to vector<1x1x1xf32>
    %47 = vector.extract %46[0, 0, 0] : f32 from vector<1x1x1xf32>
    %48 = vector.broadcast %47 : f32 to vector<1x1xf32>
    %c0_23 = arith.constant 0 : index
    %c0_24 = arith.constant 0 : index
    %49 = vector.load %arg7[%c0_23, %c0_24] : memref<1x1xf32, #tpu.memory_space<vmem>>, vector<1x1xf32>
    %50 = arith.addf %48, %49 : vector<1x1xf32>
    %c0_25 = arith.constant 0 : index
    %c0_26 = arith.constant 0 : index
    %c0_27 = arith.constant 0 : index
    %51 = vector.load %arg8[%c0_25, %c0_26, %c0_27] : memref<1x1x1xf32, #tpu.memory_space<vmem>>, vector<1x1x1xf32>
    %52 = vector.shape_cast %51 : vector<1x1x1xf32> to vector<1x1xf32>
    %53 = vector.shape_cast %50 : vector<1x1xf32> to vector<1x1x1xf32>
    tpu.vector_store %arg8[%c0_25, %c0_26, %c0_27], %53 {strides = array<i32>} : memref<1x1x1xf32, #tpu.memory_space<vmem>>, vector<1x1x1xf32>,
    return
  }
  func.func @transform_0(%arg0: i32) -> (i32, i32, i32) {
    %c0_i32 = arith.constant 0 : i32
    %c0_i32_0 = arith.constant 0 : i32
    %c0_i32_1 = arith.constant 0 : i32
    return %arg0, %c0_i32, %c0_i32_0 : i32, i32, i32
  }
  func.func @transform_1(%arg0: i32) -> (i32, i32, i32) {
    %c0_i32 = arith.constant 0 : i32
    %c0_i32_0 = arith.constant 0 : i32
    %c0_i32_1 = arith.constant 0 : i32
    %c0_i32_2 = arith.constant 0 : i32
    return %c0_i32, %c0_i32_0, %c0_i32_1 : i32, i32, i32
  }
  func.func @transform_2(%arg0: i32) -> (i32, i32) {
    %c0_i32 = arith.constant 0 : i32
    %c0_i32_0 = arith.constant 0 : i32
    %c0_i32_1 = arith.constant 0 : i32
    return %c0_i32, %c0_i32_0 : i32, i32
  }
  func.func @transform_3(%arg0: i32) -> (i32, i32) {
    %c0_i32 = arith.constant 0 : i32
    %c0_i32_0 = arith.constant 0 : i32
    %c0_i32_1 = arith.constant 0 : i32
    return %c0_i32, %c0_i32_0 : i32, i32
  }
  func.func @transform_4(%arg0: i32) -> (i32, i32) {
    %c0_i32 = arith.constant 0 : i32
    %c0_i32_0 = arith.constant 0 : i32
    %c0_i32_1 = arith.constant 0 : i32
    return %c0_i32, %c0_i32_0 : i32, i32
  }
  func.func @transform_5(%arg0: i32) -> (i32, i32) {
    %c0_i32 = arith.constant 0 : i32
    %c0_i32_0 = arith.constant 0 : i32
    %c0_i32_1 = arith.constant 0 : i32
    return %c0_i32, %c0_i32_0 : i32, i32
  }
  func.func @transform_6(%arg0: i32) -> (i32, i32) {
    %c0_i32 = arith.constant 0 : i32
    %c0_i32_0 = arith.constant 0 : i32
    %c0_i32_1 = arith.constant 0 : i32
    return %c0_i32, %c0_i32_0 : i32, i32
  }
  func.func @transform_7(%arg0: i32) -> (i32, i32, i32) {
    %c0_i32 = arith.constant 0 : i32
    %c0_i32_0 = arith.constant 0 : i32
    %c0_i32_1 = arith.constant 0 : i32
    return %arg0, %c0_i32, %c0_i32_0 : i32, i32, i32
  }
}

</mosaic_0001>

<llo_original>
// kernel: discriminator_forward.6
$region0: #{discriminator_forward.6}
  #allocation0 [shape = 'u32[]', space=smem, size = 0x4, offset = 0x4, fixed_abs, tag = 'smem constant byte address 0x4 - core index']
  #allocation1 [shape = 'u32[72,128]{1,0:T(1,128)}', space=vmem, size = 0x9000, scoped, tag = 'internal scratch']
  #allocation2 [shape = 'bf16[72,286]{1,0:T(8,128)(2,1)}', space=vmem, size = 0xd800, scoped, tag = 'scratch operand']
  %s0 = inlined_call_operand.vmem [shape: bf16[2,8,384], index: 0, kind: input, shape index: {}]
  %s1 = inlined_call_operand.vmem [shape: bf16[8,72], index: 1, kind: input, shape index: {}]
  %s2 = inlined_call_operand.vmem [shape: f32[1,384], index: 2, kind: input, shape index: {}]
  %s3 = inlined_call_operand.vmem [shape: bf16[2,8,384], index: 3, kind: output, shape index: {0}]
  %s4 = inlined_call_operand.vmem [shape: f32[2,8,2], index: 4, kind: output, shape index: {1}]
  %5 = xla_tuple %s3, %s4
  %s6 = sld [smem:[#allocation0]]
  $region53: #{discriminator_forward.6} parent=0
    _
  %s8 = ssub.s32 1, %s6
  %s9 = scalar_select 0, %s8, %s6
  loop: start=0, step=1, limit=4
  $region2: #{discriminator_forward.6} parent=0 // loop_pre_header
    _
  $region3: #{discriminator_forward.6} parent=0 // loop_header
    %s11 = sphi 0, %s15
    %p12 = scmp.ge.s32.totalorder %s11, 4
    %s21 = sphi 0, %s23
    %s24 = sphi 0, %s21
    %s25 = sphi 0, %s24
    %s41 = sphi 0, %s25
    %s45 = sphi 0, %s45
    %s47 = sphi 0, %s45
    %s48 = sphi 0, %s47
    %s62 = sphi 0, %s48
    %s66 = sphi 0, %s66
    %s68 = sphi 0, %s66
    %s69 = sphi 0, %s68
    %s83 = sphi 0, %s69
    %s89 = sphi 0, %s91
    %s92 = sphi 0, %s89
    %s93 = sphi 0, %s92
    %s109 = sphi 0, %s93
    %s115 = sphi 0, %s117
    %s118 = sphi 0, %s115
    %s119 = sphi 0, %s118
    %s135 = sphi 0, %s119
  $region4: #{discriminator_forward.6} parent=0 // loop_header_branch
    %14 = sbr.rel (%p12) target = $region8
  $region5: #{discriminator_forward.6} parent=0 // loop_body
    %s16 = ssub.s32 %s11, 1
    %s17 = ssub.s32 %s11, 2
    %s18 = sadd.s32 %s11, 1
    %s19 = ssub.s32 %s11, %s18
    %p20 = scmp.eq.s32.totalorder %s19, 0
    %s22 = sadd.s32 %s21, 1
    %s23 = scalar_select %p20, %s21, %s22
    %p26 = pneg %p20
    %p27 = scmp.eq.s32.totalorder %s11, 1
    %p28 = por %p26, %p27
    %p29 = scmp.ne.s32.totalorder %s21, %s24
    %p30 = scmp.eq.s32.totalorder %s11, 0
    %p31 = por %p29, %p30
    %p32 = scmp.ne.s32.totalorder %s21, %s24
    %p33 = scmp.eq.s32.totalorder %s16, 1
    %p34 = por %p32, %p33
    %p35 = scmp.ne.s32.totalorder %s24, %s25
    %p36 = scmp.eq.s32.totalorder %s16, 0
    %p37 = por %p35, %p36
    %p38 = scmp.ne.s32.totalorder %s24, %s25
    %p39 = scmp.eq.s32.totalorder %s17, 1
    %p40 = por %p38, %p39
    %p42 = scmp.ne.s32.totalorder %s25, %s41
    %p43 = scmp.eq.s32.totalorder %s17, 0
    %p44 = por %p42, %p43
    %s46 = sadd.s32 %s45, 1
    %p49 = scmp.eq.s32.totalorder %s11, 1
    %p50 = scmp.ne.s32.totalorder %s45, %s47
    %p51 = scmp.eq.s32.totalorder %s11, 0
    %p52 = por %p50, %p51
    %p53 = scmp.ne.s32.totalorder %s45, %s47
    %p54 = scmp.eq.s32.totalorder %s16, 1
    %p55 = por %p53, %p54
    %p56 = scmp.ne.s32.totalorder %s47, %s48
    %p57 = scmp.eq.s32.totalorder %s16, 0
    %p58 = por %p56, %p57
    %p59 = scmp.ne.s32.totalorder %s47, %s48
    %p60 = scmp.eq.s32.totalorder %s17, 1
    %p61 = por %p59, %p60
    %p63 = scmp.ne.s32.totalorder %s48, %s62
    %p64 = scmp.eq.s32.totalorder %s17, 0
    %p65 = por %p63, %p64
    %s67 = sadd.s32 %s66, 1
    %p70 = scmp.eq.s32.totalorder %s11, 1
    %p71 = scmp.ne.s32.totalorder %s66, %s68
    %p72 = scmp.eq.s32.totalorder %s11, 0
    %p73 = por %p71, %p72
    %p74 = scmp.ne.s32.totalorder %s66, %s68
    %p75 = scmp.eq.s32.totalorder %s16, 1
    %p76 = por %p74, %p75
    %p77 = scmp.ne.s32.totalorder %s68, %s69
    %p78 = scmp.eq.s32.totalorder %s16, 0
    %p79 = por %p77, %p78
    %p80 = scmp.ne.s32.totalorder %s68, %s69
    %p81 = scmp.eq.s32.totalorder %s17, 1
    %p82 = por %p80, %p81
    %p84 = scmp.ne.s32.totalorder %s69, %s83
    %p85 = scmp.eq.s32.totalorder %s17, 0
    %p86 = por %p84, %p85
    %s87 = ssub.s32 %s11, %s18
    %p88 = scmp.eq.s32.totalorder %s87, 0
    %s90 = sadd.s32 %s89, 1
    %s91 = scalar_select %p88, %s89, %s90
    %p94 = pneg %p88
    %p95 = scmp.eq.s32.totalorder %s11, 1
    %p96 = por %p94, %p95
    %p97 = scmp.ne.s32.totalorder %s89, %s92
    %p98 = scmp.eq.s32.totalorder %s11, 0
    %p99 = por %p97, %p98
    %p100 = scmp.ne.s32.totalorder %s89, %s92
    %p101 = scmp.eq.s32.totalorder %s16, 1
    %p102 = por %p100, %p101
    %p103 = scmp.ne.s32.totalorder %s92, %s93
    %p104 = scmp.eq.s32.totalorder %s16, 0
    %p105 = por %p103, %p104
    %p106 = scmp.ne.s32.totalorder %s92, %s93
    %p107 = scmp.eq.s32.totalorder %s17, 1
    %p108 = por %p106, %p107
    %p110 = scmp.ne.s32.totalorder %s93, %s109
    %p111 = scmp.eq.s32.totalorder %s17, 0
    %p112 = por %p110, %p111
    %s113 = ssub.s32 %s11, %s18
    %p114 = scmp.eq.s32.totalorder %s113, 0
    %s116 = sadd.s32 %s115, 1
    %s117 = scalar_select %p114, %s115, %s116
    %p120 = pneg %p114
    %p121 = scmp.eq.s32.totalorder %s11, 1
    %p122 = por %p120, %p121
    %p123 = scmp.ne.s32.totalorder %s115, %s118
    %p124 = scmp.eq.s32.totalorder %s11, 0
    %p125 = por %p123, %p124
    %p126 = scmp.ne.s32.totalorder %s115, %s118
    %p127 = scmp.eq.s32.totalorder %s16, 1
    %p128 = por %p126, %p127
    %p129 = scmp.ne.s32.totalorder %s118, %s119
    %p130 = scmp.eq.s32.totalorder %s16, 0
    %p131 = por %p129, %p130
    %p132 = scmp.ne.s32.totalorder %s118, %s119
    %p133 = scmp.eq.s32.totalorder %s17, 1
    %p134 = por %p132, %p133
    %p136 = scmp.ne.s32.totalorder %s119, %s135
    %p137 = scmp.eq.s32.totalorder %s17, 0
    %p138 = por %p136, %p137
    %p139 = scmp.le.s32.totalorder 1, %s11
    %p140 = scmp.lt.s32.totalorder %s11, 3
    %p141 = pnand %p139, %p140
    %p142 = pneg %p141
    // Predicated region
    $region9: #{discriminator_forward.6} parent=5 // pred_check
      _
    $region10: #{discriminator_forward.6} parent=5 // pred_check_branch
      %144 = sbr.rel (%p141) target = $region12
    $region11: #{discriminator_forward.6} parent=5 // pred_region
      %s145 = ssub.s32 %s11, 1
      // Predicated region
      $region13: #{discriminator_forward.6} parent=11 // pred_check
        %p146 = pneg %p58
      $region14: #{discriminator_forward.6} parent=11 // pred_check_branch
        %148 = sbr.rel (%p146) target = $region16
      $region15: #{discriminator_forward.6} parent=11 // pred_region
        _
      $region16: #{discriminator_forward.6} parent=11 // pred_fallthru
        _
      // Predicated region
      $region17: #{discriminator_forward.6} parent=11 // pred_check
        %p149 = pneg %p79
      $region18: #{discriminator_forward.6} parent=11 // pred_check_branch
        %151 = sbr.rel (%p149) target = $region20
      $region19: #{discriminator_forward.6} parent=11 // pred_region
        _
      $region20: #{discriminator_forward.6} parent=11 // pred_fallthru
        _
    $region12: #{discriminator_forward.6} parent=5 // pred_fallthru
      _
    %p152 = scmp.lt.s32.totalorder %s11, 2
    // Predicated region
    $region21: #{discriminator_forward.6} parent=5 // pred_check
      %p153 = pneg %p152
    $region22: #{discriminator_forward.6} parent=5 // pred_check_branch
      %155 = sbr.rel (%p153) target = $region24
    $region23: #{discriminator_forward.6} parent=5 // pred_region
      // Predicated region
      $region25: #{discriminator_forward.6} parent=23 // pred_check
        %p156 = pneg %p31
      $region26: #{discriminator_forward.6} parent=23 // pred_check_branch
        %158 = sbr.rel (%p156) target = $region28
      $region27: #{discriminator_forward.6} parent=23 // pred_region
        %p159 = scmp.lt.s32.totalorder %s11, 1
        %s160 = scalar_select %p159, %s11, 1
        %s161 = smul.addr %s160, 3
        %s162 = smul.addr %s161, 4
        %s163 = scalar_lea.vmem %s0, %s162
      $region28: #{discriminator_forward.6} parent=23 // pred_fallthru
        _
    $region24: #{discriminator_forward.6} parent=5 // pred_fallthru
      _
    %p164 = scmp.le.s32.totalorder 1, %s11
    %p165 = scmp.lt.s32.totalorder %s11, 3
    %p166 = pnand %p164, %p165
    %p167 = pneg %p166
    // Predicated region
    $region29: #{discriminator_forward.6} parent=5 // pred_check
      _
    $region30: #{discriminator_forward.6} parent=5 // pred_check_branch
      %169 = sbr.rel (%p166) target = $region32
    $region31: #{discriminator_forward.6} parent=5 // pred_region
      %s170 = ssub.s32 %s11, 1
      %p171 = scmp.lt.s32.totalorder %s16, 1
      %s172 = scalar_select %p171, %s16, 1
      %s173 = smul.addr %s172, 3
      %s174 = smul.addr %s173, 4
      %s175 = scalar_lea.vmem %s0, %s174
      %p176 = pneg %p37
      %p177 = pneg %p34
      %p178 = pneg %p58
      %p179 = pneg %p55
      %p180 = pneg %p79
      %p181 = pneg %p76
      %p182 = pneg %p105
      %p183 = pneg %p102
      %p184 = scmp.lt.s32.totalorder %s16, 1
      %s185 = scalar_select %p184, %s16, 1
      %s186 = smul.addr %s185, 3
      %s187 = smul.addr %s186, 4
      %s188 = scalar_lea.vmem %s3, %s187
      %p189 = pneg %p131
      %p190 = pneg %p128
      %p191 = scmp.lt.s32.totalorder %s16, 1
      %s192 = scalar_select %p191, %s16, 1
      %s193 = smul.addr %s192, 8
      %s194 = scalar_lea.vmem %s4, %s193
      %p195 = scmp.lt.s32.totalorder %s16, 1
      %s196 = scalar_select %p195, %s16, 1
      %s197 = smul.addr %s196, 3
      %s198 = smul.addr %s197, 4
      %s199 = scalar_lea.vmem %s0, %s198
      %p200 = scmp.lt.s32.totalorder %s16, 1
      %s201 = scalar_select %p200, %s16, 1
      %s202 = smul.addr %s201, 3
      %s203 = smul.addr %s202, 4
      %s204 = scalar_lea.vmem %s3, %s203
      %p205 = scmp.lt.s32.totalorder %s16, 1
      %s206 = scalar_select %p205, %s16, 1
      %s207 = smul.addr %s206, 8
      %s208 = scalar_lea.vmem %s4, %s207
      %v210 = vld [vmem:[%s2] sm:$0x7]
      %v211 = vld [vmem:[%s199] sm:$0xff]
      %v212 = vld [vmem:[%s199 + $0x8] sm:$0xf]
      %213 = vst [vmem:[#allocation2] sm:$0xff] %v211
      %vm214 = vcmask 240640
      %215 = vst.msk [vmem:[#allocation2 + $0x8] sm:$0xf] %vm214, %v212
      %218 = vrot.lane.b32.xlu0 %v211, 127
      %v219 = vpop.permute.xlu0 %218
      %220 = vrot.lane.b32.xlu0 %v212, 127
      %v221 = vpop.permute.xlu0 %220
      %v222 = vrot.slane %v219, 4
      %v223 = vrot.slane %v221, 4
      %vm224 = vcmask 1043456
      %v225 = vsel %vm224, %v222, %v223
      %vm226 = vcmask 1039360
      %v227 = vsel %vm226, %v219, %v225
      %230 = vst [vmem:[#allocation2 + $0xc] sm:$0xff] %v227
      %231 = vst.msk [vmem:[#allocation2 + $0x14] sm:$0xf] %vm214, %v221
      %232 = vrot.lane.b32.xlu0 %v211, 126
      %v233 = vpop.permute.xlu0 %232
      %234 = vrot.lane.b32.xlu0 %v212, 126
      %v235 = vpop.permute.xlu0 %234
      %v236 = vrot.slane %v233, 4
      %v237 = vrot.slane %v235, 4
      %v238 = vsel %vm224, %v236, %v237
      %vm239 = vcmask 1031168
      %v240 = vsel %vm239, %v233, %v238
      %243 = vst [vmem:[#allocation2 + $0x18] sm:$0xff] %v240
      %244 = vst.msk [vmem:[#allocation2 + $0x20] sm:$0xf] %vm214, %v235
      %245 = vrot.lane.b32.xlu0 %v211, 110
      %v246 = vpop.permute.xlu0 %245
      %247 = vrot.lane.b32.xlu0 %v212, 110
      %v248 = vpop.permute.xlu0 %247
      %v249 = vrot.slane %v246, 4
      %v250 = vrot.slane %v248, 4
      %v251 = vsel %vm224, %v249, %v250
      %vm252 = vcmask 900096
      %v253 = vsel %vm252, %v246, %v251
      %256 = vst [vmem:[#allocation2 + $0x24] sm:$0xff] %v253
      %257 = vst.msk [vmem:[#allocation2 + $0x2c] sm:$0xf] %vm214, %v248
      %258 = vrot.lane.b32.xlu0 %v211, 109
      %v259 = vpop.permute.xlu0 %258
      %260 = vrot.lane.b32.xlu0 %v212, 109
      %v261 = vpop.permute.xlu0 %260
      %v262 = vrot.slane %v259, 4
      %v263 = vrot.slane %v261, 4
      %v264 = vsel %vm224, %v262, %v263
      %vm265 = vcmask 891904
      %v266 = vsel %vm265, %v259, %v264
      %269 = vst [vmem:[#allocation2 + $0x30] sm:$0xff] %v266
      %270 = vst.msk [vmem:[#allocation2 + $0x38] sm:$0xf] %vm214, %v261
      %271 = vrot.lane.b32.xlu0 %v211, 108
      %v272 = vpop.permute.xlu0 %271
      %273 = vrot.lane.b32.xlu0 %v212, 108
      %v274 = vpop.permute.xlu0 %273
      %v275 = vrot.slane %v272, 4
      %v276 = vrot.slane %v274, 4
      %v277 = vsel %vm224, %v275, %v276
      %vm278 = vcmask 883712
      %v279 = vsel %vm278, %v272, %v277
      %282 = vst [vmem:[#allocation2 + $0x3c] sm:$0xff] %v279
      %283 = vst.msk [vmem:[#allocation2 + $0x44] sm:$0xf] %vm214, %v274
      %284 = vrot.lane.b32.xlu0 %v211, 92
      %v285 = vpop.permute.xlu0 %284
      %286 = vrot.lane.b32.xlu0 %v212, 92
      %v287 = vpop.permute.xlu0 %286
      %v288 = vrot.slane %v285, 4
      %v289 = vrot.slane %v287, 4
      %v290 = vsel %vm224, %v288, %v289
      %vm291 = vcmask 752640
      %v292 = vsel %vm291, %v285, %v290
      %295 = vst [vmem:[#allocation2 + $0x48] sm:$0xff] %v292
      %296 = vst.msk [vmem:[#allocation2 + $0x50] sm:$0xf] %vm214, %v287
      %297 = vrot.lane.b32.xlu0 %v211, 91
      %v298 = vpop.permute.xlu0 %297
      %299 = vrot.lane.b32.xlu0 %v212, 91
      %v300 = vpop.permute.xlu0 %299
      %v301 = vrot.slane %v298, 4
      %v302 = vrot.slane %v300, 4
      %v303 = vsel %vm224, %v301, %v302
      %vm304 = vcmask 744448
      %v305 = vsel %vm304, %v298, %v303
      %308 = vst [vmem:[#allocation2 + $0x54] sm:$0xff] %v305
      %309 = vst.msk [vmem:[#allocation2 + $0x5c] sm:$0xf] %vm214, %v300
      %310 = vrot.lane.b32.xlu0 %v211, 90
      %v311 = vpop.permute.xlu0 %310
      %312 = vrot.lane.b32.xlu0 %v212, 90
      %v313 = vpop.permute.xlu0 %312
      %v314 = vrot.slane %v311, 4
      %v315 = vrot.slane %v313, 4
      %v316 = vsel %vm224, %v314, %v315
      %vm317 = vcmask 736256
      %v318 = vsel %vm317, %v311, %v316
      %321 = vst [vmem:[#allocation2 + $0x60] sm:$0xff] %v318
      %322 = vst.msk [vmem:[#allocation2 + $0x68] sm:$0xf] %vm214, %v313
      %v323 = vld [vmem:[%s1] sm:$0xf]
      %v324 = vld [vmem:[#allocation2] sm:$0xff]
      %v325 = vld [vmem:[#allocation2 + $0x8] sm:$0xf]
      %v326 = vld [vmem:[#allocation2 + $0xc] sm:$0xff]
      %v327 = vld [vmem:[#allocation2 + $0x14] sm:$0xf]
      %v328 = vld [vmem:[#allocation2 + $0x18] sm:$0xff]
      %v329 = vld [vmem:[#allocation2 + $0x20] sm:$0xf]
      %v330 = vld [vmem:[#allocation2 + $0x24] sm:$0xff]
      %v331 = vld [vmem:[#allocation2 + $0x2c] sm:$0xf]
      %v332 = vld [vmem:[#allocation2 + $0x30] sm:$0xff]
      %v333 = vld [vmem:[#allocation2 + $0x38] sm:$0xf]
      %v334 = vld [vmem:[#allocation2 + $0x3c] sm:$0xff]
      %v335 = vld [vmem:[#allocation2 + $0x44] sm:$0xf]
      %v336 = vld [vmem:[#allocation2 + $0x48] sm:$0xff]
      %v337 = vld [vmem:[#allocation2 + $0x50] sm:$0xf]
      %v338 = vld [vmem:[#allocation2 + $0x54] sm:$0xff]
      %v339 = vld [vmem:[#allocation2 + $0x5c] sm:$0xf]
      %v340 = vld [vmem:[#allocation2 + $0x60] sm:$0xff]
      %v341 = vld [vmem:[#allocation2 + $0x68] sm:$0xf]
      %v360 = vunpack.c.l.b16 %v324
      %v361 = vunpack.c.h.b16 %v324
      %v362 = vunpack.c.l.b16 %v325
      %v363 = vunpack.c.l.b16 %v326
      %v364 = vunpack.c.h.b16 %v326
      %v365 = vunpack.c.l.b16 %v327
      %v366 = vunpack.c.l.b16 %v328
      %v367 = vunpack.c.h.b16 %v328
      %v368 = vunpack.c.l.b16 %v329
      %v369 = vunpack.c.l.b16 %v330
      %v370 = vunpack.c.h.b16 %v330
      %v371 = vunpack.c.l.b16 %v331
      %v372 = vunpack.c.l.b16 %v332
      %v373 = vunpack.c.h.b16 %v332
      %v374 = vunpack.c.l.b16 %v333
      %v375 = vunpack.c.l.b16 %v334
      %v376 = vunpack.c.h.b16 %v334
      %v377 = vunpack.c.l.b16 %v335
      %v378 = vunpack.c.l.b16 %v336
      %v379 = vunpack.c.h.b16 %v336
      %v380 = vunpack.c.l.b16 %v337
      %v381 = vunpack.c.l.b16 %v338
      %v382 = vunpack.c.h.b16 %v338
      %v383 = vunpack.c.l.b16 %v339
      %v384 = vunpack.c.l.b16 %v340
      %v385 = vunpack.c.h.b16 %v340
      %v386 = vunpack.c.l.b16 %v341
      %v387 = vpack.c.b16 %v363, %v360
      %v388 = vpack.c.b16 %v364, %v361
      %v389 = vpack.c.b16 %v365, %v362
      %v390 = vpack.c.b16 %v369, %v366
      %v391 = vpack.c.b16 %v370, %v367
      %v392 = vpack.c.b16 %v371, %v368
      %v393 = vpack.c.b16 %v375, %v372
      %v394 = vpack.c.b16 %v376, %v373
      %v395 = vpack.c.b16 %v377, %v374
      %v396 = vpack.c.b16 %v381, %v378
      %v397 = vpack.c.b16 %v382, %v379
      %v398 = vpack.c.b16 %v383, %v380
      %v399 = vpack.c.b16 %v384, %v384
      %v400 = vpack.c.b16 %v385, %v385
      %v401 = vpack.c.b16 %v386, %v386
      %vm414 = vcmask 588800
      %v416 = vsel %vm414, %v323, 0
      %vm418 = vcmask 1043456
      %v420 = vsel %vm418, %v399, 0
      %v423 = vsel %vm418, %v400, 0
      %v426 = vsel %vm418, %v401, 0
      %428 = vmatpush.bf16.msra.mxu0 0
      %429 = vmatpush.bf16.msra.mxu0 0
      %430 = vmatpush.bf16.msra.mxu0 0
      %431 = vmatpush.bf16.msra.mxu0 %v420
      %432 = vmatpush.bf16.msra.mxu0 %v396
      %433 = vmatpush.bf16.msra.mxu0 %v393
      %434 = vmatpush.bf16.msra.mxu0 %v390
      %435 = vmatpush.bf16.msra.mxu0 %v387
      %436 = vmatmul.bf16.gmra.mxu0 %v416
      %v437 = vpop.f32.mrf.mxu0
      %v438 = vadd.f32 0.0, %v437
      %v439 = vpop.f32.mrf.mxu0
      %440 = vdwg.mxu0
      %441 = vmatpush.bf16.msra.mxu0 0
      %442 = vmatpush.bf16.msra.mxu0 0
      %443 = vmatpush.bf16.msra.mxu0 0
      %444 = vmatpush.bf16.msra.mxu0 %v423
      %445 = vmatpush.bf16.msra.mxu0 %v397
      %446 = vmatpush.bf16.msra.mxu0 %v394
      %447 = vmatpush.bf16.msra.mxu0 %v391
      %448 = vmatpush.bf16.msra.mxu0 %v388
      %449 = vmatmul.bf16.gmra.mxu0 %v416
      %v450 = vpop.f32.mrf.mxu0
      %v451 = vadd.f32 0.0, %v450
      %v452 = vpop.f32.mrf.mxu0
      %453 = vdwg.mxu0
      %454 = vmatpush.bf16.msra.mxu0 0
      %455 = vmatpush.bf16.msra.mxu0 0
      %456 = vmatpush.bf16.msra.mxu0 0
      %457 = vmatpush.bf16.msra.mxu0 %v426
      %458 = vmatpush.bf16.msra.mxu0 %v398
      %459 = vmatpush.bf16.msra.mxu0 %v395
      %460 = vmatpush.bf16.msra.mxu0 %v392
      %461 = vmatpush.bf16.msra.mxu0 %v389
      %462 = vmatmul.bf16.gmra.mxu0 %v416
      %v463 = vpop.f32.mrf.mxu0
      %v464 = vadd.f32 0.0, %v463
      %v465 = vpop.f32.mrf.mxu0
      %466 = vdwg.mxu0
      %v468 = vperm.slane %v210, 0
      %v469 = vperm.slane %v210, 1
      %v470 = vperm.slane %v210, 2
      %471 = vrot.lane.b32.xlu0 %v468, 109
      %v472 = vpop.permute.xlu0 %471
      %473 = vrot.lane.b32.xlu0 %v469, 109
      %v474 = vpop.permute.xlu0 %473
      %475 = vrot.lane.b32.xlu0 %v470, 109
      %v476 = vpop.permute.xlu0 %475
      %vm477 = vcmask 891904
      %v478 = vsel %vm477, %v472, %v474
      %v479 = vsel %vm477, %v474, %v476
      %v483 = vmul.f32 %v438, %v478
      %v484 = vmul.f32 %v451, %v479
      %v485 = vmul.f32 %v464, %v476
      %v486 = vadd.f32 %v483, %v484
      %vm487 = vcmask 244736
      %v488 = vsel %vm487, %v485, 0.0
      %v489 = vadd.f32 %v486, %v488
      %490 = vadd.xlane.f32.xlu0 %v489
      %v491 = vpop.xlane.xlu0 %490
      %vm492 = vcmask 7168
      %493 = vst.msk [vmem:[%s208] sm:$0xff] %vm492, %v491
      %v494 = vmul.f32 %v483, %v483
      %v495 = vmul.f32 %v484, %v484
      %v496 = vmul.f32 %v485, %v485
      %v497 = vadd.f32 %v494, %v495
      %v498 = vsel %vm487, %v496, 0.0
      %v499 = vadd.f32 %v497, %v498
      %500 = vadd.xlane.f32.xlu0 %v499
      %v501 = vpop.xlane.xlu0 %500
      %vm502 = vcmask 15368
      %503 = vst.msk [vmem:[%s208] sm:$0xff] %vm502, %v501
      %v504 = vpack.c.bf16 %v484, %v483
      %v505 = vpack.c.bf16 %v485, %v485
      %vm506 = vcmask 150528
      %507 = vst.msk [vmem:[%s204] sm:$0xf] %vm506, 0
      %510 = vrot.lane.b32.xlu0 %v504, 19
      %v511 = vpop.permute.xlu0 %510
      %512 = vrot.lane.b32.xlu0 %v505, 19
      %v513 = vpop.permute.xlu0 %512
      %v514 = vrot.slane %v511, 4
      %vm515 = vcmask 154624
      %v516 = vsel %vm515, %v514, %v511
      %v517 = vsel %vm515, %v514, %v513
      %vm520 = vcmask 1043608
      %vm521 = vcmask 1047556
      %vm522 = vmor %vm521, %vm520
      %523 = vst.msk [vmem:[%s204] sm:$0xff] %vm522, %v516
      %vm524 = vcmask 396288
      %525 = vst.msk [vmem:[%s204 + $0x8] sm:$0xf] %vm524, %v517
      %vm526 = vcmask 1043848
      %527 = vst.msk [vmem:[%s204 + $0x8] sm:$0xf] %vm526, 0
      %p528 = scmp.lt.s32.totalorder %s16, 1
      %s529 = scalar_select %p528, %s16, 1
      %s530 = smul.addr %s529, 3
      %s531 = smul.addr %s530, 4
      %s532 = scalar_lea.vmem %s3, %s531
      %p533 = scmp.lt.s32.totalorder %s16, 1
      %s534 = scalar_select %p533, %s16, 1
      %s535 = smul.addr %s534, 8
      %s536 = scalar_lea.vmem %s4, %s535
      // Predicated region
      $region33: #{discriminator_forward.6} parent=31 // pred_check
        %p537 = pneg %p102
      $region34: #{discriminator_forward.6} parent=31 // pred_check_branch
        %539 = sbr.rel (%p537) target = $region36
      $region35: #{discriminator_forward.6} parent=31 // pred_region
        _
      $region36: #{discriminator_forward.6} parent=31 // pred_fallthru
        _
      // Predicated region
      $region37: #{discriminator_forward.6} parent=31 // pred_check
        %p540 = pneg %p128
      $region38: #{discriminator_forward.6} parent=31 // pred_check_branch
        %542 = sbr.rel (%p540) target = $region40
      $region39: #{discriminator_forward.6} parent=31 // pred_region
        _
      $region40: #{discriminator_forward.6} parent=31 // pred_fallthru
        _
    $region32: #{discriminator_forward.6} parent=5 // pred_fallthru
      _
    %p543 = scmp.le.s32.totalorder 2, %s11
    // Predicated region
    $region41: #{discriminator_forward.6} parent=5 // pred_check
      %p544 = pneg %p543
    $region42: #{discriminator_forward.6} parent=5 // pred_check_branch
      %546 = sbr.rel (%p544) target = $region44
    $region43: #{discriminator_forward.6} parent=5 // pred_region
      %s547 = ssub.s32 %s11, 2
      // Predicated region
      $region45: #{discriminator_forward.6} parent=43 // pred_check
        %p548 = pneg %p108
      $region46: #{discriminator_forward.6} parent=43 // pred_check_branch
        %550 = sbr.rel (%p548) target = $region48
      $region47: #{discriminator_forward.6} parent=43 // pred_region
        %p551 = scmp.lt.s32.totalorder %s17, 1
        %s552 = scalar_select %p551, %s17, 1
        %s553 = smul.addr %s552, 3
        %s554 = smul.addr %s553, 4
        %s555 = scalar_lea.vmem %s3, %s554
      $region48: #{discriminator_forward.6} parent=43 // pred_fallthru
        _
      // Predicated region
      $region49: #{discriminator_forward.6} parent=43 // pred_check
        %p556 = pneg %p134
      $region50: #{discriminator_forward.6} parent=43 // pred_check_branch
        %558 = sbr.rel (%p556) target = $region52
      $region51: #{discriminator_forward.6} parent=43 // pred_region
        %p559 = scmp.lt.s32.totalorder %s17, 1
        %s560 = scalar_select %p559, %s17, 1
        %s561 = smul.addr %s560, 8
        %s562 = scalar_lea.vmem %s4, %s561
      $region52: #{discriminator_forward.6} parent=43 // pred_fallthru
        _
    $region44: #{discriminator_forward.6} parent=5 // pred_fallthru
      _
  $region6: #{discriminator_forward.6} parent=0 // loop_footer
    %s15 = sadd.s32 1, %s11
  $region7: #{discriminator_forward.6} parent=0 // loop_footer_branch
    %10 = sbr.rel target = $region3
  $region8: #{discriminator_forward.6} parent=0 // loop_exit
    _

// kernel: discriminator_forward.7
$region0: #{discriminator_forward.7}
  #allocation0 [shape = 'u32[]', space=smem, size = 0x4, offset = 0x4, fixed_abs, tag = 'smem constant byte address 0x4 - core index']
  #allocation1 [shape = 'u32[72,128]{1,0:T(1,128)}', space=vmem, size = 0x9000, scoped, tag = 'internal scratch']
  #allocation2 [shape = 'bf16[72,286]{1,0:T(8,128)(2,1)}', space=vmem, size = 0xd800, scoped, tag = 'scratch operand']
  %s0 = inlined_call_operand.vmem [shape: bf16[2,8,384], index: 0, kind: input, shape index: {}]
  %s1 = inlined_call_operand.vmem [shape: bf16[8,72], index: 1, kind: input, shape index: {}]
  %s2 = inlined_call_operand.vmem [shape: f32[2,8,2], index: 2, kind: input, shape index: {}]
  %s3 = inlined_call_operand.vmem [shape: f32[8,1], index: 3, kind: input, shape index: {}]
  %s4 = inlined_call_operand.vmem [shape: f32[8,1], index: 4, kind: input, shape index: {}]
  %s5 = inlined_call_operand.vmem [shape: f32[1,384], index: 5, kind: input, shape index: {}]
  %s6 = inlined_call_operand.vmem [shape: bf16[2,8,384], index: 6, kind: output, shape index: {0}]
  %s7 = inlined_call_operand.vmem [shape: f32[2,8,2], index: 7, kind: output, shape index: {1}]
  %8 = xla_tuple %s6, %s7
  %s9 = sld [smem:[#allocation0]]
  $region65: #{discriminator_forward.7} parent=0
    _
  %s11 = ssub.s32 1, %s9
  %s12 = scalar_select 0, %s11, %s9
  loop: start=0, step=1, limit=4
  $region2: #{discriminator_forward.7} parent=0 // loop_pre_header
    _
  $region3: #{discriminator_forward.7} parent=0 // loop_header
    %s14 = sphi 0, %s18
    %p15 = scmp.ge.s32.totalorder %s14, 4
    %s24 = sphi 0, %s26
    %s27 = sphi 0, %s24
    %s28 = sphi 0, %s27
    %s44 = sphi 0, %s28
    %s48 = sphi 0, %s48
    %s50 = sphi 0, %s48
    %s51 = sphi 0, %s50
    %s65 = sphi 0, %s51
    %s69 = sphi 0, %s69
    %s71 = sphi 0, %s69
    %s72 = sphi 0, %s71
    %s86 = sphi 0, %s72
    %s90 = sphi 0, %s90
    %s92 = sphi 0, %s90
    %s93 = sphi 0, %s92
    %s107 = sphi 0, %s93
    %s111 = sphi 0, %s111
    %s113 = sphi 0, %s111
    %s114 = sphi 0, %s113
    %s128 = sphi 0, %s114
    %s132 = sphi 0, %s132
    %s134 = sphi 0, %s132
    %s135 = sphi 0, %s134
    %s149 = sphi 0, %s135
    %s155 = sphi 0, %s157
    %s158 = sphi 0, %s155
    %s159 = sphi 0, %s158
    %s175 = sphi 0, %s159
    %s181 = sphi 0, %s183
    %s184 = sphi 0, %s181
    %s185 = sphi 0, %s184
    %s201 = sphi 0, %s185
  $region4: #{discriminator_forward.7} parent=0 // loop_header_branch
    %17 = sbr.rel (%p15) target = $region8
  $region5: #{discriminator_forward.7} parent=0 // loop_body
    %s19 = ssub.s32 %s14, 1
    %s20 = ssub.s32 %s14, 2
    %s21 = sadd.s32 %s14, 1
    %s22 = ssub.s32 %s14, %s21
    %p23 = scmp.eq.s32.totalorder %s22, 0
    %s25 = sadd.s32 %s24, 1
    %s26 = scalar_select %p23, %s24, %s25
    %p29 = pneg %p23
    %p30 = scmp.eq.s32.totalorder %s14, 1
    %p31 = por %p29, %p30
    %p32 = scmp.ne.s32.totalorder %s24, %s27
    %p33 = scmp.eq.s32.totalorder %s14, 0
    %p34 = por %p32, %p33
    %p35 = scmp.ne.s32.totalorder %s24, %s27
    %p36 = scmp.eq.s32.totalorder %s19, 1
    %p37 = por %p35, %p36
    %p38 = scmp.ne.s32.totalorder %s27, %s28
    %p39 = scmp.eq.s32.totalorder %s19, 0
    %p40 = por %p38, %p39
    %p41 = scmp.ne.s32.totalorder %s27, %s28
    %p42 = scmp.eq.s32.totalorder %s20, 1
    %p43 = por %p41, %p42
    %p45 = scmp.ne.s32.totalorder %s28, %s44
    %p46 = scmp.eq.s32.totalorder %s20, 0
    %p47 = por %p45, %p46
    %s49 = sadd.s32 %s48, 1
    %p52 = scmp.eq.s32.totalorder %s14, 1
    %p53 = scmp.ne.s32.totalorder %s48, %s50
    %p54 = scmp.eq.s32.totalorder %s14, 0
    %p55 = por %p53, %p54
    %p56 = scmp.ne.s32.totalorder %s48, %s50
    %p57 = scmp.eq.s32.totalorder %s19, 1
    %p58 = por %p56, %p57
    %p59 = scmp.ne.s32.totalorder %s50, %s51
    %p60 = scmp.eq.s32.totalorder %s19, 0
    %p61 = por %p59, %p60
    %p62 = scmp.ne.s32.totalorder %s50, %s51
    %p63 = scmp.eq.s32.totalorder %s20, 1
    %p64 = por %p62, %p63
    %p66 = scmp.ne.s32.totalorder %s51, %s65
    %p67 = scmp.eq.s32.totalorder %s20, 0
    %p68 = por %p66, %p67
    %s70 = sadd.s32 %s69, 1
    %p73 = scmp.eq.s32.totalorder %s14, 1
    %p74 = scmp.ne.s32.totalorder %s69, %s71
    %p75 = scmp.eq.s32.totalorder %s14, 0
    %p76 = por %p74, %p75
    %p77 = scmp.ne.s32.totalorder %s69, %s71
    %p78 = scmp.eq.s32.totalorder %s19, 1
    %p79 = por %p77, %p78
    %p80 = scmp.ne.s32.totalorder %s71, %s72
    %p81 = scmp.eq.s32.totalorder %s19, 0
    %p82 = por %p80, %p81
    %p83 = scmp.ne.s32.totalorder %s71, %s72
    %p84 = scmp.eq.s32.totalorder %s20, 1
    %p85 = por %p83, %p84
    %p87 = scmp.ne.s32.totalorder %s72, %s86
    %p88 = scmp.eq.s32.totalorder %s20, 0
    %p89 = por %p87, %p88
    %s91 = sadd.s32 %s90, 1
    %p94 = scmp.eq.s32.totalorder %s14, 1
    %p95 = scmp.ne.s32.totalorder %s90, %s92
    %p96 = scmp.eq.s32.totalorder %s14, 0
    %p97 = por %p95, %p96
    %p98 = scmp.ne.s32.totalorder %s90, %s92
    %p99 = scmp.eq.s32.totalorder %s19, 1
    %p100 = por %p98, %p99
    %p101 = scmp.ne.s32.totalorder %s92, %s93
    %p102 = scmp.eq.s32.totalorder %s19, 0
    %p103 = por %p101, %p102
    %p104 = scmp.ne.s32.totalorder %s92, %s93
    %p105 = scmp.eq.s32.totalorder %s20, 1
    %p106 = por %p104, %p105
    %p108 = scmp.ne.s32.totalorder %s93, %s107
    %p109 = scmp.eq.s32.totalorder %s20, 0
    %p110 = por %p108, %p109
    %s112 = sadd.s32 %s111, 1
    %p115 = scmp.eq.s32.totalorder %s14, 1
    %p116 = scmp.ne.s32.totalorder %s111, %s113
    %p117 = scmp.eq.s32.totalorder %s14, 0
    %p118 = por %p116, %p117
    %p119 = scmp.ne.s32.totalorder %s111, %s113
    %p120 = scmp.eq.s32.totalorder %s19, 1
    %p121 = por %p119, %p120
    %p122 = scmp.ne.s32.totalorder %s113, %s114
    %p123 = scmp.eq.s32.totalorder %s19, 0
    %p124 = por %p122, %p123
    %p125 = scmp.ne.s32.totalorder %s113, %s114
    %p126 = scmp.eq.s32.totalorder %s20, 1
    %p127 = por %p125, %p126
    %p129 = scmp.ne.s32.totalorder %s114, %s128
    %p130 = scmp.eq.s32.totalorder %s20, 0
    %p131 = por %p129, %p130
    %s133 = sadd.s32 %s132, 1
    %p136 = scmp.eq.s32.totalorder %s14, 1
    %p137 = scmp.ne.s32.totalorder %s132, %s134
    %p138 = scmp.eq.s32.totalorder %s14, 0
    %p139 = por %p137, %p138
    %p140 = scmp.ne.s32.totalorder %s132, %s134
    %p141 = scmp.eq.s32.totalorder %s19, 1
    %p142 = por %p140, %p141
    %p143 = scmp.ne.s32.totalorder %s134, %s135
    %p144 = scmp.eq.s32.totalorder %s19, 0
    %p145 = por %p143, %p144
    %p146 = scmp.ne.s32.totalorder %s134, %s135
    %p147 = scmp.eq.s32.totalorder %s20, 1
    %p148 = por %p146, %p147
    %p150 = scmp.ne.s32.totalorder %s135, %s149
    %p151 = scmp.eq.s32.totalorder %s20, 0
    %p152 = por %p150, %p151
    %s153 = ssub.s32 %s14, %s21
    %p154 = scmp.eq.s32.totalorder %s153, 0
    %s156 = sadd.s32 %s155, 1
    %s157 = scalar_select %p154, %s155, %s156
    %p160 = pneg %p154
    %p161 = scmp.eq.s32.totalorder %s14, 1
    %p162 = por %p160, %p161
    %p163 = scmp.ne.s32.totalorder %s155, %s158
    %p164 = scmp.eq.s32.totalorder %s14, 0
    %p165 = por %p163, %p164
    %p166 = scmp.ne.s32.totalorder %s155, %s158
    %p167 = scmp.eq.s32.totalorder %s19, 1
    %p168 = por %p166, %p167
    %p169 = scmp.ne.s32.totalorder %s158, %s159
    %p170 = scmp.eq.s32.totalorder %s19, 0
    %p171 = por %p169, %p170
    %p172 = scmp.ne.s32.totalorder %s158, %s159
    %p173 = scmp.eq.s32.totalorder %s20, 1
    %p174 = por %p172, %p173
    %p176 = scmp.ne.s32.totalorder %s159, %s175
    %p177 = scmp.eq.s32.totalorder %s20, 0
    %p178 = por %p176, %p177
    %s179 = ssub.s32 %s14, %s21
    %p180 = scmp.eq.s32.totalorder %s179, 0
    %s182 = sadd.s32 %s181, 1
    %s183 = scalar_select %p180, %s181, %s182
    %p186 = pneg %p180
    %p187 = scmp.eq.s32.totalorder %s14, 1
    %p188 = por %p186, %p187
    %p189 = scmp.ne.s32.totalorder %s181, %s184
    %p190 = scmp.eq.s32.totalorder %s14, 0
    %p191 = por %p189, %p190
    %p192 = scmp.ne.s32.totalorder %s181, %s184
    %p193 = scmp.eq.s32.totalorder %s19, 1
    %p194 = por %p192, %p193
    %p195 = scmp.ne.s32.totalorder %s184, %s185
    %p196 = scmp.eq.s32.totalorder %s19, 0
    %p197 = por %p195, %p196
    %p198 = scmp.ne.s32.totalorder %s184, %s185
    %p199 = scmp.eq.s32.totalorder %s20, 1
    %p200 = por %p198, %p199
    %p202 = scmp.ne.s32.totalorder %s185, %s201
    %p203 = scmp.eq.s32.totalorder %s20, 0
    %p204 = por %p202, %p203
    %p205 = scmp.le.s32.totalorder 1, %s14
    %p206 = scmp.lt.s32.totalorder %s14, 3
    %p207 = pnand %p205, %p206
    %p208 = pneg %p207
    // Predicated region
    $region9: #{discriminator_forward.7} parent=5 // pred_check
      _
    $region10: #{discriminator_forward.7} parent=5 // pred_check_branch
      %210 = sbr.rel (%p207) target = $region12
    $region11: #{discriminator_forward.7} parent=5 // pred_region
      %s211 = ssub.s32 %s14, 1
      // Predicated region
      $region13: #{discriminator_forward.7} parent=11 // pred_check
        %p212 = pneg %p61
      $region14: #{discriminator_forward.7} parent=11 // pred_check_branch
        %214 = sbr.rel (%p212) target = $region16
      $region15: #{discriminator_forward.7} parent=11 // pred_region
        _
      $region16: #{discriminator_forward.7} parent=11 // pred_fallthru
        _
      // Predicated region
      $region17: #{discriminator_forward.7} parent=11 // pred_check
        %p215 = pneg %p82
      $region18: #{discriminator_forward.7} parent=11 // pred_check_branch
        %217 = sbr.rel (%p215) target = $region20
      $region19: #{discriminator_forward.7} parent=11 // pred_region
        _
      $region20: #{discriminator_forward.7} parent=11 // pred_fallthru
        _
      // Predicated region
      $region21: #{discriminator_forward.7} parent=11 // pred_check
        %p218 = pneg %p103
      $region22: #{discriminator_forward.7} parent=11 // pred_check_branch
        %220 = sbr.rel (%p218) target = $region24
      $region23: #{discriminator_forward.7} parent=11 // pred_region
        _
      $region24: #{discriminator_forward.7} parent=11 // pred_fallthru
        _
      // Predicated region
      $region25: #{discriminator_forward.7} parent=11 // pred_check
        %p221 = pneg %p124
      $region26: #{discriminator_forward.7} parent=11 // pred_check_branch
        %223 = sbr.rel (%p221) target = $region28
      $region27: #{discriminator_forward.7} parent=11 // pred_region
        _
      $region28: #{discriminator_forward.7} parent=11 // pred_fallthru
        _
      // Predicated region
      $region29: #{discriminator_forward.7} parent=11 // pred_check
        %p224 = pneg %p145
      $region30: #{discriminator_forward.7} parent=11 // pred_check_branch
        %226 = sbr.rel (%p224) target = $region32
      $region31: #{discriminator_forward.7} parent=11 // pred_region
        _
      $region32: #{discriminator_forward.7} parent=11 // pred_fallthru
        _
    $region12: #{discriminator_forward.7} parent=5 // pred_fallthru
      _
    %p227 = scmp.lt.s32.totalorder %s14, 2
    // Predicated region
    $region33: #{discriminator_forward.7} parent=5 // pred_check
      %p228 = pneg %p227
    $region34: #{discriminator_forward.7} parent=5 // pred_check_branch
      %230 = sbr.rel (%p228) target = $region36
    $region35: #{discriminator_forward.7} parent=5 // pred_region
      // Predicated region
      $region37: #{discriminator_forward.7} parent=35 // pred_check
        %p231 = pneg %p34
      $region38: #{discriminator_forward.7} parent=35 // pred_check_branch
        %233 = sbr.rel (%p231) target = $region40
      $region39: #{discriminator_forward.7} parent=35 // pred_region
        %p234 = scmp.lt.s32.totalorder %s14, 1
        %s235 = scalar_select %p234, %s14, 1
        %s236 = smul.addr %s235, 3
        %s237 = smul.addr %s236, 4
        %s238 = scalar_lea.vmem %s0, %s237
      $region40: #{discriminator_forward.7} parent=35 // pred_fallthru
        _
    $region36: #{discriminator_forward.7} parent=5 // pred_fallthru
      _
    %p239 = scmp.le.s32.totalorder 1, %s14
    %p240 = scmp.lt.s32.totalorder %s14, 3
    %p241 = pnand %p239, %p240
    %p242 = pneg %p241
    // Predicated region
    $region41: #{discriminator_forward.7} parent=5 // pred_check
      _
    $region42: #{discriminator_forward.7} parent=5 // pred_check_branch
      %244 = sbr.rel (%p241) target = $region44
    $region43: #{discriminator_forward.7} parent=5 // pred_region
      %s245 = ssub.s32 %s14, 1
      %p246 = scmp.lt.s32.totalorder %s19, 1
      %s247 = scalar_select %p246, %s19, 1
      %s248 = smul.addr %s247, 3
      %s249 = smul.addr %s248, 4
      %s250 = scalar_lea.vmem %s0, %s249
      %p251 = pneg %p40
      %p252 = pneg %p37
      %p253 = pneg %p61
      %p254 = pneg %p58
      %p255 = pneg %p82
      %p256 = pneg %p79
      %p257 = pneg %p103
      %p258 = pneg %p100
      %p259 = pneg %p124
      %p260 = pneg %p121
      %p261 = pneg %p145
      %p262 = pneg %p142
      %p263 = pneg %p171
      %p264 = pneg %p168
      %p265 = scmp.lt.s32.totalorder %s19, 1
      %s266 = scalar_select %p265, %s19, 1
      %s267 = smul.addr %s266, 3
      %s268 = smul.addr %s267, 4
      %s269 = scalar_lea.vmem %s6, %s268
      %p270 = pneg %p197
      %p271 = pneg %p194
      %p272 = scmp.lt.s32.totalorder %s19, 1
      %s273 = scalar_select %p272, %s19, 1
      %s274 = smul.addr %s273, 8
      %s275 = scalar_lea.vmem %s7, %s274
      %p276 = scmp.lt.s32.totalorder %s19, 1
      %s277 = scalar_select %p276, %s19, 1
      %s278 = smul.addr %s277, 3
      %s279 = smul.addr %s278, 4
      %s280 = scalar_lea.vmem %s0, %s279
      %p281 = scmp.lt.s32.totalorder %s19, 1
      %s282 = scalar_select %p281, %s19, 1
      %s283 = smul.addr %s282, 3
      %s284 = smul.addr %s283, 4
      %s285 = scalar_lea.vmem %s6, %s284
      %p286 = scmp.lt.s32.totalorder %s19, 1
      %s287 = scalar_select %p286, %s19, 1
      %s288 = smul.addr %s287, 8
      %s289 = scalar_lea.vmem %s7, %s288
      %v291 = vld [vmem:[%s5] sm:$0x7]
      %v292 = vld [vmem:[%s280] sm:$0xff]
      %v293 = vld [vmem:[%s280 + $0x8] sm:$0xf]
      %v294 = vunpack.c.l.bf16 %v292
      %v295 = vunpack.c.h.bf16 %v292
      %v296 = vunpack.c.l.bf16 %v293
      %v297 = vld [vmem:[%s2] sm:$0xff]
      %s298 = scalar_lea.vmem %s2, 8
      %v299 = vld [vmem:[%s298] sm:$0xff]
      %v300 = vadd.f32 %v297, %v299
      %v301 = vld [vmem:[%s3] sm:$0xff]
      %v302 = vld [vmem:[%s4] sm:$0xff]
      %v303 = vmul.f32 %v300, 0.001953125
      %v304 = vmul.f32 %v303, %v303
      %306 = vrot.lane.b32.xlu0 %v304, 1
      %v307 = vpop.permute.xlu0 %306
      %v309 = vsub.f32 %v303, %v307
      %v310 = vmax.f32 %v309, 0.0
      %v311 = vadd.f32 %v310, 1e-05
      %v312 = vrsqrt.pop %v311
      %v313 = vmul.f32 %v312, %v311
      %v314 = vmul.f32 %v313, %v312
      %v315 = vmul.f32 0.5, %v314
      %v316 = vsub.f32 1.5, %v315
      %v317 = vmul.f32 %v312, %v316
      %vm318 = vweird.f32 %v311
      %vm319 = vweird.f32 %v312
      %vm320 = vmor %vm318, %vm319
      %v321 = vsel %vm320, %v312, %v317
      %323 = vrot.lane.b32.xlu0 %v321, 127
      %v324 = vpop.permute.xlu0 %323
      %v326 = vmul.f32 %v301, %v324
      %v327 = vmul.f32 %v303, %v326
      %v328 = vsub.f32 %v302, %v327
      %330 = vset.pattern.permute.xlu0 0
      %331 = vperm.xlu0 %330, %v326
      %v332 = vpop.permute.xlu0 %331
      %v334 = vmul.f32 %v294, %v332
      %v335 = vmul.f32 %v295, %v332
      %v336 = vmul.f32 %v296, %v332
      %338 = vset.pattern.permute.xlu0 0
      %339 = vperm.xlu0 %338, %v328
      %v340 = vpop.permute.xlu0 %339
      %v342 = vadd.f32 %v334, %v340
      %v343 = vadd.f32 %v335, %v340
      %v344 = vadd.f32 %v336, %v340
      %vm345 = vcmp.ge.f32.partialorder %v342, 0.0
      %vm346 = vcmp.ge.f32.partialorder %v343, 0.0
      %vm347 = vcmp.ge.f32.partialorder %v344, 0.0
      %v348 = vmul.f32 %v342, 0.01
      %v349 = vmul.f32 %v343, 0.01
      %v350 = vmul.f32 %v344, 0.01
      %v351 = vsel %vm345, %v342, %v348
      %v352 = vsel %vm346, %v343, %v349
      %v353 = vsel %vm347, %v344, %v350
      %v355 = vperm.slane %v291, 0
      %v356 = vperm.slane %v291, 1
      %v357 = vperm.slane %v291, 2
      %v361 = vmul.f32 %v351, %v355
      %v362 = vmul.f32 %v352, %v356
      %v363 = vmul.f32 %v353, %v357
      %v364 = vpack.c.bf16 %v362, %v361
      %v365 = vpack.c.bf16 %v363, %v363
      %366 = vst [vmem:[#allocation2] sm:$0xff] %v364
      %vm367 = vcmask 240640
      %368 = vst.msk [vmem:[#allocation2 + $0x8] sm:$0xf] %vm367, %v365
      %371 = vrot.lane.b32.xlu0 %v364, 127
      %v372 = vpop.permute.xlu0 %371
      %373 = vrot.lane.b32.xlu0 %v365, 127
      %v374 = vpop.permute.xlu0 %373
      %v375 = vrot.slane %v372, 4
      %v376 = vrot.slane %v374, 4
      %vm377 = vcmask 1043456
      %v378 = vsel %vm377, %v375, %v376
      %vm379 = vcmask 1039360
      %v380 = vsel %vm379, %v372, %v378
      %383 = vst [vmem:[#allocation2 + $0xc] sm:$0xff] %v380
      %384 = vst.msk [vmem:[#allocation2 + $0x14] sm:$0xf] %vm367, %v374
      %385 = vrot.lane.b32.xlu0 %v364, 126
      %v386 = vpop.permute.xlu0 %385
      %387 = vrot.lane.b32.xlu0 %v365, 126
      %v388 = vpop.permute.xlu0 %387
      %v389 = vrot.slane %v386, 4
      %v390 = vrot.slane %v388, 4
      %v391 = vsel %vm377, %v389, %v390
      %vm392 = vcmask 1031168
      %v393 = vsel %vm392, %v386, %v391
      %396 = vst [vmem:[#allocation2 + $0x18] sm:$0xff] %v393
      %397 = vst.msk [vmem:[#allocation2 + $0x20] sm:$0xf] %vm367, %v388
      %398 = vrot.lane.b32.xlu0 %v364, 110
      %v399 = vpop.permute.xlu0 %398
      %400 = vrot.lane.b32.xlu0 %v365, 110
      %v401 = vpop.permute.xlu0 %400
      %v402 = vrot.slane %v399, 4
      %v403 = vrot.slane %v401, 4
      %v404 = vsel %vm377, %v402, %v403
      %vm405 = vcmask 900096
      %v406 = vsel %vm405, %v399, %v404
      %409 = vst [vmem:[#allocation2 + $0x24] sm:$0xff] %v406
      %410 = vst.msk [vmem:[#allocation2 + $0x2c] sm:$0xf] %vm367, %v401
      %411 = vrot.lane.b32.xlu0 %v364, 109
      %v412 = vpop.permute.xlu0 %411
      %413 = vrot.lane.b32.xlu0 %v365, 109
      %v414 = vpop.permute.xlu0 %413
      %v415 = vrot.slane %v412, 4
      %v416 = vrot.slane %v414, 4
      %v417 = vsel %vm377, %v415, %v416
      %vm418 = vcmask 891904
      %v419 = vsel %vm418, %v412, %v417
      %422 = vst [vmem:[#allocation2 + $0x30] sm:$0xff] %v419
      %423 = vst.msk [vmem:[#allocation2 + $0x38] sm:$0xf] %vm367, %v414
      %424 = vrot.lane.b32.xlu0 %v364, 108
      %v425 = vpop.permute.xlu0 %424
      %426 = vrot.lane.b32.xlu0 %v365, 108
      %v427 = vpop.permute.xlu0 %426
      %v428 = vrot.slane %v425, 4
      %v429 = vrot.slane %v427, 4
      %v430 = vsel %vm377, %v428, %v429
      %vm431 = vcmask 883712
      %v432 = vsel %vm431, %v425, %v430
      %435 = vst [vmem:[#allocation2 + $0x3c] sm:$0xff] %v432
      %436 = vst.msk [vmem:[#allocation2 + $0x44] sm:$0xf] %vm367, %v427
      %437 = vrot.lane.b32.xlu0 %v364, 92
      %v438 = vpop.permute.xlu0 %437
      %439 = vrot.lane.b32.xlu0 %v365, 92
      %v440 = vpop.permute.xlu0 %439
      %v441 = vrot.slane %v438, 4
      %v442 = vrot.slane %v440, 4
      %v443 = vsel %vm377, %v441, %v442
      %vm444 = vcmask 752640
      %v445 = vsel %vm444, %v438, %v443
      %448 = vst [vmem:[#allocation2 + $0x48] sm:$0xff] %v445
      %449 = vst.msk [vmem:[#allocation2 + $0x50] sm:$0xf] %vm367, %v440
      %450 = vrot.lane.b32.xlu0 %v364, 91
      %v451 = vpop.permute.xlu0 %450
      %452 = vrot.lane.b32.xlu0 %v365, 91
      %v453 = vpop.permute.xlu0 %452
      %v454 = vrot.slane %v451, 4
      %v455 = vrot.slane %v453, 4
      %v456 = vsel %vm377, %v454, %v455
      %vm457 = vcmask 744448
      %v458 = vsel %vm457, %v451, %v456
      %461 = vst [vmem:[#allocation2 + $0x54] sm:$0xff] %v458
      %462 = vst.msk [vmem:[#allocation2 + $0x5c] sm:$0xf] %vm367, %v453
      %463 = vrot.lane.b32.xlu0 %v364, 90
      %v464 = vpop.permute.xlu0 %463
      %465 = vrot.lane.b32.xlu0 %v365, 90
      %v466 = vpop.permute.xlu0 %465
      %v467 = vrot.slane %v464, 4
      %v468 = vrot.slane %v466, 4
      %v469 = vsel %vm377, %v467, %v468
      %vm470 = vcmask 736256
      %v471 = vsel %vm470, %v464, %v469
      %474 = vst [vmem:[#allocation2 + $0x60] sm:$0xff] %v471
      %475 = vst.msk [vmem:[#allocation2 + $0x68] sm:$0xf] %vm367, %v466
      %v476 = vld [vmem:[%s1] sm:$0xf]
      %v477 = vld [vmem:[#allocation2] sm:$0xff]
      %v478 = vld [vmem:[#allocation2 + $0x8] sm:$0xf]
      %v479 = vld [vmem:[#allocation2 + $0xc] sm:$0xff]
      %v480 = vld [vmem:[#allocation2 + $0x14] sm:$0xf]
      %v481 = vld [vmem:[#allocation2 + $0x18] sm:$0xff]
      %v482 = vld [vmem:[#allocation2 + $0x20] sm:$0xf]
      %v483 = vld [vmem:[#allocation2 + $0x24] sm:$0xff]
      %v484 = vld [vmem:[#allocation2 + $0x2c] sm:$0xf]
      %v485 = vld [vmem:[#allocation2 + $0x30] sm:$0xff]
      %v486 = vld [vmem:[#allocation2 + $0x38] sm:$0xf]
      %v487 = vld [vmem:[#allocation2 + $0x3c] sm:$0xff]
      %v488 = vld [vmem:[#allocation2 + $0x44] sm:$0xf]
      %v489 = vld [vmem:[#allocation2 + $0x48] sm:$0xff]
      %v490 = vld [vmem:[#allocation2 + $0x50] sm:$0xf]
      %v491 = vld [vmem:[#allocation2 + $0x54] sm:$0xff]
      %v492 = vld [vmem:[#allocation2 + $0x5c] sm:$0xf]
      %v493 = vld [vmem:[#allocation2 + $0x60] sm:$0xff]
      %v494 = vld [vmem:[#allocation2 + $0x68] sm:$0xf]
      %v513 = vunpack.c.l.b16 %v477
      %v514 = vunpack.c.h.b16 %v477
      %v515 = vunpack.c.l.b16 %v478
      %v516 = vunpack.c.l.b16 %v479
      %v517 = vunpack.c.h.b16 %v479
      %v518 = vunpack.c.l.b16 %v480
      %v519 = vunpack.c.l.b16 %v481
      %v520 = vunpack.c.h.b16 %v481
      %v521 = vunpack.c.l.b16 %v482
      %v522 = vunpack.c.l.b16 %v483
      %v523 = vunpack.c.h.b16 %v483
      %v524 = vunpack.c.l.b16 %v484
      %v525 = vunpack.c.l.b16 %v485
      %v526 = vunpack.c.h.b16 %v485
      %v527 = vunpack.c.l.b16 %v486
      %v528 = vunpack.c.l.b16 %v487
      %v529 = vunpack.c.h.b16 %v487
      %v530 = vunpack.c.l.b16 %v488
      %v531 = vunpack.c.l.b16 %v489
      %v532 = vunpack.c.h.b16 %v489
      %v533 = vunpack.c.l.b16 %v490
      %v534 = vunpack.c.l.b16 %v491
      %v535 = vunpack.c.h.b16 %v491
      %v536 = vunpack.c.l.b16 %v492
      %v537 = vunpack.c.l.b16 %v493
      %v538 = vunpack.c.h.b16 %v493
      %v539 = vunpack.c.l.b16 %v494
      %v540 = vpack.c.b16 %v516, %v513
      %v541 = vpack.c.b16 %v517, %v514
      %v542 = vpack.c.b16 %v518, %v515
      %v543 = vpack.c.b16 %v522, %v519
      %v544 = vpack.c.b16 %v523, %v520
      %v545 = vpack.c.b16 %v524, %v521
      %v546 = vpack.c.b16 %v528, %v525
      %v547 = vpack.c.b16 %v529, %v526
      %v548 = vpack.c.b16 %v530, %v527
      %v549 = vpack.c.b16 %v534, %v531
      %v550 = vpack.c.b16 %v535, %v532
      %v551 = vpack.c.b16 %v536, %v533
      %v552 = vpack.c.b16 %v537, %v537
      %v553 = vpack.c.b16 %v538, %v538
      %v554 = vpack.c.b16 %v539, %v539
      %vm567 = vcmask 588800
      %v569 = vsel %vm567, %v476, 0
      %vm571 = vcmask 1043456
      %v573 = vsel %vm571, %v552, 0
      %v576 = vsel %vm571, %v553, 0
      %v579 = vsel %vm571, %v554, 0
      %581 = vmatpush.bf16.msra.mxu0 0
      %582 = vmatpush.bf16.msra.mxu0 0
      %583 = vmatpush.bf16.msra.mxu0 0
      %584 = vmatpush.bf16.msra.mxu0 %v573
      %585 = vmatpush.bf16.msra.mxu0 %v549
      %586 = vmatpush.bf16.msra.mxu0 %v546
      %587 = vmatpush.bf16.msra.mxu0 %v543
      %588 = vmatpush.bf16.msra.mxu0 %v540
      %589 = vmatmul.bf16.gmra.mxu0 %v569
      %v590 = vpop.f32.mrf.mxu0
      %v591 = vadd.f32 0.0, %v590
      %v592 = vpop.f32.mrf.mxu0
      %593 = vdwg.mxu0
      %594 = vmatpush.bf16.msra.mxu0 0
      %595 = vmatpush.bf16.msra.mxu0 0
      %596 = vmatpush.bf16.msra.mxu0 0
      %597 = vmatpush.bf16.msra.mxu0 %v576
      %598 = vmatpush.bf16.msra.mxu0 %v550
      %599 = vmatpush.bf16.msra.mxu0 %v547
      %600 = vmatpush.bf16.msra.mxu0 %v544
      %601 = vmatpush.bf16.msra.mxu0 %v541
      %602 = vmatmul.bf16.gmra.mxu0 %v569
      %v603 = vpop.f32.mrf.mxu0
      %v604 = vadd.f32 0.0, %v603
      %v605 = vpop.f32.mrf.mxu0
      %606 = vdwg.mxu0
      %607 = vmatpush.bf16.msra.mxu0 0
      %608 = vmatpush.bf16.msra.mxu0 0
      %609 = vmatpush.bf16.msra.mxu0 0
      %610 = vmatpush.bf16.msra.mxu0 %v579
      %611 = vmatpush.bf16.msra.mxu0 %v551
      %612 = vmatpush.bf16.msra.mxu0 %v548
      %613 = vmatpush.bf16.msra.mxu0 %v545
      %614 = vmatpush.bf16.msra.mxu0 %v542
      %615 = vmatmul.bf16.gmra.mxu0 %v569
      %v616 = vpop.f32.mrf.mxu0
      %v617 = vadd.f32 0.0, %v616
      %v618 = vpop.f32.mrf.mxu0
      %619 = vdwg.mxu0
      %620 = vrot.lane.b32.xlu0 %v355, 109
      %v621 = vpop.permute.xlu0 %620
      %622 = vrot.lane.b32.xlu0 %v356, 109
      %v623 = vpop.permute.xlu0 %622
      %624 = vrot.lane.b32.xlu0 %v357, 109
      %v625 = vpop.permute.xlu0 %624
      %vm626 = vcmask 891904
      %v627 = vsel %vm626, %v621, %v623
      %v628 = vsel %vm626, %v623, %v625
      %v632 = vmul.f32 %v591, %v627
      %v633 = vmul.f32 %v604, %v628
      %v634 = vmul.f32 %v617, %v625
      %v635 = vadd.f32 %v632, %v633
      %vm636 = vcmask 244736
      %v637 = vsel %vm636, %v634, 0.0
      %v638 = vadd.f32 %v635, %v637
      %639 = vadd.xlane.f32.xlu0 %v638
      %v640 = vpop.xlane.xlu0 %639
      %vm641 = vcmask 7168
      %642 = vst.msk [vmem:[%s289] sm:$0xff] %vm641, %v640
      %v643 = vmul.f32 %v632, %v632
      %v644 = vmul.f32 %v633, %v633
      %v645 = vmul.f32 %v634, %v634
      %v646 = vadd.f32 %v643, %v644
      %v647 = vsel %vm636, %v645, 0.0
      %v648 = vadd.f32 %v646, %v647
      %649 = vadd.xlane.f32.xlu0 %v648
      %v650 = vpop.xlane.xlu0 %649
      %vm651 = vcmask 15368
      %652 = vst.msk [vmem:[%s289] sm:$0xff] %vm651, %v650
      %v653 = vpack.c.bf16 %v633, %v632
      %v654 = vpack.c.bf16 %v634, %v634
      %vm655 = vcmask 150528
      %656 = vst.msk [vmem:[%s285] sm:$0xf] %vm655, 0
      %659 = vrot.lane.b32.xlu0 %v653, 19
      %v660 = vpop.permute.xlu0 %659
      %661 = vrot.lane.b32.xlu0 %v654, 19
      %v662 = vpop.permute.xlu0 %661
      %v663 = vrot.slane %v660, 4
      %vm664 = vcmask 154624
      %v665 = vsel %vm664, %v663, %v660
      %v666 = vsel %vm664, %v663, %v662
      %vm669 = vcmask 1043608
      %vm670 = vcmask 1047556
      %vm671 = vmor %vm670, %vm669
      %672 = vst.msk [vmem:[%s285] sm:$0xff] %vm671, %v665
      %vm673 = vcmask 396288
      %674 = vst.msk [vmem:[%s285 + $0x8] sm:$0xf] %vm673, %v666
      %vm675 = vcmask 1043848
      %676 = vst.msk [vmem:[%s285 + $0x8] sm:$0xf] %vm675, 0
      %p677 = scmp.lt.s32.totalorder %s19, 1
      %s678 = scalar_select %p677, %s19, 1
      %s679 = smul.addr %s678, 3
      %s680 = smul.addr %s679, 4
      %s681 = scalar_lea.vmem %s6, %s680
      %p682 = scmp.lt.s32.totalorder %s19, 1
      %s683 = scalar_select %p682, %s19, 1
      %s684 = smul.addr %s683, 8
      %s685 = scalar_lea.vmem %s7, %s684
      // Predicated region
      $region45: #{discriminator_forward.7} parent=43 // pred_check
        %p686 = pneg %p168
      $region46: #{discriminator_forward.7} parent=43 // pred_check_branch
        %688 = sbr.rel (%p686) target = $region48
      $region47: #{discriminator_forward.7} parent=43 // pred_region
        _
      $region48: #{discriminator_forward.7} parent=43 // pred_fallthru
        _
      // Predicated region
      $region49: #{discriminator_forward.7} parent=43 // pred_check
        %p689 = pneg %p194
      $region50: #{discriminator_forward.7} parent=43 // pred_check_branch
        %691 = sbr.rel (%p689) target = $region52
      $region51: #{discriminator_forward.7} parent=43 // pred_region
        _
      $region52: #{discriminator_forward.7} parent=43 // pred_fallthru
        _
    $region44: #{discriminator_forward.7} parent=5 // pred_fallthru
      _
    %p692 = scmp.le.s32.totalorder 2, %s14
    // Predicated region
    $region53: #{discriminator_forward.7} parent=5 // pred_check
      %p693 = pneg %p692
    $region54: #{discriminator_forward.7} parent=5 // pred_check_branch
      %695 = sbr.rel (%p693) target = $region56
    $region55: #{discriminator_forward.7} parent=5 // pred_region
      %s696 = ssub.s32 %s14, 2
      // Predicated region
      $region57: #{discriminator_forward.7} parent=55 // pred_check
        %p697 = pneg %p174
      $region58: #{discriminator_forward.7} parent=55 // pred_check_branch
        %699 = sbr.rel (%p697) target = $region60
      $region59: #{discriminator_forward.7} parent=55 // pred_region
        %p700 = scmp.lt.s32.totalorder %s20, 1
        %s701 = scalar_select %p700, %s20, 1
        %s702 = smul.addr %s701, 3
        %s703 = smul.addr %s702, 4
        %s704 = scalar_lea.vmem %s6, %s703
      $region60: #{discriminator_forward.7} parent=55 // pred_fallthru
        _
      // Predicated region
      $region61: #{discriminator_forward.7} parent=55 // pred_check
        %p705 = pneg %p200
      $region62: #{discriminator_forward.7} parent=55 // pred_check_branch
        %707 = sbr.rel (%p705) target = $region64
      $region63: #{discriminator_forward.7} parent=55 // pred_region
        %p708 = scmp.lt.s32.totalorder %s20, 1
        %s709 = scalar_select %p708, %s20, 1
        %s710 = smul.addr %s709, 8
        %s711 = scalar_lea.vmem %s7, %s710
      $region64: #{discriminator_forward.7} parent=55 // pred_fallthru
        _
    $region56: #{discriminator_forward.7} parent=5 // pred_fallthru
      _
  $region6: #{discriminator_forward.7} parent=0 // loop_footer
    %s18 = sadd.s32 1, %s14
  $region7: #{discriminator_forward.7} parent=0 // loop_footer_branch
    %13 = sbr.rel target = $region3
  $region8: #{discriminator_forward.7} parent=0 // loop_exit
    _

// kernel: discriminator_forward.8
$region0: #{discriminator_forward.8}
  #allocation0 [shape = 'u32[]', space=smem, size = 0x4, offset = 0x4, fixed_abs, tag = 'smem constant byte address 0x4 - core index']
  #allocation1 [shape = 'u32[72,128]{1,0:T(1,128)}', space=vmem, size = 0x9000, scoped, tag = 'internal scratch']
  #allocation2 [shape = 'bf16[144,286]{1,0:T(8,128)(2,1)}', space=vmem, size = 0x1b000, scoped, tag = 'scratch operand']
  %s0 = inlined_call_operand.vmem [shape: bf16[2,8,384], index: 0, kind: input, shape index: {}]
  %s1 = inlined_call_operand.vmem [shape: bf16[2,8,384], index: 1, kind: input, shape index: {}]
  %s2 = inlined_call_operand.vmem [shape: bf16[8,144], index: 2, kind: input, shape index: {}]
  %s3 = inlined_call_operand.vmem [shape: f32[2,8,2], index: 3, kind: input, shape index: {}]
  %s4 = inlined_call_operand.vmem [shape: f32[8,1], index: 4, kind: input, shape index: {}]
  %s5 = inlined_call_operand.vmem [shape: f32[8,1], index: 5, kind: input, shape index: {}]
  %s6 = inlined_call_operand.vmem [shape: f32[2,8,2], index: 6, kind: input, shape index: {}]
  %s7 = inlined_call_operand.vmem [shape: f32[8,1], index: 7, kind: input, shape index: {}]
  %s8 = inlined_call_operand.vmem [shape: f32[8,1], index: 8, kind: input, shape index: {}]
  %s9 = inlined_call_operand.vmem [shape: f32[1,384], index: 9, kind: input, shape index: {}]
  %s10 = inlined_call_operand.vmem [shape: bf16[2,8,384], index: 10, kind: output, shape index: {0}]
  %s11 = inlined_call_operand.vmem [shape: f32[2,8,2], index: 11, kind: output, shape index: {1}]
  %12 = xla_tuple %s10, %s11
  %s13 = sld [smem:[#allocation0]]
  $region81: #{discriminator_forward.8} parent=0
    _
  %s15 = ssub.s32 1, %s13
  %s16 = scalar_select 0, %s15, %s13
  loop: start=0, step=1, limit=4
  $region2: #{discriminator_forward.8} parent=0 // loop_pre_header
    _
  $region3: #{discriminator_forward.8} parent=0 // loop_header
    %s18 = sphi 0, %s22
    %p19 = scmp.ge.s32.totalorder %s18, 4
    %s28 = sphi 0, %s30
    %s31 = sphi 0, %s28
    %s32 = sphi 0, %s31
    %s48 = sphi 0, %s32
    %s54 = sphi 0, %s56
    %s57 = sphi 0, %s54
    %s58 = sphi 0, %s57
    %s74 = sphi 0, %s58
    %s78 = sphi 0, %s78
    %s80 = sphi 0, %s78
    %s81 = sphi 0, %s80
    %s95 = sphi 0, %s81
    %s99 = sphi 0, %s99
    %s101 = sphi 0, %s99
    %s102 = sphi 0, %s101
    %s116 = sphi 0, %s102
    %s120 = sphi 0, %s120
    %s122 = sphi 0, %s120
    %s123 = sphi 0, %s122
    %s137 = sphi 0, %s123
    %s141 = sphi 0, %s141
    %s143 = sphi 0, %s141
    %s144 = sphi 0, %s143
    %s158 = sphi 0, %s144
    %s162 = sphi 0, %s162
    %s164 = sphi 0, %s162
    %s165 = sphi 0, %s164
    %s179 = sphi 0, %s165
    %s183 = sphi 0, %s183
    %s185 = sphi 0, %s183
    %s186 = sphi 0, %s185
    %s200 = sphi 0, %s186
    %s204 = sphi 0, %s204
    %s206 = sphi 0, %s204
    %s207 = sphi 0, %s206
    %s221 = sphi 0, %s207
    %s225 = sphi 0, %s225
    %s227 = sphi 0, %s225
    %s228 = sphi 0, %s227
    %s242 = sphi 0, %s228
    %s248 = sphi 0, %s250
    %s251 = sphi 0, %s248
    %s252 = sphi 0, %s251
    %s268 = sphi 0, %s252
    %s274 = sphi 0, %s276
    %s277 = sphi 0, %s274
    %s278 = sphi 0, %s277
    %s294 = sphi 0, %s278
  $region4: #{discriminator_forward.8} parent=0 // loop_header_branch
    %21 = sbr.rel (%p19) target = $region8
  $region5: #{discriminator_forward.8} parent=0 // loop_body
    %s23 = ssub.s32 %s18, 1
    %s24 = ssub.s32 %s18, 2
    %s25 = sadd.s32 %s18, 1
    %s26 = ssub.s32 %s18, %s25
    %p27 = scmp.eq.s32.totalorder %s26, 0
    %s29 = sadd.s32 %s28, 1
    %s30 = scalar_select %p27, %s28, %s29
    %p33 = pneg %p27
    %p34 = scmp.eq.s32.totalorder %s18, 1
    %p35 = por %p33, %p34
    %p36 = scmp.ne.s32.totalorder %s28, %s31
    %p37 = scmp.eq.s32.totalorder %s18, 0
    %p38 = por %p36, %p37
    %p39 = scmp.ne.s32.totalorder %s28, %s31
    %p40 = scmp.eq.s32.totalorder %s23, 1
    %p41 = por %p39, %p40
    %p42 = scmp.ne.s32.totalorder %s31, %s32
    %p43 = scmp.eq.s32.totalorder %s23, 0
    %p44 = por %p42, %p43
    %p45 = scmp.ne.s32.totalorder %s31, %s32
    %p46 = scmp.eq.s32.totalorder %s24, 1
    %p47 = por %p45, %p46
    %p49 = scmp.ne.s32.totalorder %s32, %s48
    %p50 = scmp.eq.s32.totalorder %s24, 0
    %p51 = por %p49, %p50
    %s52 = ssub.s32 %s18, %s25
    %p53 = scmp.eq.s32.totalorder %s52, 0
    %s55 = sadd.s32 %s54, 1
    %s56 = scalar_select %p53, %s54, %s55
    %p59 = pneg %p53
    %p60 = scmp.eq.s32.totalorder %s18, 1
    %p61 = por %p59, %p60
    %p62 = scmp.ne.s32.totalorder %s54, %s57
    %p63 = scmp.eq.s32.totalorder %s18, 0
    %p64 = por %p62, %p63
    %p65 = scmp.ne.s32.totalorder %s54, %s57
    %p66 = scmp.eq.s32.totalorder %s23, 1
    %p67 = por %p65, %p66
    %p68 = scmp.ne.s32.totalorder %s57, %s58
    %p69 = scmp.eq.s32.totalorder %s23, 0
    %p70 = por %p68, %p69
    %p71 = scmp.ne.s32.totalorder %s57, %s58
    %p72 = scmp.eq.s32.totalorder %s24, 1
    %p73 = por %p71, %p72
    %p75 = scmp.ne.s32.totalorder %s58, %s74
    %p76 = scmp.eq.s32.totalorder %s24, 0
    %p77 = por %p75, %p76
    %s79 = sadd.s32 %s78, 1
    %p82 = scmp.eq.s32.totalorder %s18, 1
    %p83 = scmp.ne.s32.totalorder %s78, %s80
    %p84 = scmp.eq.s32.totalorder %s18, 0
    %p85 = por %p83, %p84
    %p86 = scmp.ne.s32.totalorder %s78, %s80
    %p87 = scmp.eq.s32.totalorder %s23, 1
    %p88 = por %p86, %p87
    %p89 = scmp.ne.s32.totalorder %s80, %s81
    %p90 = scmp.eq.s32.totalorder %s23, 0
    %p91 = por %p89, %p90
    %p92 = scmp.ne.s32.totalorder %s80, %s81
    %p93 = scmp.eq.s32.totalorder %s24, 1
    %p94 = por %p92, %p93
    %p96 = scmp.ne.s32.totalorder %s81, %s95
    %p97 = scmp.eq.s32.totalorder %s24, 0
    %p98 = por %p96, %p97
    %s100 = sadd.s32 %s99, 1
    %p103 = scmp.eq.s32.totalorder %s18, 1
    %p104 = scmp.ne.s32.totalorder %s99, %s101
    %p105 = scmp.eq.s32.totalorder %s18, 0
    %p106 = por %p104, %p105
    %p107 = scmp.ne.s32.totalorder %s99, %s101
    %p108 = scmp.eq.s32.totalorder %s23, 1
    %p109 = por %p107, %p108
    %p110 = scmp.ne.s32.totalorder %s101, %s102
    %p111 = scmp.eq.s32.totalorder %s23, 0
    %p112 = por %p110, %p111
    %p113 = scmp.ne.s32.totalorder %s101, %s102
    %p114 = scmp.eq.s32.totalorder %s24, 1
    %p115 = por %p113, %p114
    %p117 = scmp.ne.s32.totalorder %s102, %s116
    %p118 = scmp.eq.s32.totalorder %s24, 0
    %p119 = por %p117, %p118
    %s121 = sadd.s32 %s120, 1
    %p124 = scmp.eq.s32.totalorder %s18, 1
    %p125 = scmp.ne.s32.totalorder %s120, %s122
    %p126 = scmp.eq.s32.totalorder %s18, 0
    %p127 = por %p125, %p126
    %p128 = scmp.ne.s32.totalorder %s120, %s122
    %p129 = scmp.eq.s32.totalorder %s23, 1
    %p130 = por %p128, %p129
    %p131 = scmp.ne.s32.totalorder %s122, %s123
    %p132 = scmp.eq.s32.totalorder %s23, 0
    %p133 = por %p131, %p132
    %p134 = scmp.ne.s32.totalorder %s122, %s123
    %p135 = scmp.eq.s32.totalorder %s24, 1
    %p136 = por %p134, %p135
    %p138 = scmp.ne.s32.totalorder %s123, %s137
    %p139 = scmp.eq.s32.totalorder %s24, 0
    %p140 = por %p138, %p139
    %s142 = sadd.s32 %s141, 1
    %p145 = scmp.eq.s32.totalorder %s18, 1
    %p146 = scmp.ne.s32.totalorder %s141, %s143
    %p147 = scmp.eq.s32.totalorder %s18, 0
    %p148 = por %p146, %p147
    %p149 = scmp.ne.s32.totalorder %s141, %s143
    %p150 = scmp.eq.s32.totalorder %s23, 1
    %p151 = por %p149, %p150
    %p152 = scmp.ne.s32.totalorder %s143, %s144
    %p153 = scmp.eq.s32.totalorder %s23, 0
    %p154 = por %p152, %p153
    %p155 = scmp.ne.s32.totalorder %s143, %s144
    %p156 = scmp.eq.s32.totalorder %s24, 1
    %p157 = por %p155, %p156
    %p159 = scmp.ne.s32.totalorder %s144, %s158
    %p160 = scmp.eq.s32.totalorder %s24, 0
    %p161 = por %p159, %p160
    %s163 = sadd.s32 %s162, 1
    %p166 = scmp.eq.s32.totalorder %s18, 1
    %p167 = scmp.ne.s32.totalorder %s162, %s164
    %p168 = scmp.eq.s32.totalorder %s18, 0
    %p169 = por %p167, %p168
    %p170 = scmp.ne.s32.totalorder %s162, %s164
    %p171 = scmp.eq.s32.totalorder %s23, 1
    %p172 = por %p170, %p171
    %p173 = scmp.ne.s32.totalorder %s164, %s165
    %p174 = scmp.eq.s32.totalorder %s23, 0
    %p175 = por %p173, %p174
    %p176 = scmp.ne.s32.totalorder %s164, %s165
    %p177 = scmp.eq.s32.totalorder %s24, 1
    %p178 = por %p176, %p177
    %p180 = scmp.ne.s32.totalorder %s165, %s179
    %p181 = scmp.eq.s32.totalorder %s24, 0
    %p182 = por %p180, %p181
    %s184 = sadd.s32 %s183, 1
    %p187 = scmp.eq.s32.totalorder %s18, 1
    %p188 = scmp.ne.s32.totalorder %s183, %s185
    %p189 = scmp.eq.s32.totalorder %s18, 0
    %p190 = por %p188, %p189
    %p191 = scmp.ne.s32.totalorder %s183, %s185
    %p192 = scmp.eq.s32.totalorder %s23, 1
    %p193 = por %p191, %p192
    %p194 = scmp.ne.s32.totalorder %s185, %s186
    %p195 = scmp.eq.s32.totalorder %s23, 0
    %p196 = por %p194, %p195
    %p197 = scmp.ne.s32.totalorder %s185, %s186
    %p198 = scmp.eq.s32.totalorder %s24, 1
    %p199 = por %p197, %p198
    %p201 = scmp.ne.s32.totalorder %s186, %s200
    %p202 = scmp.eq.s32.totalorder %s24, 0
    %p203 = por %p201, %p202
    %s205 = sadd.s32 %s204, 1
    %p208 = scmp.eq.s32.totalorder %s18, 1
    %p209 = scmp.ne.s32.totalorder %s204, %s206
    %p210 = scmp.eq.s32.totalorder %s18, 0
    %p211 = por %p209, %p210
    %p212 = scmp.ne.s32.totalorder %s204, %s206
    %p213 = scmp.eq.s32.totalorder %s23, 1
    %p214 = por %p212, %p213
    %p215 = scmp.ne.s32.totalorder %s206, %s207
    %p216 = scmp.eq.s32.totalorder %s23, 0
    %p217 = por %p215, %p216
    %p218 = scmp.ne.s32.totalorder %s206, %s207
    %p219 = scmp.eq.s32.totalorder %s24, 1
    %p220 = por %p218, %p219
    %p222 = scmp.ne.s32.totalorder %s207, %s221
    %p223 = scmp.eq.s32.totalorder %s24, 0
    %p224 = por %p222, %p223
    %s226 = sadd.s32 %s225, 1
    %p229 = scmp.eq.s32.totalorder %s18, 1
    %p230 = scmp.ne.s32.totalorder %s225, %s227
    %p231 = scmp.eq.s32.totalorder %s18, 0
    %p232 = por %p230, %p231
    %p233 = scmp.ne.s32.totalorder %s225, %s227
    %p234 = scmp.eq.s32.totalorder %s23, 1
    %p235 = por %p233, %p234
    %p236 = scmp.ne.s32.totalorder %s227, %s228
    %p237 = scmp.eq.s32.totalorder %s23, 0
    %p238 = por %p236, %p237
    %p239 = scmp.ne.s32.totalorder %s227, %s228
    %p240 = scmp.eq.s32.totalorder %s24, 1
    %p241 = por %p239, %p240
    %p243 = scmp.ne.s32.totalorder %s228, %s242
    %p244 = scmp.eq.s32.totalorder %s24, 0
    %p245 = por %p243, %p244
    %s246 = ssub.s32 %s18, %s25
    %p247 = scmp.eq.s32.totalorder %s246, 0
    %s249 = sadd.s32 %s248, 1
    %s250 = scalar_select %p247, %s248, %s249
    %p253 = pneg %p247
    %p254 = scmp.eq.s32.totalorder %s18, 1
    %p255 = por %p253, %p254
    %p256 = scmp.ne.s32.totalorder %s248, %s251
    %p257 = scmp.eq.s32.totalorder %s18, 0
    %p258 = por %p256, %p257
    %p259 = scmp.ne.s32.totalorder %s248, %s251
    %p260 = scmp.eq.s32.totalorder %s23, 1
    %p261 = por %p259, %p260
    %p262 = scmp.ne.s32.totalorder %s251, %s252
    %p263 = scmp.eq.s32.totalorder %s23, 0
    %p264 = por %p262, %p263
    %p265 = scmp.ne.s32.totalorder %s251, %s252
    %p266 = scmp.eq.s32.totalorder %s24, 1
    %p267 = por %p265, %p266
    %p269 = scmp.ne.s32.totalorder %s252, %s268
    %p270 = scmp.eq.s32.totalorder %s24, 0
    %p271 = por %p269, %p270
    %s272 = ssub.s32 %s18, %s25
    %p273 = scmp.eq.s32.totalorder %s272, 0
    %s275 = sadd.s32 %s274, 1
    %s276 = scalar_select %p273, %s274, %s275
    %p279 = pneg %p273
    %p280 = scmp.eq.s32.totalorder %s18, 1
    %p281 = por %p279, %p280
    %p282 = scmp.ne.s32.totalorder %s274, %s277
    %p283 = scmp.eq.s32.totalorder %s18, 0
    %p284 = por %p282, %p283
    %p285 = scmp.ne.s32.totalorder %s274, %s277
    %p286 = scmp.eq.s32.totalorder %s23, 1
    %p287 = por %p285, %p286
    %p288 = scmp.ne.s32.totalorder %s277, %s278
    %p289 = scmp.eq.s32.totalorder %s23, 0
    %p290 = por %p288, %p289
    %p291 = scmp.ne.s32.totalorder %s277, %s278
    %p292 = scmp.eq.s32.totalorder %s24, 1
    %p293 = por %p291, %p292
    %p295 = scmp.ne.s32.totalorder %s278, %s294
    %p296 = scmp.eq.s32.totalorder %s24, 0
    %p297 = por %p295, %p296
    %p298 = scmp.le.s32.totalorder 1, %s18
    %p299 = scmp.lt.s32.totalorder %s18, 3
    %p300 = pnand %p298, %p299
    %p301 = pneg %p300
    // Predicated region
    $region9: #{discriminator_forward.8} parent=5 // pred_check
      _
    $region10: #{discriminator_forward.8} parent=5 // pred_check_branch
      %303 = sbr.rel (%p300) target = $region12
    $region11: #{discriminator_forward.8} parent=5 // pred_region
      %s304 = ssub.s32 %s18, 1
      // Predicated region
      $region13: #{discriminator_forward.8} parent=11 // pred_check
        %p305 = pneg %p91
      $region14: #{discriminator_forward.8} parent=11 // pred_check_branch
        %307 = sbr.rel (%p305) target = $region16
      $region15: #{discriminator_forward.8} parent=11 // pred_region
        _
      $region16: #{discriminator_forward.8} parent=11 // pred_fallthru
        _
      // Predicated region
      $region17: #{discriminator_forward.8} parent=11 // pred_check
        %p308 = pneg %p112
      $region18: #{discriminator_forward.8} parent=11 // pred_check_branch
        %310 = sbr.rel (%p308) target = $region20
      $region19: #{discriminator_forward.8} parent=11 // pred_region
        _
      $region20: #{discriminator_forward.8} parent=11 // pred_fallthru
        _
      // Predicated region
      $region21: #{discriminator_forward.8} parent=11 // pred_check
        %p311 = pneg %p133
      $region22: #{discriminator_forward.8} parent=11 // pred_check_branch
        %313 = sbr.rel (%p311) target = $region24
      $region23: #{discriminator_forward.8} parent=11 // pred_region
        _
      $region24: #{discriminator_forward.8} parent=11 // pred_fallthru
        _
      // Predicated region
      $region25: #{discriminator_forward.8} parent=11 // pred_check
        %p314 = pneg %p154
      $region26: #{discriminator_forward.8} parent=11 // pred_check_branch
        %316 = sbr.rel (%p314) target = $region28
      $region27: #{discriminator_forward.8} parent=11 // pred_region
        _
      $region28: #{discriminator_forward.8} parent=11 // pred_fallthru
        _
      // Predicated region
      $region29: #{discriminator_forward.8} parent=11 // pred_check
        %p317 = pneg %p175
      $region30: #{discriminator_forward.8} parent=11 // pred_check_branch
        %319 = sbr.rel (%p317) target = $region32
      $region31: #{discriminator_forward.8} parent=11 // pred_region
        _
      $region32: #{discriminator_forward.8} parent=11 // pred_fallthru
        _
      // Predicated region
      $region33: #{discriminator_forward.8} parent=11 // pred_check
        %p320 = pneg %p196
      $region34: #{discriminator_forward.8} parent=11 // pred_check_branch
        %322 = sbr.rel (%p320) target = $region36
      $region35: #{discriminator_forward.8} parent=11 // pred_region
        _
      $region36: #{discriminator_forward.8} parent=11 // pred_fallthru
        _
      // Predicated region
      $region37: #{discriminator_forward.8} parent=11 // pred_check
        %p323 = pneg %p217
      $region38: #{discriminator_forward.8} parent=11 // pred_check_branch
        %325 = sbr.rel (%p323) target = $region40
      $region39: #{discriminator_forward.8} parent=11 // pred_region
        _
      $region40: #{discriminator_forward.8} parent=11 // pred_fallthru
        _
      // Predicated region
      $region41: #{discriminator_forward.8} parent=11 // pred_check
        %p326 = pneg %p238
      $region42: #{discriminator_forward.8} parent=11 // pred_check_branch
        %328 = sbr.rel (%p326) target = $region44
      $region43: #{discriminator_forward.8} parent=11 // pred_region
        _
      $region44: #{discriminator_forward.8} parent=11 // pred_fallthru
        _
    $region12: #{discriminator_forward.8} parent=5 // pred_fallthru
      _
    %p329 = scmp.lt.s32.totalorder %s18, 2
    // Predicated region
    $region45: #{discriminator_forward.8} parent=5 // pred_check
      %p330 = pneg %p329
    $region46: #{discriminator_forward.8} parent=5 // pred_check_branch
      %332 = sbr.rel (%p330) target = $region48
    $region47: #{discriminator_forward.8} parent=5 // pred_region
      // Predicated region
      $region49: #{discriminator_forward.8} parent=47 // pred_check
        %p333 = pneg %p38
      $region50: #{discriminator_forward.8} parent=47 // pred_check_branch
        %335 = sbr.rel (%p333) target = $region52
      $region51: #{discriminator_forward.8} parent=47 // pred_region
        %p336 = scmp.lt.s32.totalorder %s18, 1
        %s337 = scalar_select %p336, %s18, 1
        %s338 = smul.addr %s337, 3
        %s339 = smul.addr %s338, 4
        %s340 = scalar_lea.vmem %s0, %s339
      $region52: #{discriminator_forward.8} parent=47 // pred_fallthru
        _
      // Predicated region
      $region53: #{discriminator_forward.8} parent=47 // pred_check
        %p341 = pneg %p64
      $region54: #{discriminator_forward.8} parent=47 // pred_check_branch
        %343 = sbr.rel (%p341) target = $region56
      $region55: #{discriminator_forward.8} parent=47 // pred_region
        %p344 = scmp.lt.s32.totalorder %s18, 1
        %s345 = scalar_select %p344, %s18, 1
        %s346 = smul.addr %s345, 3
        %s347 = smul.addr %s346, 4
        %s348 = scalar_lea.vmem %s1, %s347
      $region56: #{discriminator_forward.8} parent=47 // pred_fallthru
        _
    $region48: #{discriminator_forward.8} parent=5 // pred_fallthru
      _
    %p349 = scmp.le.s32.totalorder 1, %s18
    %p350 = scmp.lt.s32.totalorder %s18, 3
    %p351 = pnand %p349, %p350
    %p352 = pneg %p351
    // Predicated region
    $region57: #{discriminator_forward.8} parent=5 // pred_check
      _
    $region58: #{discriminator_forward.8} parent=5 // pred_check_branch
      %354 = sbr.rel (%p351) target = $region60
    $region59: #{discriminator_forward.8} parent=5 // pred_region
      %s355 = ssub.s32 %s18, 1
      %p356 = scmp.lt.s32.totalorder %s23, 1
      %s357 = scalar_select %p356, %s23, 1
      %s358 = smul.addr %s357, 3
      %s359 = smul.addr %s358, 4
      %s360 = scalar_lea.vmem %s0, %s359
      %p361 = pneg %p44
      %p362 = pneg %p41
      %p363 = scmp.lt.s32.totalorder %s23, 1
      %s364 = scalar_select %p363, %s23, 1
      %s365 = smul.addr %s364, 3
      %s366 = smul.addr %s365, 4
      %s367 = scalar_lea.vmem %s1, %s366
      %p368 = pneg %p70
      %p369 = pneg %p67
      %p370 = pneg %p91
      %p371 = pneg %p88
      %p372 = pneg %p112
      %p373 = pneg %p109
      %p374 = pneg %p133
      %p375 = pneg %p130
      %p376 = pneg %p154
      %p377 = pneg %p151
      %p378 = pneg %p175
      %p379 = pneg %p172
      %p380 = pneg %p196
      %p381 = pneg %p193
      %p382 = pneg %p217
      %p383 = pneg %p214
      %p384 = pneg %p238
      %p385 = pneg %p235
      %p386 = pneg %p264
      %p387 = pneg %p261
      %p388 = scmp.lt.s32.totalorder %s23, 1
      %s389 = scalar_select %p388, %s23, 1
      %s390 = smul.addr %s389, 3
      %s391 = smul.addr %s390, 4
      %s392 = scalar_lea.vmem %s10, %s391
      %p393 = pneg %p290
      %p394 = pneg %p287
      %p395 = scmp.lt.s32.totalorder %s23, 1
      %s396 = scalar_select %p395, %s23, 1
      %s397 = smul.addr %s396, 8
      %s398 = scalar_lea.vmem %s11, %s397
      %p399 = scmp.lt.s32.totalorder %s23, 1
      %s400 = scalar_select %p399, %s23, 1
      %s401 = smul.addr %s400, 3
      %s402 = smul.addr %s401, 4
      %s403 = scalar_lea.vmem %s0, %s402
      %p404 = scmp.lt.s32.totalorder %s23, 1
      %s405 = scalar_select %p404, %s23, 1
      %s406 = smul.addr %s405, 3
      %s407 = smul.addr %s406, 4
      %s408 = scalar_lea.vmem %s1, %s407
      %p409 = scmp.lt.s32.totalorder %s23, 1
      %s410 = scalar_select %p409, %s23, 1
      %s411 = smul.addr %s410, 3
      %s412 = smul.addr %s411, 4
      %s413 = scalar_lea.vmem %s10, %s412
      %p414 = scmp.lt.s32.totalorder %s23, 1
      %s415 = scalar_select %p414, %s23, 1
      %s416 = smul.addr %s415, 8
      %s417 = scalar_lea.vmem %s11, %s416
      %v419 = vld [vmem:[%s9] sm:$0x7]
      %v420 = vld [vmem:[%s403] sm:$0xff]
      %v421 = vld [vmem:[%s403 + $0x8] sm:$0xf]
      %v422 = vunpack.c.l.bf16 %v420
      %v423 = vunpack.c.h.bf16 %v420
      %v424 = vunpack.c.l.bf16 %v421
      %v425 = vld [vmem:[%s3] sm:$0xff]
      %s426 = scalar_lea.vmem %s3, 8
      %v427 = vld [vmem:[%s426] sm:$0xff]
      %v428 = vadd.f32 %v425, %v427
      %v429 = vld [vmem:[%s4] sm:$0xff]
      %v430 = vld [vmem:[%s5] sm:$0xff]
      %v431 = vmul.f32 %v428, 0.001953125
      %v432 = vmul.f32 %v431, %v431
      %434 = vrot.lane.b32.xlu0 %v432, 1
      %v435 = vpop.permute.xlu0 %434
      %v437 = vsub.f32 %v431, %v435
      %v438 = vmax.f32 %v437, 0.0
      %v439 = vadd.f32 %v438, 1e-05
      %v440 = vrsqrt.pop %v439
      %v441 = vmul.f32 %v440, %v439
      %v442 = vmul.f32 %v441, %v440
      %v443 = vmul.f32 0.5, %v442
      %v444 = vsub.f32 1.5, %v443
      %v445 = vmul.f32 %v440, %v444
      %vm446 = vweird.f32 %v439
      %vm447 = vweird.f32 %v440
      %vm448 = vmor %vm446, %vm447
      %v449 = vsel %vm448, %v440, %v445
      %451 = vrot.lane.b32.xlu0 %v449, 127
      %v452 = vpop.permute.xlu0 %451
      %v454 = vmul.f32 %v429, %v452
      %v455 = vmul.f32 %v431, %v454
      %v456 = vsub.f32 %v430, %v455
      %458 = vset.pattern.permute.xlu0 0
      %459 = vperm.xlu0 %458, %v454
      %v460 = vpop.permute.xlu0 %459
      %v462 = vmul.f32 %v422, %v460
      %v463 = vmul.f32 %v423, %v460
      %v464 = vmul.f32 %v424, %v460
      %466 = vset.pattern.permute.xlu0 0
      %467 = vperm.xlu0 %466, %v456
      %v468 = vpop.permute.xlu0 %467
      %v470 = vadd.f32 %v462, %v468
      %v471 = vadd.f32 %v463, %v468
      %v472 = vadd.f32 %v464, %v468
      %vm473 = vcmp.ge.f32.partialorder %v470, 0.0
      %vm474 = vcmp.ge.f32.partialorder %v471, 0.0
      %vm475 = vcmp.ge.f32.partialorder %v472, 0.0
      %v476 = vmul.f32 %v470, 0.01
      %v477 = vmul.f32 %v471, 0.01
      %v478 = vmul.f32 %v472, 0.01
      %v479 = vsel %vm473, %v470, %v476
      %v480 = vsel %vm474, %v471, %v477
      %v481 = vsel %vm475, %v472, %v478
      %v483 = vperm.slane %v419, 0
      %v484 = vperm.slane %v419, 1
      %v485 = vperm.slane %v419, 2
      %v489 = vmul.f32 %v479, %v483
      %v490 = vmul.f32 %v480, %v484
      %v491 = vmul.f32 %v481, %v485
      %v492 = vpack.c.bf16 %v490, %v489
      %v493 = vpack.c.bf16 %v491, %v491
      %494 = vst [vmem:[#allocation2] sm:$0xff] %v492
      %vm495 = vcmask 240640
      %496 = vst.msk [vmem:[#allocation2 + $0x8] sm:$0xf] %vm495, %v493
      %499 = vrot.lane.b32.xlu0 %v492, 127
      %v500 = vpop.permute.xlu0 %499
      %501 = vrot.lane.b32.xlu0 %v493, 127
      %v502 = vpop.permute.xlu0 %501
      %v503 = vrot.slane %v500, 4
      %v504 = vrot.slane %v502, 4
      %vm505 = vcmask 1043456
      %v506 = vsel %vm505, %v503, %v504
      %vm507 = vcmask 1039360
      %v508 = vsel %vm507, %v500, %v506
      %511 = vst [vmem:[#allocation2 + $0xc] sm:$0xff] %v508
      %512 = vst.msk [vmem:[#allocation2 + $0x14] sm:$0xf] %vm495, %v502
      %513 = vrot.lane.b32.xlu0 %v492, 126
      %v514 = vpop.permute.xlu0 %513
      %515 = vrot.lane.b32.xlu0 %v493, 126
      %v516 = vpop.permute.xlu0 %515
      %v517 = vrot.slane %v514, 4
      %v518 = vrot.slane %v516, 4
      %v519 = vsel %vm505, %v517, %v518
      %vm520 = vcmask 1031168
      %v521 = vsel %vm520, %v514, %v519
      %524 = vst [vmem:[#allocation2 + $0x18] sm:$0xff] %v521
      %525 = vst.msk [vmem:[#allocation2 + $0x20] sm:$0xf] %vm495, %v516
      %526 = vrot.lane.b32.xlu0 %v492, 110
      %v527 = vpop.permute.xlu0 %526
      %528 = vrot.lane.b32.xlu0 %v493, 110
      %v529 = vpop.permute.xlu0 %528
      %v530 = vrot.slane %v527, 4
      %v531 = vrot.slane %v529, 4
      %v532 = vsel %vm505, %v530, %v531
      %vm533 = vcmask 900096
      %v534 = vsel %vm533, %v527, %v532
      %537 = vst [vmem:[#allocation2 + $0x24] sm:$0xff] %v534
      %538 = vst.msk [vmem:[#allocation2 + $0x2c] sm:$0xf] %vm495, %v529
      %539 = vrot.lane.b32.xlu0 %v492, 109
      %v540 = vpop.permute.xlu0 %539
      %541 = vrot.lane.b32.xlu0 %v493, 109
      %v542 = vpop.permute.xlu0 %541
      %v543 = vrot.slane %v540, 4
      %v544 = vrot.slane %v542, 4
      %v545 = vsel %vm505, %v543, %v544
      %vm546 = vcmask 891904
      %v547 = vsel %vm546, %v540, %v545
      %550 = vst [vmem:[#allocation2 + $0x30] sm:$0xff] %v547
      %551 = vst.msk [vmem:[#allocation2 + $0x38] sm:$0xf] %vm495, %v542
      %552 = vrot.lane.b32.xlu0 %v492, 108
      %v553 = vpop.permute.xlu0 %552
      %554 = vrot.lane.b32.xlu0 %v493, 108
      %v555 = vpop.permute.xlu0 %554
      %v556 = vrot.slane %v553, 4
      %v557 = vrot.slane %v555, 4
      %v558 = vsel %vm505, %v556, %v557
      %vm559 = vcmask 883712
      %v560 = vsel %vm559, %v553, %v558
      %563 = vst [vmem:[#allocation2 + $0x3c] sm:$0xff] %v560
      %564 = vst.msk [vmem:[#allocation2 + $0x44] sm:$0xf] %vm495, %v555
      %565 = vrot.lane.b32.xlu0 %v492, 92
      %v566 = vpop.permute.xlu0 %565
      %567 = vrot.lane.b32.xlu0 %v493, 92
      %v568 = vpop.permute.xlu0 %567
      %v569 = vrot.slane %v566, 4
      %v570 = vrot.slane %v568, 4
      %v571 = vsel %vm505, %v569, %v570
      %vm572 = vcmask 752640
      %v573 = vsel %vm572, %v566, %v571
      %576 = vst [vmem:[#allocation2 + $0x48] sm:$0xff] %v573
      %577 = vst.msk [vmem:[#allocation2 + $0x50] sm:$0xf] %vm495, %v568
      %578 = vrot.lane.b32.xlu0 %v492, 91
      %v579 = vpop.permute.xlu0 %578
      %580 = vrot.lane.b32.xlu0 %v493, 91
      %v581 = vpop.permute.xlu0 %580
      %v582 = vrot.slane %v579, 4
      %v583 = vrot.slane %v581, 4
      %v584 = vsel %vm505, %v582, %v583
      %vm585 = vcmask 744448
      %v586 = vsel %vm585, %v579, %v584
      %589 = vst [vmem:[#allocation2 + $0x54] sm:$0xff] %v586
      %590 = vst.msk [vmem:[#allocation2 + $0x5c] sm:$0xf] %vm495, %v581
      %591 = vrot.lane.b32.xlu0 %v492, 90
      %v592 = vpop.permute.xlu0 %591
      %593 = vrot.lane.b32.xlu0 %v493, 90
      %v594 = vpop.permute.xlu0 %593
      %v595 = vrot.slane %v592, 4
      %v596 = vrot.slane %v594, 4
      %v597 = vsel %vm505, %v595, %v596
      %vm598 = vcmask 736256
      %v599 = vsel %vm598, %v592, %v597
      %602 = vst [vmem:[#allocation2 + $0x60] sm:$0xff] %v599
      %603 = vst.msk [vmem:[#allocation2 + $0x68] sm:$0xf] %vm495, %v594
      %v604 = vld [vmem:[%s408] sm:$0xff]
      %v605 = vld [vmem:[%s408 + $0x8] sm:$0xf]
      %v606 = vunpack.c.l.bf16 %v604
      %v607 = vunpack.c.h.bf16 %v604
      %v608 = vunpack.c.l.bf16 %v605
      %v609 = vld [vmem:[%s6] sm:$0xff]
      %s610 = scalar_lea.vmem %s6, 8
      %v611 = vld [vmem:[%s610] sm:$0xff]
      %v612 = vadd.f32 %v609, %v611
      %v613 = vld [vmem:[%s7] sm:$0xff]
      %v614 = vld [vmem:[%s8] sm:$0xff]
      %v615 = vmul.f32 %v612, 0.001953125
      %v616 = vmul.f32 %v615, %v615
      %618 = vrot.lane.b32.xlu0 %v616, 1
      %v619 = vpop.permute.xlu0 %618
      %v621 = vsub.f32 %v615, %v619
      %v622 = vmax.f32 %v621, 0.0
      %v623 = vadd.f32 %v622, 1e-05
      %v624 = vrsqrt.pop %v623
      %v625 = vmul.f32 %v624, %v623
      %v626 = vmul.f32 %v625, %v624
      %v627 = vmul.f32 0.5, %v626
      %v628 = vsub.f32 1.5, %v627
      %v629 = vmul.f32 %v624, %v628
      %vm630 = vweird.f32 %v623
      %vm631 = vweird.f32 %v624
      %vm632 = vmor %vm630, %vm631
      %v633 = vsel %vm632, %v624, %v629
      %635 = vrot.lane.b32.xlu0 %v633, 127
      %v636 = vpop.permute.xlu0 %635
      %v638 = vmul.f32 %v613, %v636
      %v639 = vmul.f32 %v615, %v638
      %v640 = vsub.f32 %v614, %v639
      %642 = vset.pattern.permute.xlu0 0
      %643 = vperm.xlu0 %642, %v638
      %v644 = vpop.permute.xlu0 %643
      %v646 = vmul.f32 %v606, %v644
      %v647 = vmul.f32 %v607, %v644
      %v648 = vmul.f32 %v608, %v644
      %650 = vset.pattern.permute.xlu0 0
      %651 = vperm.xlu0 %650, %v640
      %v652 = vpop.permute.xlu0 %651
      %v654 = vadd.f32 %v646, %v652
      %v655 = vadd.f32 %v647, %v652
      %v656 = vadd.f32 %v648, %v652
      %vm657 = vcmp.ge.f32.partialorder %v654, 0.0
      %vm658 = vcmp.ge.f32.partialorder %v655, 0.0
      %vm659 = vcmp.ge.f32.partialorder %v656, 0.0
      %v660 = vmul.f32 %v654, 0.01
      %v661 = vmul.f32 %v655, 0.01
      %v662 = vmul.f32 %v656, 0.01
      %v663 = vsel %vm657, %v654, %v660
      %v664 = vsel %vm658, %v655, %v661
      %v665 = vsel %vm659, %v656, %v662
      %v666 = vmul.f32 %v663, %v483
      %v667 = vmul.f32 %v664, %v484
      %v668 = vmul.f32 %v665, %v485
      %v669 = vpack.c.bf16 %v667, %v666
      %v670 = vpack.c.bf16 %v668, %v668
      %671 = vst [vmem:[#allocation2 + $0x6c] sm:$0xff] %v669
      %672 = vst.msk [vmem:[#allocation2 + $0x74] sm:$0xf] %vm495, %v670
      %675 = vrot.lane.b32.xlu0 %v669, 127
      %v676 = vpop.permute.xlu0 %675
      %677 = vrot.lane.b32.xlu0 %v670, 127
      %v678 = vpop.permute.xlu0 %677
      %v679 = vrot.slane %v676, 4
      %v680 = vrot.slane %v678, 4
      %v681 = vsel %vm505, %v679, %v680
      %v682 = vsel %vm507, %v676, %v681
      %685 = vst [vmem:[#allocation2 + $0x78] sm:$0xff] %v682
      %686 = vst.msk [vmem:[#allocation2 + $0x80] sm:$0xf] %vm495, %v678
      %687 = vrot.lane.b32.xlu0 %v669, 126
      %v688 = vpop.permute.xlu0 %687
      %689 = vrot.lane.b32.xlu0 %v670, 126
      %v690 = vpop.permute.xlu0 %689
      %v691 = vrot.slane %v688, 4
      %v692 = vrot.slane %v690, 4
      %v693 = vsel %vm505, %v691, %v692
      %v694 = vsel %vm520, %v688, %v693
      %697 = vst [vmem:[#allocation2 + $0x84] sm:$0xff] %v694
      %698 = vst.msk [vmem:[#allocation2 + $0x8c] sm:$0xf] %vm495, %v690
      %699 = vrot.lane.b32.xlu0 %v669, 110
      %v700 = vpop.permute.xlu0 %699
      %701 = vrot.lane.b32.xlu0 %v670, 110
      %v702 = vpop.permute.xlu0 %701
      %v703 = vrot.slane %v700, 4
      %v704 = vrot.slane %v702, 4
      %v705 = vsel %vm505, %v703, %v704
      %v706 = vsel %vm533, %v700, %v705
      %709 = vst [vmem:[#allocation2 + $0x90] sm:$0xff] %v706
      %710 = vst.msk [vmem:[#allocation2 + $0x98] sm:$0xf] %vm495, %v702
      %711 = vrot.lane.b32.xlu0 %v669, 109
      %v712 = vpop.permute.xlu0 %711
      %713 = vrot.lane.b32.xlu0 %v670, 109
      %v714 = vpop.permute.xlu0 %713
      %v715 = vrot.slane %v712, 4
      %v716 = vrot.slane %v714, 4
      %v717 = vsel %vm505, %v715, %v716
      %v718 = vsel %vm546, %v712, %v717
      %721 = vst [vmem:[#allocation2 + $0x9c] sm:$0xff] %v718
      %722 = vst.msk [vmem:[#allocation2 + $0xa4] sm:$0xf] %vm495, %v714
      %723 = vrot.lane.b32.xlu0 %v669, 108
      %v724 = vpop.permute.xlu0 %723
      %725 = vrot.lane.b32.xlu0 %v670, 108
      %v726 = vpop.permute.xlu0 %725
      %v727 = vrot.slane %v724, 4
      %v728 = vrot.slane %v726, 4
      %v729 = vsel %vm505, %v727, %v728
      %v730 = vsel %vm559, %v724, %v729
      %733 = vst [vmem:[#allocation2 + $0xa8] sm:$0xff] %v730
      %734 = vst.msk [vmem:[#allocation2 + $0xb0] sm:$0xf] %vm495, %v726
      %735 = vrot.lane.b32.xlu0 %v669, 92
      %v736 = vpop.permute.xlu0 %735
      %737 = vrot.lane.b32.xlu0 %v670, 92
      %v738 = vpop.permute.xlu0 %737
      %v739 = vrot.slane %v736, 4
      %v740 = vrot.slane %v738, 4
      %v741 = vsel %vm505, %v739, %v740
      %v742 = vsel %vm572, %v736, %v741
      %745 = vst [vmem:[#allocation2 + $0xb4] sm:$0xff] %v742
      %746 = vst.msk [vmem:[#allocation2 + $0xbc] sm:$0xf] %vm495, %v738
      %747 = vrot.lane.b32.xlu0 %v669, 91
      %v748 = vpop.permute.xlu0 %747
      %749 = vrot.lane.b32.xlu0 %v670, 91
      %v750 = vpop.permute.xlu0 %749
      %v751 = vrot.slane %v748, 4
      %v752 = vrot.slane %v750, 4
      %v753 = vsel %vm505, %v751, %v752
      %v754 = vsel %vm585, %v748, %v753
      %757 = vst [vmem:[#allocation2 + $0xc0] sm:$0xff] %v754
      %758 = vst.msk [vmem:[#allocation2 + $0xc8] sm:$0xf] %vm495, %v750
      %759 = vrot.lane.b32.xlu0 %v669, 90
      %v760 = vpop.permute.xlu0 %759
      %761 = vrot.lane.b32.xlu0 %v670, 90
      %v762 = vpop.permute.xlu0 %761
      %v763 = vrot.slane %v760, 4
      %v764 = vrot.slane %v762, 4
      %v765 = vsel %vm505, %v763, %v764
      %v766 = vsel %vm598, %v760, %v765
      %769 = vst [vmem:[#allocation2 + $0xcc] sm:$0xff] %v766
      %770 = vst.msk [vmem:[#allocation2 + $0xd4] sm:$0xf] %vm495, %v762
      %v771 = vld [vmem:[%s2] sm:$0xff]
      %v772 = vld [vmem:[#allocation2] sm:$0xff]
      %v773 = vld [vmem:[#allocation2 + $0x8] sm:$0xf]
      %v774 = vld [vmem:[#allocation2 + $0xc] sm:$0xff]
      %v775 = vld [vmem:[#allocation2 + $0x14] sm:$0xf]
      %v776 = vld [vmem:[#allocation2 + $0x18] sm:$0xff]
      %v777 = vld [vmem:[#allocation2 + $0x20] sm:$0xf]
      %v778 = vld [vmem:[#allocation2 + $0x24] sm:$0xff]
      %v779 = vld [vmem:[#allocation2 + $0x2c] sm:$0xf]
      %v780 = vld [vmem:[#allocation2 + $0x30] sm:$0xff]
      %v781 = vld [vmem:[#allocation2 + $0x38] sm:$0xf]
      %v782 = vld [vmem:[#allocation2 + $0x3c] sm:$0xff]
      %v783 = vld [vmem:[#allocation2 + $0x44] sm:$0xf]
      %v784 = vld [vmem:[#allocation2 + $0x48] sm:$0xff]
      %v785 = vld [vmem:[#allocation2 + $0x50] sm:$0xf]
      %v786 = vld [vmem:[#allocation2 + $0x54] sm:$0xff]
      %v787 = vld [vmem:[#allocation2 + $0x5c] sm:$0xf]
      %v788 = vld [vmem:[#allocation2 + $0x60] sm:$0xff]
      %v789 = vld [vmem:[#allocation2 + $0x68] sm:$0xf]
      %v790 = vld [vmem:[#allocation2 + $0x6c] sm:$0xff]
      %v791 = vld [vmem:[#allocation2 + $0x74] sm:$0xf]
      %v792 = vld [vmem:[#allocation2 + $0x78] sm:$0xff]
      %v793 = vld [vmem:[#allocation2 + $0x80] sm:$0xf]
      %v794 = vld [vmem:[#allocation2 + $0x84] sm:$0xff]
      %v795 = vld [vmem:[#allocation2 + $0x8c] sm:$0xf]
      %v796 = vld [vmem:[#allocation2 + $0x90] sm:$0xff]
      %v797 = vld [vmem:[#allocation2 + $0x98] sm:$0xf]
      %v798 = vld [vmem:[#allocation2 + $0x9c] sm:$0xff]
      %v799 = vld [vmem:[#allocation2 + $0xa4] sm:$0xf]
      %v800 = vld [vmem:[#allocation2 + $0xa8] sm:$0xff]
      %v801 = vld [vmem:[#allocation2 + $0xb0] sm:$0xf]
      %v802 = vld [vmem:[#allocation2 + $0xb4] sm:$0xff]
      %v803 = vld [vmem:[#allocation2 + $0xbc] sm:$0xf]
      %v804 = vld [vmem:[#allocation2 + $0xc0] sm:$0xff]
      %v805 = vld [vmem:[#allocation2 + $0xc8] sm:$0xf]
      %v806 = vld [vmem:[#allocation2 + $0xcc] sm:$0xff]
      %v807 = vld [vmem:[#allocation2 + $0xd4] sm:$0xf]
      %v809 = vunpack.c.l.b16 %v771
      %v810 = vunpack.c.h.b16 %v771
      %v811 = vpack.c.b16 %v809, %v809
      %v812 = vpack.c.b16 %v810, %v810
      %v850 = vunpack.c.l.b16 %v772
      %v851 = vunpack.c.h.b16 %v772
      %v852 = vunpack.c.l.b16 %v773
      %v853 = vunpack.c.l.b16 %v774
      %v854 = vunpack.c.h.b16 %v774
      %v855 = vunpack.c.l.b16 %v775
      %v856 = vunpack.c.l.b16 %v776
      %v857 = vunpack.c.h.b16 %v776
      %v858 = vunpack.c.l.b16 %v777
      %v859 = vunpack.c.l.b16 %v778
      %v860 = vunpack.c.h.b16 %v778
      %v861 = vunpack.c.l.b16 %v779
      %v862 = vunpack.c.l.b16 %v780
      %v863 = vunpack.c.h.b16 %v780
      %v864 = vunpack.c.l.b16 %v781
      %v865 = vunpack.c.l.b16 %v782
      %v866 = vunpack.c.h.b16 %v782
      %v867 = vunpack.c.l.b16 %v783
      %v868 = vunpack.c.l.b16 %v784
      %v869 = vunpack.c.h.b16 %v784
      %v870 = vunpack.c.l.b16 %v785
      %v871 = vunpack.c.l.b16 %v786
      %v872 = vunpack.c.h.b16 %v786
      %v873 = vunpack.c.l.b16 %v787
      %v874 = vunpack.c.l.b16 %v788
      %v875 = vunpack.c.h.b16 %v788
      %v876 = vunpack.c.l.b16 %v789
      %v877 = vunpack.c.l.b16 %v790
      %v878 = vunpack.c.h.b16 %v790
      %v879 = vunpack.c.l.b16 %v791
      %v880 = vunpack.c.l.b16 %v792
      %v881 = vunpack.c.h.b16 %v792
      %v882 = vunpack.c.l.b16 %v793
      %v883 = vunpack.c.l.b16 %v794
      %v884 = vunpack.c.h.b16 %v794
      %v885 = vunpack.c.l.b16 %v795
      %v886 = vunpack.c.l.b16 %v796
      %v887 = vunpack.c.h.b16 %v796
      %v888 = vunpack.c.l.b16 %v797
      %v889 = vunpack.c.l.b16 %v798
      %v890 = vunpack.c.h.b16 %v798
      %v891 = vunpack.c.l.b16 %v799
      %v892 = vunpack.c.l.b16 %v800
      %v893 = vunpack.c.h.b16 %v800
      %v894 = vunpack.c.l.b16 %v801
      %v895 = vunpack.c.l.b16 %v802
      %v896 = vunpack.c.h.b16 %v802
      %v897 = vunpack.c.l.b16 %v803
      %v898 = vunpack.c.l.b16 %v804
      %v899 = vunpack.c.h.b16 %v804
      %v900 = vunpack.c.l.b16 %v805
      %v901 = vunpack.c.l.b16 %v806
      %v902 = vunpack.c.h.b16 %v806
      %v903 = vunpack.c.l.b16 %v807
      %v904 = vpack.c.b16 %v853, %v850
      %v905 = vpack.c.b16 %v854, %v851
      %v906 = vpack.c.b16 %v855, %v852
      %v907 = vpack.c.b16 %v859, %v856
      %v908 = vpack.c.b16 %v860, %v857
      %v909 = vpack.c.b16 %v861, %v858
      %v910 = vpack.c.b16 %v865, %v862
      %v911 = vpack.c.b16 %v866, %v863
      %v912 = vpack.c.b16 %v867, %v864
      %v913 = vpack.c.b16 %v871, %v868
      %v914 = vpack.c.b16 %v872, %v869
      %v915 = vpack.c.b16 %v873, %v870
      %v916 = vpack.c.b16 %v877, %v874
      %v917 = vpack.c.b16 %v878, %v875
      %v918 = vpack.c.b16 %v879, %v876
      %v919 = vpack.c.b16 %v883, %v880
      %v920 = vpack.c.b16 %v884, %v881
      %v921 = vpack.c.b16 %v885, %v882
      %v922 = vpack.c.b16 %v889, %v886
      %v923 = vpack.c.b16 %v890, %v887
      %v924 = vpack.c.b16 %v891, %v888
      %v925 = vpack.c.b16 %v895, %v892
      %v926 = vpack.c.b16 %v896, %v893
      %v927 = vpack.c.b16 %v897, %v894
      %v928 = vpack.c.b16 %v901, %v898
      %v929 = vpack.c.b16 %v902, %v899
      %v930 = vpack.c.b16 %v903, %v900
      %vm958 = vcmask 130048
      %v960 = vsel %vm958, %v812, 0
      %962 = vmatpush.bf16.msra.mxu0 %v925
      %963 = vmatpush.bf16.msra.mxu0 %v922
      %964 = vmatpush.bf16.msra.mxu0 %v919
      %965 = vmatpush.bf16.msra.mxu0 %v916
      %966 = vmatpush.bf16.msra.mxu0 %v913
      %967 = vmatpush.bf16.msra.mxu0 %v910
      %968 = vmatpush.bf16.msra.mxu0 %v907
      %969 = vmatpush.bf16.msra.mxu0 %v904
      %970 = vmatmul.bf16.gmra.mxu0 %v811
      %v971 = vpop.f32.mrf.mxu0
      %v972 = vadd.f32 0.0, %v971
      %v973 = vpop.f32.mrf.mxu0
      %974 = vdwg.mxu0
      %975 = vmatpush.bf16.msra.mxu0 0
      %976 = vmatpush.bf16.msra.mxu0 0
      %977 = vmatpush.bf16.msra.mxu0 0
      %978 = vmatpush.bf16.msra.mxu0 0
      %979 = vmatpush.bf16.msra.mxu0 0
      %980 = vmatpush.bf16.msra.mxu0 0
      %981 = vmatpush.bf16.msra.mxu0 0
      %982 = vmatpush.bf16.msra.mxu0 %v928
      %983 = vmatmul.bf16.gmra.mxu0 %v960
      %v984 = vpop.f32.mrf.mxu0
      %v985 = vadd.f32 %v972, %v984
      %v986 = vpop.f32.mrf.mxu0
      %987 = vdwg.mxu0
      %988 = vmatpush.bf16.msra.mxu0 %v926
      %989 = vmatpush.bf16.msra.mxu0 %v923
      %990 = vmatpush.bf16.msra.mxu0 %v920
      %991 = vmatpush.bf16.msra.mxu0 %v917
      %992 = vmatpush.bf16.msra.mxu0 %v914
      %993 = vmatpush.bf16.msra.mxu0 %v911
      %994 = vmatpush.bf16.msra.mxu0 %v908
      %995 = vmatpush.bf16.msra.mxu0 %v905
      %996 = vmatmul.bf16.gmra.mxu0 %v811
      %v997 = vpop.f32.mrf.mxu0
      %v998 = vadd.f32 0.0, %v997
      %v999 = vpop.f32.mrf.mxu0
      %1000 = vdwg.mxu0
      %1001 = vmatpush.bf16.msra.mxu0 0
      %1002 = vmatpush.bf16.msra.mxu0 0
      %1003 = vmatpush.bf16.msra.mxu0 0
      %1004 = vmatpush.bf16.msra.mxu0 0
      %1005 = vmatpush.bf16.msra.mxu0 0
      %1006 = vmatpush.bf16.msra.mxu0 0
      %1007 = vmatpush.bf16.msra.mxu0 0
      %1008 = vmatpush.bf16.msra.mxu0 %v929
      %1009 = vmatmul.bf16.gmra.mxu0 %v960
      %v1010 = vpop.f32.mrf.mxu0
      %v1011 = vadd.f32 %v998, %v1010
      %v1012 = vpop.f32.mrf.mxu0
      %1013 = vdwg.mxu0
      %1014 = vmatpush.bf16.msra.mxu0 %v927
      %1015 = vmatpush.bf16.msra.mxu0 %v924
      %1016 = vmatpush.bf16.msra.mxu0 %v921
      %1017 = vmatpush.bf16.msra.mxu0 %v918
      %1018 = vmatpush.bf16.msra.mxu0 %v915
      %1019 = vmatpush.bf16.msra.mxu0 %v912
      %1020 = vmatpush.bf16.msra.mxu0 %v909
      %1021 = vmatpush.bf16.msra.mxu0 %v906
      %1022 = vmatmul.bf16.gmra.mxu0 %v811
      %v1023 = vpop.f32.mrf.mxu0
      %v1024 = vadd.f32 0.0, %v1023
      %v1025 = vpop.f32.mrf.mxu0
      %1026 = vdwg.mxu0
      %1027 = vmatpush.bf16.msra.mxu0 0
      %1028 = vmatpush.bf16.msra.mxu0 0
      %1029 = vmatpush.bf16.msra.mxu0 0
      %1030 = vmatpush.bf16.msra.mxu0 0
      %1031 = vmatpush.bf16.msra.mxu0 0
      %1032 = vmatpush.bf16.msra.mxu0 0
      %1033 = vmatpush.bf16.msra.mxu0 0
      %1034 = vmatpush.bf16.msra.mxu0 %v930
      %1035 = vmatmul.bf16.gmra.mxu0 %v960
      %v1036 = vpop.f32.mrf.mxu0
      %v1037 = vadd.f32 %v1024, %v1036
      %v1038 = vpop.f32.mrf.mxu0
      %1039 = vdwg.mxu0
      %1040 = vrot.lane.b32.xlu0 %v483, 109
      %v1041 = vpop.permute.xlu0 %1040
      %1042 = vrot.lane.b32.xlu0 %v484, 109
      %v1043 = vpop.permute.xlu0 %1042
      %1044 = vrot.lane.b32.xlu0 %v485, 109
      %v1045 = vpop.permute.xlu0 %1044
      %vm1046 = vcmask 891904
      %v1047 = vsel %vm1046, %v1041, %v1043
      %v1048 = vsel %vm1046, %v1043, %v1045
      %v1052 = vmul.f32 %v985, %v1047
      %v1053 = vmul.f32 %v1011, %v1048
      %v1054 = vmul.f32 %v1037, %v1045
      %v1055 = vadd.f32 %v1052, %v1053
      %vm1056 = vcmask 244736
      %v1057 = vsel %vm1056, %v1054, 0.0
      %v1058 = vadd.f32 %v1055, %v1057
      %1059 = vadd.xlane.f32.xlu0 %v1058
      %v1060 = vpop.xlane.xlu0 %1059
      %vm1061 = vcmask 7168
      %1062 = vst.msk [vmem:[%s417] sm:$0xff] %vm1061, %v1060
      %v1063 = vmul.f32 %v1052, %v1052
      %v1064 = vmul.f32 %v1053, %v1053
      %v1065 = vmul.f32 %v1054, %v1054
      %v1066 = vadd.f32 %v1063, %v1064
      %v1067 = vsel %vm1056, %v1065, 0.0
      %v1068 = vadd.f32 %v1066, %v1067
      %1069 = vadd.xlane.f32.xlu0 %v1068
      %v1070 = vpop.xlane.xlu0 %1069
      %vm1071 = vcmask 15368
      %1072 = vst.msk [vmem:[%s417] sm:$0xff] %vm1071, %v1070
      %v1073 = vpack.c.bf16 %v1053, %v1052
      %v1074 = vpack.c.bf16 %v1054, %v1054
      %vm1075 = vcmask 150528
      %1076 = vst.msk [vmem:[%s413] sm:$0xf] %vm1075, 0
      %1079 = vrot.lane.b32.xlu0 %v1073, 19
      %v1080 = vpop.permute.xlu0 %1079
      %1081 = vrot.lane.b32.xlu0 %v1074, 19
      %v1082 = vpop.permute.xlu0 %1081
      %v1083 = vrot.slane %v1080, 4
      %vm1084 = vcmask 154624
      %v1085 = vsel %vm1084, %v1083, %v1080
      %v1086 = vsel %vm1084, %v1083, %v1082
      %vm1089 = vcmask 1043608
      %vm1090 = vcmask 1047556
      %vm1091 = vmor %vm1090, %vm1089
      %1092 = vst.msk [vmem:[%s413] sm:$0xff] %vm1091, %v1085
      %vm1093 = vcmask 396288
      %1094 = vst.msk [vmem:[%s413 + $0x8] sm:$0xf] %vm1093, %v1086
      %vm1095 = vcmask 1043848
      %1096 = vst.msk [vmem:[%s413 + $0x8] sm:$0xf] %vm1095, 0
      %p1097 = scmp.lt.s32.totalorder %s23, 1
      %s1098 = scalar_select %p1097, %s23, 1
      %s1099 = smul.addr %s1098, 3
      %s1100 = smul.addr %s1099, 4
      %s1101 = scalar_lea.vmem %s10, %s1100
      %p1102 = scmp.lt.s32.totalorder %s23, 1
      %s1103 = scalar_select %p1102, %s23, 1
      %s1104 = smul.addr %s1103, 8
      %s1105 = scalar_lea.vmem %s11, %s1104
      // Predicated region
      $region61: #{discriminator_forward.8} parent=59 // pred_check
        %p1106 = pneg %p261
      $region62: #{discriminator_forward.8} parent=59 // pred_check_branch
        %1108 = sbr.rel (%p1106) target = $region64
      $region63: #{discriminator_forward.8} parent=59 // pred_region
        _
      $region64: #{discriminator_forward.8} parent=59 // pred_fallthru
        _
      // Predicated region
      $region65: #{discriminator_forward.8} parent=59 // pred_check
        %p1109 = pneg %p287
      $region66: #{discriminator_forward.8} parent=59 // pred_check_branch
        %1111 = sbr.rel (%p1109) target = $region68
      $region67: #{discriminator_forward.8} parent=59 // pred_region
        _
      $region68: #{discriminator_forward.8} parent=59 // pred_fallthru
        _
    $region60: #{discriminator_forward.8} parent=5 // pred_fallthru
      _
    %p1112 = scmp.le.s32.totalorder 2, %s18
    // Predicated region
    $region69: #{discriminator_forward.8} parent=5 // pred_check
      %p1113 = pneg %p1112
    $region70: #{discriminator_forward.8} parent=5 // pred_check_branch
      %1115 = sbr.rel (%p1113) target = $region72
    $region71: #{discriminator_forward.8} parent=5 // pred_region
      %s1116 = ssub.s32 %s18, 2
      // Predicated region
      $region73: #{discriminator_forward.8} parent=71 // pred_check
        %p1117 = pneg %p267
      $region74: #{discriminator_forward.8} parent=71 // pred_check_branch
        %1119 = sbr.rel (%p1117) target = $region76
      $region75: #{discriminator_forward.8} parent=71 // pred_region
        %p1120 = scmp.lt.s32.totalorder %s24, 1
        %s1121 = scalar_select %p1120, %s24, 1
        %s1122 = smul.addr %s1121, 3
        %s1123 = smul.addr %s1122, 4
        %s1124 = scalar_lea.vmem %s10, %s1123
      $region76: #{discriminator_forward.8} parent=71 // pred_fallthru
        _
      // Predicated region
      $region77: #{discriminator_forward.8} parent=71 // pred_check
        %p1125 = pneg %p293
      $region78: #{discriminator_forward.8} parent=71 // pred_check_branch
        %1127 = sbr.rel (%p1125) target = $region80
      $region79: #{discriminator_forward.8} parent=71 // pred_region
        %p1128 = scmp.lt.s32.totalorder %s24, 1
        %s1129 = scalar_select %p1128, %s24, 1
        %s1130 = smul.addr %s1129, 8
        %s1131 = scalar_lea.vmem %s11, %s1130
      $region80: #{discriminator_forward.8} parent=71 // pred_fallthru
        _
    $region72: #{discriminator_forward.8} parent=5 // pred_fallthru
      _
  $region6: #{discriminator_forward.8} parent=0 // loop_footer
    %s22 = sadd.s32 1, %s18
  $region7: #{discriminator_forward.8} parent=0 // loop_footer_branch
    %17 = sbr.rel target = $region3
  $region8: #{discriminator_forward.8} parent=0 // loop_exit
    _

// kernel: discriminator_forward.11
$region0: #{discriminator_forward.11}
  #allocation0 [shape = 'u32[]', space=smem, size = 0x4, offset = 0x4, fixed_abs, tag = 'smem constant byte address 0x4 - core index']
  #allocation1 [shape = 'u32[72,128]{1,0:T(1,128)}', space=vmem, size = 0x9000, scoped, tag = 'internal scratch']
  #allocation2 [shape = 'f32[1,1]{1,0:T(1,128)S(1)}', space=vmem, size = 0x200, scoped, tag = 'scoped memory for discriminator_forward.11']
  %s0 = inlined_call_operand.vmem [shape: bf16[2,8,384], index: 0, kind: input, shape index: {}]
  %s1 = inlined_call_operand.vmem [shape: f32[2,8,2], index: 1, kind: input, shape index: {}]
  %s2 = inlined_call_operand.vmem [shape: f32[8,1], index: 2, kind: input, shape index: {}]
  %s3 = inlined_call_operand.vmem [shape: f32[8,1], index: 3, kind: input, shape index: {}]
  %s4 = inlined_call_operand.vmem [shape: f32[1,384], index: 4, kind: input, shape index: {}]
  %s5 = inlined_call_operand.vmem [shape: f32[8,1], index: 5, kind: input, shape index: {}]
  %s6 = inlined_call_operand.<no memory space> [shape: f32[1,1], index: 6, kind: input, shape index: {}]
  %s7 = inlined_call_operand.vmem [shape: f32[2,1,1], index: 7, kind: output, shape index: {}]
  %s8 = sld [smem:[#allocation0]]
  $region61: #{discriminator_forward.11} parent=0
    _
  %s10 = ssub.s32 1, %s8
  %s11 = scalar_select 0, %s10, %s8
  %v12 = vstv %s6
  %13 = vst [vmem:[#allocation2] sm:$0x1] %v12
  loop: start=0, step=1, limit=4
  $region2: #{discriminator_forward.11} parent=0 // loop_pre_header
    _
  $region3: #{discriminator_forward.11} parent=0 // loop_header
    %s15 = sphi 0, %s19
    %p16 = scmp.ge.s32.totalorder %s15, 4
    %s25 = sphi 0, %s27
    %s28 = sphi 0, %s25
    %s29 = sphi 0, %s28
    %s45 = sphi 0, %s29
    %s49 = sphi 0, %s49
    %s51 = sphi 0, %s49
    %s52 = sphi 0, %s51
    %s66 = sphi 0, %s52
    %s70 = sphi 0, %s70
    %s72 = sphi 0, %s70
    %s73 = sphi 0, %s72
    %s87 = sphi 0, %s73
    %s91 = sphi 0, %s91
    %s93 = sphi 0, %s91
    %s94 = sphi 0, %s93
    %s108 = sphi 0, %s94
    %s112 = sphi 0, %s112
    %s114 = sphi 0, %s112
    %s115 = sphi 0, %s114
    %s129 = sphi 0, %s115
    %s133 = sphi 0, %s133
    %s135 = sphi 0, %s133
    %s136 = sphi 0, %s135
    %s150 = sphi 0, %s136
    %s154 = sphi 0, %s154
    %s156 = sphi 0, %s154
    %s157 = sphi 0, %s156
    %s171 = sphi 0, %s157
    %s177 = sphi 0, %s179
    %s180 = sphi 0, %s177
    %s181 = sphi 0, %s180
    %s197 = sphi 0, %s181
  $region4: #{discriminator_forward.11} parent=0 // loop_header_branch
    %18 = sbr.rel (%p16) target = $region8
  $region5: #{discriminator_forward.11} parent=0 // loop_body
    %s20 = ssub.s32 %s15, 1
    %s21 = ssub.s32 %s15, 2
    %s22 = sadd.s32 %s15, 1
    %s23 = ssub.s32 %s15, %s22
    %p24 = scmp.eq.s32.totalorder %s23, 0
    %s26 = sadd.s32 %s25, 1
    %s27 = scalar_select %p24, %s25, %s26
    %p30 = pneg %p24
    %p31 = scmp.eq.s32.totalorder %s15, 1
    %p32 = por %p30, %p31
    %p33 = scmp.ne.s32.totalorder %s25, %s28
    %p34 = scmp.eq.s32.totalorder %s15, 0
    %p35 = por %p33, %p34
    %p36 = scmp.ne.s32.totalorder %s25, %s28
    %p37 = scmp.eq.s32.totalorder %s20, 1
    %p38 = por %p36, %p37
    %p39 = scmp.ne.s32.totalorder %s28, %s29
    %p40 = scmp.eq.s32.totalorder %s20, 0
    %p41 = por %p39, %p40
    %p42 = scmp.ne.s32.totalorder %s28, %s29
    %p43 = scmp.eq.s32.totalorder %s21, 1
    %p44 = por %p42, %p43
    %p46 = scmp.ne.s32.totalorder %s29, %s45
    %p47 = scmp.eq.s32.totalorder %s21, 0
    %p48 = por %p46, %p47
    %s50 = sadd.s32 %s49, 1
    %p53 = scmp.eq.s32.totalorder %s15, 1
    %p54 = scmp.ne.s32.totalorder %s49, %s51
    %p55 = scmp.eq.s32.totalorder %s15, 0
    %p56 = por %p54, %p55
    %p57 = scmp.ne.s32.totalorder %s49, %s51
    %p58 = scmp.eq.s32.totalorder %s20, 1
    %p59 = por %p57, %p58
    %p60 = scmp.ne.s32.totalorder %s51, %s52
    %p61 = scmp.eq.s32.totalorder %s20, 0
    %p62 = por %p60, %p61
    %p63 = scmp.ne.s32.totalorder %s51, %s52
    %p64 = scmp.eq.s32.totalorder %s21, 1
    %p65 = por %p63, %p64
    %p67 = scmp.ne.s32.totalorder %s52, %s66
    %p68 = scmp.eq.s32.totalorder %s21, 0
    %p69 = por %p67, %p68
    %s71 = sadd.s32 %s70, 1
    %p74 = scmp.eq.s32.totalorder %s15, 1
    %p75 = scmp.ne.s32.totalorder %s70, %s72
    %p76 = scmp.eq.s32.totalorder %s15, 0
    %p77 = por %p75, %p76
    %p78 = scmp.ne.s32.totalorder %s70, %s72
    %p79 = scmp.eq.s32.totalorder %s20, 1
    %p80 = por %p78, %p79
    %p81 = scmp.ne.s32.totalorder %s72, %s73
    %p82 = scmp.eq.s32.totalorder %s20, 0
    %p83 = por %p81, %p82
    %p84 = scmp.ne.s32.totalorder %s72, %s73
    %p85 = scmp.eq.s32.totalorder %s21, 1
    %p86 = por %p84, %p85
    %p88 = scmp.ne.s32.totalorder %s73, %s87
    %p89 = scmp.eq.s32.totalorder %s21, 0
    %p90 = por %p88, %p89
    %s92 = sadd.s32 %s91, 1
    %p95 = scmp.eq.s32.totalorder %s15, 1
    %p96 = scmp.ne.s32.totalorder %s91, %s93
    %p97 = scmp.eq.s32.totalorder %s15, 0
    %p98 = por %p96, %p97
    %p99 = scmp.ne.s32.totalorder %s91, %s93
    %p100 = scmp.eq.s32.totalorder %s20, 1
    %p101 = por %p99, %p100
    %p102 = scmp.ne.s32.totalorder %s93, %s94
    %p103 = scmp.eq.s32.totalorder %s20, 0
    %p104 = por %p102, %p103
    %p105 = scmp.ne.s32.totalorder %s93, %s94
    %p106 = scmp.eq.s32.totalorder %s21, 1
    %p107 = por %p105, %p106
    %p109 = scmp.ne.s32.totalorder %s94, %s108
    %p110 = scmp.eq.s32.totalorder %s21, 0
    %p111 = por %p109, %p110
    %s113 = sadd.s32 %s112, 1
    %p116 = scmp.eq.s32.totalorder %s15, 1
    %p117 = scmp.ne.s32.totalorder %s112, %s114
    %p118 = scmp.eq.s32.totalorder %s15, 0
    %p119 = por %p117, %p118
    %p120 = scmp.ne.s32.totalorder %s112, %s114
    %p121 = scmp.eq.s32.totalorder %s20, 1
    %p122 = por %p120, %p121
    %p123 = scmp.ne.s32.totalorder %s114, %s115
    %p124 = scmp.eq.s32.totalorder %s20, 0
    %p125 = por %p123, %p124
    %p126 = scmp.ne.s32.totalorder %s114, %s115
    %p127 = scmp.eq.s32.totalorder %s21, 1
    %p128 = por %p126, %p127
    %p130 = scmp.ne.s32.totalorder %s115, %s129
    %p131 = scmp.eq.s32.totalorder %s21, 0
    %p132 = por %p130, %p131
    %s134 = sadd.s32 %s133, 1
    %p137 = scmp.eq.s32.totalorder %s15, 1
    %p138 = scmp.ne.s32.totalorder %s133, %s135
    %p139 = scmp.eq.s32.totalorder %s15, 0
    %p140 = por %p138, %p139
    %p141 = scmp.ne.s32.totalorder %s133, %s135
    %p142 = scmp.eq.s32.totalorder %s20, 1
    %p143 = por %p141, %p142
    %p144 = scmp.ne.s32.totalorder %s135, %s136
    %p145 = scmp.eq.s32.totalorder %s20, 0
    %p146 = por %p144, %p145
    %p147 = scmp.ne.s32.totalorder %s135, %s136
    %p148 = scmp.eq.s32.totalorder %s21, 1
    %p149 = por %p147, %p148
    %p151 = scmp.ne.s32.totalorder %s136, %s150
    %p152 = scmp.eq.s32.totalorder %s21, 0
    %p153 = por %p151, %p152
    %s155 = sadd.s32 %s154, 1
    %p158 = scmp.eq.s32.totalorder %s15, 1
    %p159 = scmp.ne.s32.totalorder %s154, %s156
    %p160 = scmp.eq.s32.totalorder %s15, 0
    %p161 = por %p159, %p160
    %p162 = scmp.ne.s32.totalorder %s154, %s156
    %p163 = scmp.eq.s32.totalorder %s20, 1
    %p164 = por %p162, %p163
    %p165 = scmp.ne.s32.totalorder %s156, %s157
    %p166 = scmp.eq.s32.totalorder %s20, 0
    %p167 = por %p165, %p166
    %p168 = scmp.ne.s32.totalorder %s156, %s157
    %p169 = scmp.eq.s32.totalorder %s21, 1
    %p170 = por %p168, %p169
    %p172 = scmp.ne.s32.totalorder %s157, %s171
    %p173 = scmp.eq.s32.totalorder %s21, 0
    %p174 = por %p172, %p173
    %s175 = ssub.s32 %s15, %s22
    %p176 = scmp.eq.s32.totalorder %s175, 0
    %s178 = sadd.s32 %s177, 1
    %s179 = scalar_select %p176, %s177, %s178
    %p182 = pneg %p176
    %p183 = scmp.eq.s32.totalorder %s15, 1
    %p184 = por %p182, %p183
    %p185 = scmp.ne.s32.totalorder %s177, %s180
    %p186 = scmp.eq.s32.totalorder %s15, 0
    %p187 = por %p185, %p186
    %p188 = scmp.ne.s32.totalorder %s177, %s180
    %p189 = scmp.eq.s32.totalorder %s20, 1
    %p190 = por %p188, %p189
    %p191 = scmp.ne.s32.totalorder %s180, %s181
    %p192 = scmp.eq.s32.totalorder %s20, 0
    %p193 = por %p191, %p192
    %p194 = scmp.ne.s32.totalorder %s180, %s181
    %p195 = scmp.eq.s32.totalorder %s21, 1
    %p196 = por %p194, %p195
    %p198 = scmp.ne.s32.totalorder %s181, %s197
    %p199 = scmp.eq.s32.totalorder %s21, 0
    %p200 = por %p198, %p199
    %p201 = scmp.le.s32.totalorder 1, %s15
    %p202 = scmp.lt.s32.totalorder %s15, 3
    %p203 = pnand %p201, %p202
    %p204 = pneg %p203
    // Predicated region
    $region9: #{discriminator_forward.11} parent=5 // pred_check
      _
    $region10: #{discriminator_forward.11} parent=5 // pred_check_branch
      %206 = sbr.rel (%p203) target = $region12
    $region11: #{discriminator_forward.11} parent=5 // pred_region
      %s207 = ssub.s32 %s15, 1
      // Predicated region
      $region13: #{discriminator_forward.11} parent=11 // pred_check
        %p208 = pneg %p62
      $region14: #{discriminator_forward.11} parent=11 // pred_check_branch
        %210 = sbr.rel (%p208) target = $region16
      $region15: #{discriminator_forward.11} parent=11 // pred_region
        _
      $region16: #{discriminator_forward.11} parent=11 // pred_fallthru
        _
      // Predicated region
      $region17: #{discriminator_forward.11} parent=11 // pred_check
        %p211 = pneg %p83
      $region18: #{discriminator_forward.11} parent=11 // pred_check_branch
        %213 = sbr.rel (%p211) target = $region20
      $region19: #{discriminator_forward.11} parent=11 // pred_region
        _
      $region20: #{discriminator_forward.11} parent=11 // pred_fallthru
        _
      // Predicated region
      $region21: #{discriminator_forward.11} parent=11 // pred_check
        %p214 = pneg %p104
      $region22: #{discriminator_forward.11} parent=11 // pred_check_branch
        %216 = sbr.rel (%p214) target = $region24
      $region23: #{discriminator_forward.11} parent=11 // pred_region
        _
      $region24: #{discriminator_forward.11} parent=11 // pred_fallthru
        _
      // Predicated region
      $region25: #{discriminator_forward.11} parent=11 // pred_check
        %p217 = pneg %p125
      $region26: #{discriminator_forward.11} parent=11 // pred_check_branch
        %219 = sbr.rel (%p217) target = $region28
      $region27: #{discriminator_forward.11} parent=11 // pred_region
        _
      $region28: #{discriminator_forward.11} parent=11 // pred_fallthru
        _
      // Predicated region
      $region29: #{discriminator_forward.11} parent=11 // pred_check
        %p220 = pneg %p146
      $region30: #{discriminator_forward.11} parent=11 // pred_check_branch
        %222 = sbr.rel (%p220) target = $region32
      $region31: #{discriminator_forward.11} parent=11 // pred_region
        _
      $region32: #{discriminator_forward.11} parent=11 // pred_fallthru
        _
      // Predicated region
      $region33: #{discriminator_forward.11} parent=11 // pred_check
        %p223 = pneg %p167
      $region34: #{discriminator_forward.11} parent=11 // pred_check_branch
        %225 = sbr.rel (%p223) target = $region36
      $region35: #{discriminator_forward.11} parent=11 // pred_region
        _
      $region36: #{discriminator_forward.11} parent=11 // pred_fallthru
        _
    $region12: #{discriminator_forward.11} parent=5 // pred_fallthru
      _
    %p226 = scmp.lt.s32.totalorder %s15, 2
    // Predicated region
    $region37: #{discriminator_forward.11} parent=5 // pred_check
      %p227 = pneg %p226
    $region38: #{discriminator_forward.11} parent=5 // pred_check_branch
      %229 = sbr.rel (%p227) target = $region40
    $region39: #{discriminator_forward.11} parent=5 // pred_region
      // Predicated region
      $region41: #{discriminator_forward.11} parent=39 // pred_check
        %p230 = pneg %p35
      $region42: #{discriminator_forward.11} parent=39 // pred_check_branch
        %232 = sbr.rel (%p230) target = $region44
      $region43: #{discriminator_forward.11} parent=39 // pred_region
        %p233 = scmp.lt.s32.totalorder %s15, 1
        %s234 = scalar_select %p233, %s15, 1
        %s235 = smul.addr %s234, 3
        %s236 = smul.addr %s235, 4
        %s237 = scalar_lea.vmem %s0, %s236
      $region44: #{discriminator_forward.11} parent=39 // pred_fallthru
        _
    $region40: #{discriminator_forward.11} parent=5 // pred_fallthru
      _
    %p238 = scmp.le.s32.totalorder 1, %s15
    %p239 = scmp.lt.s32.totalorder %s15, 3
    %p240 = pnand %p238, %p239
    %p241 = pneg %p240
    // Predicated region
    $region45: #{discriminator_forward.11} parent=5 // pred_check
      _
    $region46: #{discriminator_forward.11} parent=5 // pred_check_branch
      %243 = sbr.rel (%p240) target = $region48
    $region47: #{discriminator_forward.11} parent=5 // pred_region
      %s244 = ssub.s32 %s15, 1
      %p245 = scmp.lt.s32.totalorder %s20, 1
      %s246 = scalar_select %p245, %s20, 1
      %s247 = smul.addr %s246, 3
      %s248 = smul.addr %s247, 4
      %s249 = scalar_lea.vmem %s0, %s248
      %p250 = pneg %p41
      %p251 = pneg %p38
      %p252 = pneg %p62
      %p253 = pneg %p59
      %p254 = pneg %p83
      %p255 = pneg %p80
      %p256 = pneg %p104
      %p257 = pneg %p101
      %p258 = pneg %p125
      %p259 = pneg %p122
      %p260 = pneg %p146
      %p261 = pneg %p143
      %p262 = pneg %p167
      %p263 = pneg %p164
      %p264 = pneg %p193
      %p265 = pneg %p190
      %p266 = scmp.lt.s32.totalorder %s20, 1
      %s267 = scalar_select %p266, %s20, 1
      %s268 = scalar_lea.vmem %s7, %s267
      %p269 = scmp.lt.s32.totalorder %s20, 1
      %s270 = scalar_select %p269, %s20, 1
      %s271 = smul.addr %s270, 3
      %s272 = smul.addr %s271, 4
      %s273 = scalar_lea.vmem %s0, %s272
      %p274 = scmp.lt.s32.totalorder %s20, 1
      %s275 = scalar_select %p274, %s20, 1
      %s276 = scalar_lea.vmem %s7, %s275
      %v277 = vld [vmem:[%s273] sm:$0xff]
      %v278 = vld [vmem:[%s273 + $0x8] sm:$0xf]
      %v279 = vunpack.c.l.bf16 %v277
      %v280 = vunpack.c.h.bf16 %v277
      %v281 = vunpack.c.l.bf16 %v278
      %v282 = vld [vmem:[%s1] sm:$0xff]
      %s283 = scalar_lea.vmem %s1, 8
      %v284 = vld [vmem:[%s283] sm:$0xff]
      %v285 = vadd.f32 %v282, %v284
      %v286 = vmul.f32 %v285, 0.001953125
      %v287 = vmul.f32 %v286, %v286
      %289 = vrot.lane.b32.xlu0 %v287, 1
      %v290 = vpop.permute.xlu0 %289
      %v292 = vsub.f32 %v286, %v290
      %v293 = vmax.f32 %v292, 0.0
      %v294 = vld [vmem:[%s2] sm:$0xff]
      %v295 = vadd.f32 %v293, 1e-05
      %v296 = vrsqrt.pop %v295
      %v297 = vmul.f32 %v296, %v295
      %v298 = vmul.f32 %v297, %v296
      %v299 = vmul.f32 0.5, %v298
      %v300 = vsub.f32 1.5, %v299
      %v301 = vmul.f32 %v296, %v300
      %vm302 = vweird.f32 %v295
      %vm303 = vweird.f32 %v296
      %vm304 = vmor %vm302, %vm303
      %v305 = vsel %vm304, %v296, %v301
      %307 = vrot.lane.b32.xlu0 %v305, 127
      %v308 = vpop.permute.xlu0 %307
      %v310 = vmul.f32 %v294, %v308
      %v311 = vld [vmem:[%s3] sm:$0xff]
      %v312 = vmul.f32 %v286, %v310
      %v313 = vsub.f32 %v311, %v312
      %315 = vset.pattern.permute.xlu0 0
      %316 = vperm.xlu0 %315, %v310
      %v317 = vpop.permute.xlu0 %316
      %v319 = vmul.f32 %v279, %v317
      %v320 = vmul.f32 %v280, %v317
      %v321 = vmul.f32 %v281, %v317
      %323 = vset.pattern.permute.xlu0 0
      %324 = vperm.xlu0 %323, %v313
      %v325 = vpop.permute.xlu0 %324
      %v327 = vadd.f32 %v319, %v325
      %v328 = vadd.f32 %v320, %v325
      %v329 = vadd.f32 %v321, %v325
      %vm330 = vcmp.ge.f32.partialorder %v327, 0.0
      %vm331 = vcmp.ge.f32.partialorder %v328, 0.0
      %vm332 = vcmp.ge.f32.partialorder %v329, 0.0
      %v333 = vmul.f32 %v327, 0.01
      %v334 = vmul.f32 %v328, 0.01
      %v335 = vmul.f32 %v329, 0.01
      %v336 = vsel %vm330, %v327, %v333
      %v337 = vsel %vm331, %v328, %v334
      %v338 = vsel %vm332, %v329, %v335
      %v339 = vld [vmem:[%s4] sm:$0x7]
      %v341 = vperm.slane %v339, 0
      %v342 = vperm.slane %v339, 1
      %v343 = vperm.slane %v339, 2
      %v347 = vmul.f32 %v336, %v341
      %v348 = vmul.f32 %v337, %v342
      %v349 = vmul.f32 %v338, %v343
      %v350 = vadd.f32 %v347, %v348
      %v351 = vadd.f32 %v350, %v349
      %352 = vadd.xlane.f32.xlu0 %v351
      %v353 = vpop.xlane.xlu0 %352
      %v354 = vmul.f32 %v353, 0.00390625
      %v355 = vld [vmem:[%s5] sm:$0xff]
      %v356 = vmul.f32 %v355, %v354
      %vm357 = vcmask 7168
      %v358 = vsel %vm357, %v356, 0.0
      %359 = vadd.xlane.f32.xlu0 %v358
      %v360 = vpop.xlane.xlu0 %359
      %v361 = vrot.slane %v360, 4
      %v362 = vadd.f32 %v360, %v361
      %v363 = vrot.slane %v362, 2
      %v364 = vadd.f32 %v362, %v363
      %v365 = vrot.slane %v364, 1
      %v366 = vadd.f32 %v364, %v365
      %s367 = vtos %v366
      %v368 = vstv %s367
      %v369 = vld [vmem:[#allocation2] sm:$0x1]
      %v370 = vadd.f32 %v368, %v369
      %vm371 = vcmask 0
      %372 = vst.msk [vmem:[%s276] sm:$0x1] %vm371, %v370
      %p373 = scmp.lt.s32.totalorder %s20, 1
      %s374 = scalar_select %p373, %s20, 1
      %s375 = scalar_lea.vmem %s7, %s374
      // Predicated region
      $region49: #{discriminator_forward.11} parent=47 // pred_check
        %p376 = pneg %p190
      $region50: #{discriminator_forward.11} parent=47 // pred_check_branch
        %378 = sbr.rel (%p376) target = $region52
      $region51: #{discriminator_forward.11} parent=47 // pred_region
        _
      $region52: #{discriminator_forward.11} parent=47 // pred_fallthru
        _
    $region48: #{discriminator_forward.11} parent=5 // pred_fallthru
      _
    %p379 = scmp.le.s32.totalorder 2, %s15
    // Predicated region
    $region53: #{discriminator_forward.11} parent=5 // pred_check
      %p380 = pneg %p379
    $region54: #{discriminator_forward.11} parent=5 // pred_check_branch
      %382 = sbr.rel (%p380) target = $region56
    $region55: #{discriminator_forward.11} parent=5 // pred_region
      %s383 = ssub.s32 %s15, 2
      // Predicated region
      $region57: #{discriminator_forward.11} parent=55 // pred_check
        %p384 = pneg %p196
      $region58: #{discriminator_forward.11} parent=55 // pred_check_branch
        %386 = sbr.rel (%p384) target = $region60
      $region59: #{discriminator_forward.11} parent=55 // pred_region
        %p387 = scmp.lt.s32.totalorder %s21, 1
        %s388 = scalar_select %p387, %s21, 1
        %s389 = scalar_lea.vmem %s7, %s388
      $region60: #{discriminator_forward.11} parent=55 // pred_fallthru
        _
    $region56: #{discriminator_forward.11} parent=5 // pred_fallthru
      _
  $region6: #{discriminator_forward.11} parent=0 // loop_footer
    %s19 = sadd.s32 1, %s15
  $region7: #{discriminator_forward.11} parent=0 // loop_footer_branch
    %14 = sbr.rel target = $region3
  $region8: #{discriminator_forward.11} parent=0 // loop_exit
    _

// kernel: discriminator_forward.9
$region0: #{discriminator_forward.9}
  #allocation0 [shape = 'u32[]', space=smem, size = 0x4, offset = 0x4, fixed_abs, tag = 'smem constant byte address 0x4 - core index']
  #allocation1 [shape = 'u32[72,128]{1,0:T(1,128)}', space=vmem, size = 0x9000, scoped, tag = 'internal scratch']
  #allocation2 [shape = 'bf16[216,286]{1,0:T(8,128)(2,1)}', space=vmem, size = 0x28800, scoped, tag = 'scratch operand']
  %s0 = inlined_call_operand.vmem [shape: bf16[2,8,384], index: 0, kind: input, shape index: {}]
  %s1 = inlined_call_operand.vmem [shape: bf16[2,8,384], index: 1, kind: input, shape index: {}]
  %s2 = inlined_call_operand.vmem [shape: bf16[2,8,384], index: 2, kind: input, shape index: {}]
  %s3 = inlined_call_operand.vmem [shape: bf16[8,216], index: 3, kind: input, shape index: {}]
  %s4 = inlined_call_operand.vmem [shape: f32[2,8,2], index: 4, kind: input, shape index: {}]
  %s5 = inlined_call_operand.vmem [shape: f32[8,1], index: 5, kind: input, shape index: {}]
  %s6 = inlined_call_operand.vmem [shape: f32[8,1], index: 6, kind: input, shape index: {}]
  %s7 = inlined_call_operand.vmem [shape: f32[2,8,2], index: 7, kind: input, shape index: {}]
  %s8 = inlined_call_operand.vmem [shape: f32[8,1], index: 8, kind: input, shape index: {}]
  %s9 = inlined_call_operand.vmem [shape: f32[8,1], index: 9, kind: input, shape index: {}]
  %s10 = inlined_call_operand.vmem [shape: f32[2,8,2], index: 10, kind: input, shape index: {}]
  %s11 = inlined_call_operand.vmem [shape: f32[8,1], index: 11, kind: input, shape index: {}]
  %s12 = inlined_call_operand.vmem [shape: f32[8,1], index: 12, kind: input, shape index: {}]
  %s13 = inlined_call_operand.vmem [shape: f32[1,384], index: 13, kind: input, shape index: {}]
  %s14 = inlined_call_operand.vmem [shape: bf16[2,8,384], index: 14, kind: output, shape index: {0}]
  %s15 = inlined_call_operand.vmem [shape: f32[2,8,2], index: 15, kind: output, shape index: {1}]
  %16 = xla_tuple %s14, %s15
  %s17 = sld [smem:[#allocation0]]
  $region97: #{discriminator_forward.9} parent=0
    _
  %s19 = ssub.s32 1, %s17
  %s20 = scalar_select 0, %s19, %s17
  loop: start=0, step=1, limit=4
  $region2: #{discriminator_forward.9} parent=0 // loop_pre_header
    _
  $region3: #{discriminator_forward.9} parent=0 // loop_header
    %s22 = sphi 0, %s26
    %p23 = scmp.ge.s32.totalorder %s22, 4
    %s32 = sphi 0, %s34
    %s35 = sphi 0, %s32
    %s36 = sphi 0, %s35
    %s52 = sphi 0, %s36
    %s58 = sphi 0, %s60
    %s61 = sphi 0, %s58
    %s62 = sphi 0, %s61
    %s78 = sphi 0, %s62
    %s84 = sphi 0, %s86
    %s87 = sphi 0, %s84
    %s88 = sphi 0, %s87
    %s104 = sphi 0, %s88
    %s108 = sphi 0, %s108
    %s110 = sphi 0, %s108
    %s111 = sphi 0, %s110
    %s125 = sphi 0, %s111
    %s129 = sphi 0, %s129
    %s131 = sphi 0, %s129
    %s132 = sphi 0, %s131
    %s146 = sphi 0, %s132
    %s150 = sphi 0, %s150
    %s152 = sphi 0, %s150
    %s153 = sphi 0, %s152
    %s167 = sphi 0, %s153
    %s171 = sphi 0, %s171
    %s173 = sphi 0, %s171
    %s174 = sphi 0, %s173
    %s188 = sphi 0, %s174
    %s192 = sphi 0, %s192
    %s194 = sphi 0, %s192
    %s195 = sphi 0, %s194
    %s209 = sphi 0, %s195
    %s213 = sphi 0, %s213
    %s215 = sphi 0, %s213
    %s216 = sphi 0, %s215
    %s230 = sphi 0, %s216
    %s234 = sphi 0, %s234
    %s236 = sphi 0, %s234
    %s237 = sphi 0, %s236
    %s251 = sphi 0, %s237
    %s255 = sphi 0, %s255
    %s257 = sphi 0, %s255
    %s258 = sphi 0, %s257
    %s272 = sphi 0, %s258
    %s276 = sphi 0, %s276
    %s278 = sphi 0, %s276
    %s279 = sphi 0, %s278
    %s293 = sphi 0, %s279
    %s297 = sphi 0, %s297
    %s299 = sphi 0, %s297
    %s300 = sphi 0, %s299
    %s314 = sphi 0, %s300
    %s318 = sphi 0, %s318
    %s320 = sphi 0, %s318
    %s321 = sphi 0, %s320
    %s335 = sphi 0, %s321
    %s341 = sphi 0, %s343
    %s344 = sphi 0, %s341
    %s345 = sphi 0, %s344
    %s361 = sphi 0, %s345
    %s367 = sphi 0, %s369
    %s370 = sphi 0, %s367
    %s371 = sphi 0, %s370
    %s387 = sphi 0, %s371
  $region4: #{discriminator_forward.9} parent=0 // loop_header_branch
    %25 = sbr.rel (%p23) target = $region8
  $region5: #{discriminator_forward.9} parent=0 // loop_body
    %s27 = ssub.s32 %s22, 1
    %s28 = ssub.s32 %s22, 2
    %s29 = sadd.s32 %s22, 1
    %s30 = ssub.s32 %s22, %s29
    %p31 = scmp.eq.s32.totalorder %s30, 0
    %s33 = sadd.s32 %s32, 1
    %s34 = scalar_select %p31, %s32, %s33
    %p37 = pneg %p31
    %p38 = scmp.eq.s32.totalorder %s22, 1
    %p39 = por %p37, %p38
    %p40 = scmp.ne.s32.totalorder %s32, %s35
    %p41 = scmp.eq.s32.totalorder %s22, 0
    %p42 = por %p40, %p41
    %p43 = scmp.ne.s32.totalorder %s32, %s35
    %p44 = scmp.eq.s32.totalorder %s27, 1
    %p45 = por %p43, %p44
    %p46 = scmp.ne.s32.totalorder %s35, %s36
    %p47 = scmp.eq.s32.totalorder %s27, 0
    %p48 = por %p46, %p47
    %p49 = scmp.ne.s32.totalorder %s35, %s36
    %p50 = scmp.eq.s32.totalorder %s28, 1
    %p51 = por %p49, %p50
    %p53 = scmp.ne.s32.totalorder %s36, %s52
    %p54 = scmp.eq.s32.totalorder %s28, 0
    %p55 = por %p53, %p54
    %s56 = ssub.s32 %s22, %s29
    %p57 = scmp.eq.s32.totalorder %s56, 0
    %s59 = sadd.s32 %s58, 1
    %s60 = scalar_select %p57, %s58, %s59
    %p63 = pneg %p57
    %p64 = scmp.eq.s32.totalorder %s22, 1
    %p65 = por %p63, %p64
    %p66 = scmp.ne.s32.totalorder %s58, %s61
    %p67 = scmp.eq.s32.totalorder %s22, 0
    %p68 = por %p66, %p67
    %p69 = scmp.ne.s32.totalorder %s58, %s61
    %p70 = scmp.eq.s32.totalorder %s27, 1
    %p71 = por %p69, %p70
    %p72 = scmp.ne.s32.totalorder %s61, %s62
    %p73 = scmp.eq.s32.totalorder %s27, 0
    %p74 = por %p72, %p73
    %p75 = scmp.ne.s32.totalorder %s61, %s62
    %p76 = scmp.eq.s32.totalorder %s28, 1
    %p77 = por %p75, %p76
    %p79 = scmp.ne.s32.totalorder %s62, %s78
    %p80 = scmp.eq.s32.totalorder %s28, 0
    %p81 = por %p79, %p80
    %s82 = ssub.s32 %s22, %s29
    %p83 = scmp.eq.s32.totalorder %s82, 0
    %s85 = sadd.s32 %s84, 1
    %s86 = scalar_select %p83, %s84, %s85
    %p89 = pneg %p83
    %p90 = scmp.eq.s32.totalorder %s22, 1
    %p91 = por %p89, %p90
    %p92 = scmp.ne.s32.totalorder %s84, %s87
    %p93 = scmp.eq.s32.totalorder %s22, 0
    %p94 = por %p92, %p93
    %p95 = scmp.ne.s32.totalorder %s84, %s87
    %p96 = scmp.eq.s32.totalorder %s27, 1
    %p97 = por %p95, %p96
    %p98 = scmp.ne.s32.totalorder %s87, %s88
    %p99 = scmp.eq.s32.totalorder %s27, 0
    %p100 = por %p98, %p99
    %p101 = scmp.ne.s32.totalorder %s87, %s88
    %p102 = scmp.eq.s32.totalorder %s28, 1
    %p103 = por %p101, %p102
    %p105 = scmp.ne.s32.totalorder %s88, %s104
    %p106 = scmp.eq.s32.totalorder %s28, 0
    %p107 = por %p105, %p106
    %s109 = sadd.s32 %s108, 1
    %p112 = scmp.eq.s32.totalorder %s22, 1
    %p113 = scmp.ne.s32.totalorder %s108, %s110
    %p114 = scmp.eq.s32.totalorder %s22, 0
    %p115 = por %p113, %p114
    %p116 = scmp.ne.s32.totalorder %s108, %s110
    %p117 = scmp.eq.s32.totalorder %s27, 1
    %p118 = por %p116, %p117
    %p119 = scmp.ne.s32.totalorder %s110, %s111
    %p120 = scmp.eq.s32.totalorder %s27, 0
    %p121 = por %p119, %p120
    %p122 = scmp.ne.s32.totalorder %s110, %s111
    %p123 = scmp.eq.s32.totalorder %s28, 1
    %p124 = por %p122, %p123
    %p126 = scmp.ne.s32.totalorder %s111, %s125
    %p127 = scmp.eq.s32.totalorder %s28, 0
    %p128 = por %p126, %p127
    %s130 = sadd.s32 %s129, 1
    %p133 = scmp.eq.s32.totalorder %s22, 1
    %p134 = scmp.ne.s32.totalorder %s129, %s131
    %p135 = scmp.eq.s32.totalorder %s22, 0
    %p136 = por %p134, %p135
    %p137 = scmp.ne.s32.totalorder %s129, %s131
    %p138 = scmp.eq.s32.totalorder %s27, 1
    %p139 = por %p137, %p138
    %p140 = scmp.ne.s32.totalorder %s131, %s132
    %p141 = scmp.eq.s32.totalorder %s27, 0
    %p142 = por %p140, %p141
    %p143 = scmp.ne.s32.totalorder %s131, %s132
    %p144 = scmp.eq.s32.totalorder %s28, 1
    %p145 = por %p143, %p144
    %p147 = scmp.ne.s32.totalorder %s132, %s146
    %p148 = scmp.eq.s32.totalorder %s28, 0
    %p149 = por %p147, %p148
    %s151 = sadd.s32 %s150, 1
    %p154 = scmp.eq.s32.totalorder %s22, 1
    %p155 = scmp.ne.s32.totalorder %s150, %s152
    %p156 = scmp.eq.s32.totalorder %s22, 0
    %p157 = por %p155, %p156
    %p158 = scmp.ne.s32.totalorder %s150, %s152
    %p159 = scmp.eq.s32.totalorder %s27, 1
    %p160 = por %p158, %p159
    %p161 = scmp.ne.s32.totalorder %s152, %s153
    %p162 = scmp.eq.s32.totalorder %s27, 0
    %p163 = por %p161, %p162
    %p164 = scmp.ne.s32.totalorder %s152, %s153
    %p165 = scmp.eq.s32.totalorder %s28, 1
    %p166 = por %p164, %p165
    %p168 = scmp.ne.s32.totalorder %s153, %s167
    %p169 = scmp.eq.s32.totalorder %s28, 0
    %p170 = por %p168, %p169
    %s172 = sadd.s32 %s171, 1
    %p175 = scmp.eq.s32.totalorder %s22, 1
    %p176 = scmp.ne.s32.totalorder %s171, %s173
    %p177 = scmp.eq.s32.totalorder %s22, 0
    %p178 = por %p176, %p177
    %p179 = scmp.ne.s32.totalorder %s171, %s173
    %p180 = scmp.eq.s32.totalorder %s27, 1
    %p181 = por %p179, %p180
    %p182 = scmp.ne.s32.totalorder %s173, %s174
    %p183 = scmp.eq.s32.totalorder %s27, 0
    %p184 = por %p182, %p183
    %p185 = scmp.ne.s32.totalorder %s173, %s174
    %p186 = scmp.eq.s32.totalorder %s28, 1
    %p187 = por %p185, %p186
    %p189 = scmp.ne.s32.totalorder %s174, %s188
    %p190 = scmp.eq.s32.totalorder %s28, 0
    %p191 = por %p189, %p190
    %s193 = sadd.s32 %s192, 1
    %p196 = scmp.eq.s32.totalorder %s22, 1
    %p197 = scmp.ne.s32.totalorder %s192, %s194
    %p198 = scmp.eq.s32.totalorder %s22, 0
    %p199 = por %p197, %p198
    %p200 = scmp.ne.s32.totalorder %s192, %s194
    %p201 = scmp.eq.s32.totalorder %s27, 1
    %p202 = por %p200, %p201
    %p203 = scmp.ne.s32.totalorder %s194, %s195
    %p204 = scmp.eq.s32.totalorder %s27, 0
    %p205 = por %p203, %p204
    %p206 = scmp.ne.s32.totalorder %s194, %s195
    %p207 = scmp.eq.s32.totalorder %s28, 1
    %p208 = por %p206, %p207
    %p210 = scmp.ne.s32.totalorder %s195, %s209
    %p211 = scmp.eq.s32.totalorder %s28, 0
    %p212 = por %p210, %p211
    %s214 = sadd.s32 %s213, 1
    %p217 = scmp.eq.s32.totalorder %s22, 1
    %p218 = scmp.ne.s32.totalorder %s213, %s215
    %p219 = scmp.eq.s32.totalorder %s22, 0
    %p220 = por %p218, %p219
    %p221 = scmp.ne.s32.totalorder %s213, %s215
    %p222 = scmp.eq.s32.totalorder %s27, 1
    %p223 = por %p221, %p222
    %p224 = scmp.ne.s32.totalorder %s215, %s216
    %p225 = scmp.eq.s32.totalorder %s27, 0
    %p226 = por %p224, %p225
    %p227 = scmp.ne.s32.totalorder %s215, %s216
    %p228 = scmp.eq.s32.totalorder %s28, 1
    %p229 = por %p227, %p228
    %p231 = scmp.ne.s32.totalorder %s216, %s230
    %p232 = scmp.eq.s32.totalorder %s28, 0
    %p233 = por %p231, %p232
    %s235 = sadd.s32 %s234, 1
    %p238 = scmp.eq.s32.totalorder %s22, 1
    %p239 = scmp.ne.s32.totalorder %s234, %s236
    %p240 = scmp.eq.s32.totalorder %s22, 0
    %p241 = por %p239, %p240
    %p242 = scmp.ne.s32.totalorder %s234, %s236
    %p243 = scmp.eq.s32.totalorder %s27, 1
    %p244 = por %p242, %p243
    %p245 = scmp.ne.s32.totalorder %s236, %s237
    %p246 = scmp.eq.s32.totalorder %s27, 0
    %p247 = por %p245, %p246
    %p248 = scmp.ne.s32.totalorder %s236, %s237
    %p249 = scmp.eq.s32.totalorder %s28, 1
    %p250 = por %p248, %p249
    %p252 = scmp.ne.s32.totalorder %s237, %s251
    %p253 = scmp.eq.s32.totalorder %s28, 0
    %p254 = por %p252, %p253
    %s256 = sadd.s32 %s255, 1
    %p259 = scmp.eq.s32.totalorder %s22, 1
    %p260 = scmp.ne.s32.totalorder %s255, %s257
    %p261 = scmp.eq.s32.totalorder %s22, 0
    %p262 = por %p260, %p261
    %p263 = scmp.ne.s32.totalorder %s255, %s257
    %p264 = scmp.eq.s32.totalorder %s27, 1
    %p265 = por %p263, %p264
    %p266 = scmp.ne.s32.totalorder %s257, %s258
    %p267 = scmp.eq.s32.totalorder %s27, 0
    %p268 = por %p266, %p267
    %p269 = scmp.ne.s32.totalorder %s257, %s258
    %p270 = scmp.eq.s32.totalorder %s28, 1
    %p271 = por %p269, %p270
    %p273 = scmp.ne.s32.totalorder %s258, %s272
    %p274 = scmp.eq.s32.totalorder %s28, 0
    %p275 = por %p273, %p274
    %s277 = sadd.s32 %s276, 1
    %p280 = scmp.eq.s32.totalorder %s22, 1
    %p281 = scmp.ne.s32.totalorder %s276, %s278
    %p282 = scmp.eq.s32.totalorder %s22, 0
    %p283 = por %p281, %p282
    %p284 = scmp.ne.s32.totalorder %s276, %s278
    %p285 = scmp.eq.s32.totalorder %s27, 1
    %p286 = por %p284, %p285
    %p287 = scmp.ne.s32.totalorder %s278, %s279
    %p288 = scmp.eq.s32.totalorder %s27, 0
    %p289 = por %p287, %p288
    %p290 = scmp.ne.s32.totalorder %s278, %s279
    %p291 = scmp.eq.s32.totalorder %s28, 1
    %p292 = por %p290, %p291
    %p294 = scmp.ne.s32.totalorder %s279, %s293
    %p295 = scmp.eq.s32.totalorder %s28, 0
    %p296 = por %p294, %p295
    %s298 = sadd.s32 %s297, 1
    %p301 = scmp.eq.s32.totalorder %s22, 1
    %p302 = scmp.ne.s32.totalorder %s297, %s299
    %p303 = scmp.eq.s32.totalorder %s22, 0
    %p304 = por %p302, %p303
    %p305 = scmp.ne.s32.totalorder %s297, %s299
    %p306 = scmp.eq.s32.totalorder %s27, 1
    %p307 = por %p305, %p306
    %p308 = scmp.ne.s32.totalorder %s299, %s300
    %p309 = scmp.eq.s32.totalorder %s27, 0
    %p310 = por %p308, %p309
    %p311 = scmp.ne.s32.totalorder %s299, %s300
    %p312 = scmp.eq.s32.totalorder %s28, 1
    %p313 = por %p311, %p312
    %p315 = scmp.ne.s32.totalorder %s300, %s314
    %p316 = scmp.eq.s32.totalorder %s28, 0
    %p317 = por %p315, %p316
    %s319 = sadd.s32 %s318, 1
    %p322 = scmp.eq.s32.totalorder %s22, 1
    %p323 = scmp.ne.s32.totalorder %s318, %s320
    %p324 = scmp.eq.s32.totalorder %s22, 0
    %p325 = por %p323, %p324
    %p326 = scmp.ne.s32.totalorder %s318, %s320
    %p327 = scmp.eq.s32.totalorder %s27, 1
    %p328 = por %p326, %p327
    %p329 = scmp.ne.s32.totalorder %s320, %s321
    %p330 = scmp.eq.s32.totalorder %s27, 0
    %p331 = por %p329, %p330
    %p332 = scmp.ne.s32.totalorder %s320, %s321
    %p333 = scmp.eq.s32.totalorder %s28, 1
    %p334 = por %p332, %p333
    %p336 = scmp.ne.s32.totalorder %s321, %s335
    %p337 = scmp.eq.s32.totalorder %s28, 0
    %p338 = por %p336, %p337
    %s339 = ssub.s32 %s22, %s29
    %p340 = scmp.eq.s32.totalorder %s339, 0
    %s342 = sadd.s32 %s341, 1
    %s343 = scalar_select %p340, %s341, %s342
    %p346 = pneg %p340
    %p347 = scmp.eq.s32.totalorder %s22, 1
    %p348 = por %p346, %p347
    %p349 = scmp.ne.s32.totalorder %s341, %s344
    %p350 = scmp.eq.s32.totalorder %s22, 0
    %p351 = por %p349, %p350
    %p352 = scmp.ne.s32.totalorder %s341, %s344
    %p353 = scmp.eq.s32.totalorder %s27, 1
    %p354 = por %p352, %p353
    %p355 = scmp.ne.s32.totalorder %s344, %s345
    %p356 = scmp.eq.s32.totalorder %s27, 0
    %p357 = por %p355, %p356
    %p358 = scmp.ne.s32.totalorder %s344, %s345
    %p359 = scmp.eq.s32.totalorder %s28, 1
    %p360 = por %p358, %p359
    %p362 = scmp.ne.s32.totalorder %s345, %s361
    %p363 = scmp.eq.s32.totalorder %s28, 0
    %p364 = por %p362, %p363
    %s365 = ssub.s32 %s22, %s29
    %p366 = scmp.eq.s32.totalorder %s365, 0
    %s368 = sadd.s32 %s367, 1
    %s369 = scalar_select %p366, %s367, %s368
    %p372 = pneg %p366
    %p373 = scmp.eq.s32.totalorder %s22, 1
    %p374 = por %p372, %p373
    %p375 = scmp.ne.s32.totalorder %s367, %s370
    %p376 = scmp.eq.s32.totalorder %s22, 0
    %p377 = por %p375, %p376
    %p378 = scmp.ne.s32.totalorder %s367, %s370
    %p379 = scmp.eq.s32.totalorder %s27, 1
    %p380 = por %p378, %p379
    %p381 = scmp.ne.s32.totalorder %s370, %s371
    %p382 = scmp.eq.s32.totalorder %s27, 0
    %p383 = por %p381, %p382
    %p384 = scmp.ne.s32.totalorder %s370, %s371
    %p385 = scmp.eq.s32.totalorder %s28, 1
    %p386 = por %p384, %p385
    %p388 = scmp.ne.s32.totalorder %s371, %s387
    %p389 = scmp.eq.s32.totalorder %s28, 0
    %p390 = por %p388, %p389
    %p391 = scmp.le.s32.totalorder 1, %s22
    %p392 = scmp.lt.s32.totalorder %s22, 3
    %p393 = pnand %p391, %p392
    %p394 = pneg %p393
    // Predicated region
    $region9: #{discriminator_forward.9} parent=5 // pred_check
      _
    $region10: #{discriminator_forward.9} parent=5 // pred_check_branch
      %396 = sbr.rel (%p393) target = $region12
    $region11: #{discriminator_forward.9} parent=5 // pred_region
      %s397 = ssub.s32 %s22, 1
      // Predicated region
      $region13: #{discriminator_forward.9} parent=11 // pred_check
        %p398 = pneg %p121
      $region14: #{discriminator_forward.9} parent=11 // pred_check_branch
        %400 = sbr.rel (%p398) target = $region16
      $region15: #{discriminator_forward.9} parent=11 // pred_region
        _
      $region16: #{discriminator_forward.9} parent=11 // pred_fallthru
        _
      // Predicated region
      $region17: #{discriminator_forward.9} parent=11 // pred_check
        %p401 = pneg %p142
      $region18: #{discriminator_forward.9} parent=11 // pred_check_branch
        %403 = sbr.rel (%p401) target = $region20
      $region19: #{discriminator_forward.9} parent=11 // pred_region
        _
      $region20: #{discriminator_forward.9} parent=11 // pred_fallthru
        _
      // Predicated region
      $region21: #{discriminator_forward.9} parent=11 // pred_check
        %p404 = pneg %p163
      $region22: #{discriminator_forward.9} parent=11 // pred_check_branch
        %406 = sbr.rel (%p404) target = $region24
      $region23: #{discriminator_forward.9} parent=11 // pred_region
        _
      $region24: #{discriminator_forward.9} parent=11 // pred_fallthru
        _
      // Predicated region
      $region25: #{discriminator_forward.9} parent=11 // pred_check
        %p407 = pneg %p184
      $region26: #{discriminator_forward.9} parent=11 // pred_check_branch
        %409 = sbr.rel (%p407) target = $region28
      $region27: #{discriminator_forward.9} parent=11 // pred_region
        _
      $region28: #{discriminator_forward.9} parent=11 // pred_fallthru
        _
      // Predicated region
      $region29: #{discriminator_forward.9} parent=11 // pred_check
        %p410 = pneg %p205
      $region30: #{discriminator_forward.9} parent=11 // pred_check_branch
        %412 = sbr.rel (%p410) target = $region32
      $region31: #{discriminator_forward.9} parent=11 // pred_region
        _
      $region32: #{discriminator_forward.9} parent=11 // pred_fallthru
        _
      // Predicated region
      $region33: #{discriminator_forward.9} parent=11 // pred_check
        %p413 = pneg %p226
      $region34: #{discriminator_forward.9} parent=11 // pred_check_branch
        %415 = sbr.rel (%p413) target = $region36
      $region35: #{discriminator_forward.9} parent=11 // pred_region
        _
      $region36: #{discriminator_forward.9} parent=11 // pred_fallthru
        _
      // Predicated region
      $region37: #{discriminator_forward.9} parent=11 // pred_check
        %p416 = pneg %p247
      $region38: #{discriminator_forward.9} parent=11 // pred_check_branch
        %418 = sbr.rel (%p416) target = $region40
      $region39: #{discriminator_forward.9} parent=11 // pred_region
        _
      $region40: #{discriminator_forward.9} parent=11 // pred_fallthru
        _
      // Predicated region
      $region41: #{discriminator_forward.9} parent=11 // pred_check
        %p419 = pneg %p268
      $region42: #{discriminator_forward.9} parent=11 // pred_check_branch
        %421 = sbr.rel (%p419) target = $region44
      $region43: #{discriminator_forward.9} parent=11 // pred_region
        _
      $region44: #{discriminator_forward.9} parent=11 // pred_fallthru
        _
      // Predicated region
      $region45: #{discriminator_forward.9} parent=11 // pred_check
        %p422 = pneg %p289
      $region46: #{discriminator_forward.9} parent=11 // pred_check_branch
        %424 = sbr.rel (%p422) target = $region48
      $region47: #{discriminator_forward.9} parent=11 // pred_region
        _
      $region48: #{discriminator_forward.9} parent=11 // pred_fallthru
        _
      // Predicated region
      $region49: #{discriminator_forward.9} parent=11 // pred_check
        %p425 = pneg %p310
      $region50: #{discriminator_forward.9} parent=11 // pred_check_branch
        %427 = sbr.rel (%p425) target = $region52
      $region51: #{discriminator_forward.9} parent=11 // pred_region
        _
      $region52: #{discriminator_forward.9} parent=11 // pred_fallthru
        _
      // Predicated region
      $region53: #{discriminator_forward.9} parent=11 // pred_check
        %p428 = pneg %p331
      $region54: #{discriminator_forward.9} parent=11 // pred_check_branch
        %430 = sbr.rel (%p428) target = $region56
      $region55: #{discriminator_forward.9} parent=11 // pred_region
        _
      $region56: #{discriminator_forward.9} parent=11 // pred_fallthru
        _
    $region12: #{discriminator_forward.9} parent=5 // pred_fallthru
      _
    %p431 = scmp.lt.s32.totalorder %s22, 2
    // Predicated region
    $region57: #{discriminator_forward.9} parent=5 // pred_check
      %p432 = pneg %p431
    $region58: #{discriminator_forward.9} parent=5 // pred_check_branch
      %434 = sbr.rel (%p432) target = $region60
    $region59: #{discriminator_forward.9} parent=5 // pred_region
      // Predicated region
      $region61: #{discriminator_forward.9} parent=59 // pred_check
        %p435 = pneg %p42
      $region62: #{discriminator_forward.9} parent=59 // pred_check_branch
        %437 = sbr.rel (%p435) target = $region64
      $region63: #{discriminator_forward.9} parent=59 // pred_region
        %p438 = scmp.lt.s32.totalorder %s22, 1
        %s439 = scalar_select %p438, %s22, 1
        %s440 = smul.addr %s439, 3
        %s441 = smul.addr %s440, 4
        %s442 = scalar_lea.vmem %s0, %s441
      $region64: #{discriminator_forward.9} parent=59 // pred_fallthru
        _
      // Predicated region
      $region65: #{discriminator_forward.9} parent=59 // pred_check
        %p443 = pneg %p68
      $region66: #{discriminator_forward.9} parent=59 // pred_check_branch
        %445 = sbr.rel (%p443) target = $region68
      $region67: #{discriminator_forward.9} parent=59 // pred_region
        %p446 = scmp.lt.s32.totalorder %s22, 1
        %s447 = scalar_select %p446, %s22, 1
        %s448 = smul.addr %s447, 3
        %s449 = smul.addr %s448, 4
        %s450 = scalar_lea.vmem %s1, %s449
      $region68: #{discriminator_forward.9} parent=59 // pred_fallthru
        _
      // Predicated region
      $region69: #{discriminator_forward.9} parent=59 // pred_check
        %p451 = pneg %p94
      $region70: #{discriminator_forward.9} parent=59 // pred_check_branch
        %453 = sbr.rel (%p451) target = $region72
      $region71: #{discriminator_forward.9} parent=59 // pred_region
        %p454 = scmp.lt.s32.totalorder %s22, 1
        %s455 = scalar_select %p454, %s22, 1
        %s456 = smul.addr %s455, 3
        %s457 = smul.addr %s456, 4
        %s458 = scalar_lea.vmem %s2, %s457
      $region72: #{discriminator_forward.9} parent=59 // pred_fallthru
        _
    $region60: #{discriminator_forward.9} parent=5 // pred_fallthru
      _
    %p459 = scmp.le.s32.totalorder 1, %s22
    %p460 = scmp.lt.s32.totalorder %s22, 3
    %p461 = pnand %p459, %p460
    %p462 = pneg %p461
    // Predicated region
    $region73: #{discriminator_forward.9} parent=5 // pred_check
      _
    $region74: #{discriminator_forward.9} parent=5 // pred_check_branch
      %464 = sbr.rel (%p461) target = $region76
    $region75: #{discriminator_forward.9} parent=5 // pred_region
      %s465 = ssub.s32 %s22, 1
      %p466 = scmp.lt.s32.totalorder %s27, 1
      %s467 = scalar_select %p466, %s27, 1
      %s468 = smul.addr %s467, 3
      %s469 = smul.addr %s468, 4
      %s470 = scalar_lea.vmem %s0, %s469
      %p471 = pneg %p48
      %p472 = pneg %p45
      %p473 = scmp.lt.s32.totalorder %s27, 1
      %s474 = scalar_select %p473, %s27, 1
      %s475 = smul.addr %s474, 3
      %s476 = smul.addr %s475, 4
      %s477 = scalar_lea.vmem %s1, %s476
      %p478 = pneg %p74
      %p479 = pneg %p71
      %p480 = scmp.lt.s32.totalorder %s27, 1
      %s481 = scalar_select %p480, %s27, 1
      %s482 = smul.addr %s481, 3
      %s483 = smul.addr %s482, 4
      %s484 = scalar_lea.vmem %s2, %s483
      %p485 = pneg %p100
      %p486 = pneg %p97
      %p487 = pneg %p121
      %p488 = pneg %p118
      %p489 = pneg %p142
      %p490 = pneg %p139
      %p491 = pneg %p163
      %p492 = pneg %p160
      %p493 = pneg %p184
      %p494 = pneg %p181
      %p495 = pneg %p205
      %p496 = pneg %p202
      %p497 = pneg %p226
      %p498 = pneg %p223
      %p499 = pneg %p247
      %p500 = pneg %p244
      %p501 = pneg %p268
      %p502 = pneg %p265
      %p503 = pneg %p289
      %p504 = pneg %p286
      %p505 = pneg %p310
      %p506 = pneg %p307
      %p507 = pneg %p331
      %p508 = pneg %p328
      %p509 = pneg %p357
      %p510 = pneg %p354
      %p511 = scmp.lt.s32.totalorder %s27, 1
      %s512 = scalar_select %p511, %s27, 1
      %s513 = smul.addr %s512, 3
      %s514 = smul.addr %s513, 4
      %s515 = scalar_lea.vmem %s14, %s514
      %p516 = pneg %p383
      %p517 = pneg %p380
      %p518 = scmp.lt.s32.totalorder %s27, 1
      %s519 = scalar_select %p518, %s27, 1
      %s520 = smul.addr %s519, 8
      %s521 = scalar_lea.vmem %s15, %s520
      %p522 = scmp.lt.s32.totalorder %s27, 1
      %s523 = scalar_select %p522, %s27, 1
      %s524 = smul.addr %s523, 3
      %s525 = smul.addr %s524, 4
      %s526 = scalar_lea.vmem %s0, %s525
      %p527 = scmp.lt.s32.totalorder %s27, 1
      %s528 = scalar_select %p527, %s27, 1
      %s529 = smul.addr %s528, 3
      %s530 = smul.addr %s529, 4
      %s531 = scalar_lea.vmem %s1, %s530
      %p532 = scmp.lt.s32.totalorder %s27, 1
      %s533 = scalar_select %p532, %s27, 1
      %s534 = smul.addr %s533, 3
      %s535 = smul.addr %s534, 4
      %s536 = scalar_lea.vmem %s2, %s535
      %p537 = scmp.lt.s32.totalorder %s27, 1
      %s538 = scalar_select %p537, %s27, 1
      %s539 = smul.addr %s538, 3
      %s540 = smul.addr %s539, 4
      %s541 = scalar_lea.vmem %s14, %s540
      %p542 = scmp.lt.s32.totalorder %s27, 1
      %s543 = scalar_select %p542, %s27, 1
      %s544 = smul.addr %s543, 8
      %s545 = scalar_lea.vmem %s15, %s544
      %v547 = vld [vmem:[%s13] sm:$0x7]
      %v548 = vld [vmem:[%s526] sm:$0xff]
      %v549 = vld [vmem:[%s526 + $0x8] sm:$0xf]
      %v550 = vunpack.c.l.bf16 %v548
      %v551 = vunpack.c.h.bf16 %v548
      %v552 = vunpack.c.l.bf16 %v549
      %v553 = vld [vmem:[%s4] sm:$0xff]
      %s554 = scalar_lea.vmem %s4, 8
      %v555 = vld [vmem:[%s554] sm:$0xff]
      %v556 = vadd.f32 %v553, %v555
      %v557 = vld [vmem:[%s5] sm:$0xff]
      %v558 = vld [vmem:[%s6] sm:$0xff]
      %v559 = vmul.f32 %v556, 0.001953125
      %v560 = vmul.f32 %v559, %v559
      %562 = vrot.lane.b32.xlu0 %v560, 1
      %v563 = vpop.permute.xlu0 %562
      %v565 = vsub.f32 %v559, %v563
      %v566 = vmax.f32 %v565, 0.0
      %v567 = vadd.f32 %v566, 1e-05
      %v568 = vrsqrt.pop %v567
      %v569 = vmul.f32 %v568, %v567
      %v570 = vmul.f32 %v569, %v568
      %v571 = vmul.f32 0.5, %v570
      %v572 = vsub.f32 1.5, %v571
      %v573 = vmul.f32 %v568, %v572
      %vm574 = vweird.f32 %v567
      %vm575 = vweird.f32 %v568
      %vm576 = vmor %vm574, %vm575
      %v577 = vsel %vm576, %v568, %v573
      %579 = vrot.lane.b32.xlu0 %v577, 127
      %v580 = vpop.permute.xlu0 %579
      %v582 = vmul.f32 %v557, %v580
      %v583 = vmul.f32 %v559, %v582
      %v584 = vsub.f32 %v558, %v583
      %586 = vset.pattern.permute.xlu0 0
      %587 = vperm.xlu0 %586, %v582
      %v588 = vpop.permute.xlu0 %587
      %v590 = vmul.f32 %v550, %v588
      %v591 = vmul.f32 %v551, %v588
      %v592 = vmul.f32 %v552, %v588
      %594 = vset.pattern.permute.xlu0 0
      %595 = vperm.xlu0 %594, %v584
      %v596 = vpop.permute.xlu0 %595
      %v598 = vadd.f32 %v590, %v596
      %v599 = vadd.f32 %v591, %v596
      %v600 = vadd.f32 %v592, %v596
      %vm601 = vcmp.ge.f32.partialorder %v598, 0.0
      %vm602 = vcmp.ge.f32.partialorder %v599, 0.0
      %vm603 = vcmp.ge.f32.partialorder %v600, 0.0
      %v604 = vmul.f32 %v598, 0.01
      %v605 = vmul.f32 %v599, 0.01
      %v606 = vmul.f32 %v600, 0.01
      %v607 = vsel %vm601, %v598, %v604
      %v608 = vsel %vm602, %v599, %v605
      %v609 = vsel %vm603, %v600, %v606
      %v611 = vperm.slane %v547, 0
      %v612 = vperm.slane %v547, 1
      %v613 = vperm.slane %v547, 2
      %v617 = vmul.f32 %v607, %v611
      %v618 = vmul.f32 %v608, %v612
      %v619 = vmul.f32 %v609, %v613
      %v620 = vpack.c.bf16 %v618, %v617
      %v621 = vpack.c.bf16 %v619, %v619
      %622 = vst [vmem:[#allocation2] sm:$0xff] %v620
      %vm623 = vcmask 240640
      %624 = vst.msk [vmem:[#allocation2 + $0x8] sm:$0xf] %vm623, %v621
      %627 = vrot.lane.b32.xlu0 %v620, 127
      %v628 = vpop.permute.xlu0 %627
      %629 = vrot.lane.b32.xlu0 %v621, 127
      %v630 = vpop.permute.xlu0 %629
      %v631 = vrot.slane %v628, 4
      %v632 = vrot.slane %v630, 4
      %vm633 = vcmask 1043456
      %v634 = vsel %vm633, %v631, %v632
      %vm635 = vcmask 1039360
      %v636 = vsel %vm635, %v628, %v634
      %639 = vst [vmem:[#allocation2 + $0xc] sm:$0xff] %v636
      %640 = vst.msk [vmem:[#allocation2 + $0x14] sm:$0xf] %vm623, %v630
      %641 = vrot.lane.b32.xlu0 %v620, 126
      %v642 = vpop.permute.xlu0 %641
      %643 = vrot.lane.b32.xlu0 %v621, 126
      %v644 = vpop.permute.xlu0 %643
      %v645 = vrot.slane %v642, 4
      %v646 = vrot.slane %v644, 4
      %v647 = vsel %vm633, %v645, %v646
      %vm648 = vcmask 1031168
      %v649 = vsel %vm648, %v642, %v647
      %652 = vst [vmem:[#allocation2 + $0x18] sm:$0xff] %v649
      %653 = vst.msk [vmem:[#allocation2 + $0x20] sm:$0xf] %vm623, %v644
      %654 = vrot.lane.b32.xlu0 %v620, 110
      %v655 = vpop.permute.xlu0 %654
      %656 = vrot.lane.b32.xlu0 %v621, 110
      %v657 = vpop.permute.xlu0 %656
      %v658 = vrot.slane %v655, 4
      %v659 = vrot.slane %v657, 4
      %v660 = vsel %vm633, %v658, %v659
      %vm661 = vcmask 900096
      %v662 = vsel %vm661, %v655, %v660
      %665 = vst [vmem:[#allocation2 + $0x24] sm:$0xff] %v662
      %666 = vst.msk [vmem:[#allocation2 + $0x2c] sm:$0xf] %vm623, %v657
      %667 = vrot.lane.b32.xlu0 %v620, 109
      %v668 = vpop.permute.xlu0 %667
      %669 = vrot.lane.b32.xlu0 %v621, 109
      %v670 = vpop.permute.xlu0 %669
      %v671 = vrot.slane %v668, 4
      %v672 = vrot.slane %v670, 4
      %v673 = vsel %vm633, %v671, %v672
      %vm674 = vcmask 891904
      %v675 = vsel %vm674, %v668, %v673
      %678 = vst [vmem:[#allocation2 + $0x30] sm:$0xff] %v675
      %679 = vst.msk [vmem:[#allocation2 + $0x38] sm:$0xf] %vm623, %v670
      %680 = vrot.lane.b32.xlu0 %v620, 108
      %v681 = vpop.permute.xlu0 %680
      %682 = vrot.lane.b32.xlu0 %v621, 108
      %v683 = vpop.permute.xlu0 %682
      %v684 = vrot.slane %v681, 4
      %v685 = vrot.slane %v683, 4
      %v686 = vsel %vm633, %v684, %v685
      %vm687 = vcmask 883712
      %v688 = vsel %vm687, %v681, %v686
      %691 = vst [vmem:[#allocation2 + $0x3c] sm:$0xff] %v688
      %692 = vst.msk [vmem:[#allocation2 + $0x44] sm:$0xf] %vm623, %v683
      %693 = vrot.lane.b32.xlu0 %v620, 92
      %v694 = vpop.permute.xlu0 %693
      %695 = vrot.lane.b32.xlu0 %v621, 92
      %v696 = vpop.permute.xlu0 %695
      %v697 = vrot.slane %v694, 4
      %v698 = vrot.slane %v696, 4
      %v699 = vsel %vm633, %v697, %v698
      %vm700 = vcmask 752640
      %v701 = vsel %vm700, %v694, %v699
      %704 = vst [vmem:[#allocation2 + $0x48] sm:$0xff] %v701
      %705 = vst.msk [vmem:[#allocation2 + $0x50] sm:$0xf] %vm623, %v696
      %706 = vrot.lane.b32.xlu0 %v620, 91
      %v707 = vpop.permute.xlu0 %706
      %708 = vrot.lane.b32.xlu0 %v621, 91
      %v709 = vpop.permute.xlu0 %708
      %v710 = vrot.slane %v707, 4
      %v711 = vrot.slane %v709, 4
      %v712 = vsel %vm633, %v710, %v711
      %vm713 = vcmask 744448
      %v714 = vsel %vm713, %v707, %v712
      %717 = vst [vmem:[#allocation2 + $0x54] sm:$0xff] %v714
      %718 = vst.msk [vmem:[#allocation2 + $0x5c] sm:$0xf] %vm623, %v709
      %719 = vrot.lane.b32.xlu0 %v620, 90
      %v720 = vpop.permute.xlu0 %719
      %721 = vrot.lane.b32.xlu0 %v621, 90
      %v722 = vpop.permute.xlu0 %721
      %v723 = vrot.slane %v720, 4
      %v724 = vrot.slane %v722, 4
      %v725 = vsel %vm633, %v723, %v724
      %vm726 = vcmask 736256
      %v727 = vsel %vm726, %v720, %v725
      %730 = vst [vmem:[#allocation2 + $0x60] sm:$0xff] %v727
      %731 = vst.msk [vmem:[#allocation2 + $0x68] sm:$0xf] %vm623, %v722
      %v732 = vld [vmem:[%s531] sm:$0xff]
      %v733 = vld [vmem:[%s531 + $0x8] sm:$0xf]
      %v734 = vunpack.c.l.bf16 %v732
      %v735 = vunpack.c.h.bf16 %v732
      %v736 = vunpack.c.l.bf16 %v733
      %v737 = vld [vmem:[%s7] sm:$0xff]
      %s738 = scalar_lea.vmem %s7, 8
      %v739 = vld [vmem:[%s738] sm:$0xff]
      %v740 = vadd.f32 %v737, %v739
      %v741 = vld [vmem:[%s8] sm:$0xff]
      %v742 = vld [vmem:[%s9] sm:$0xff]
      %v743 = vmul.f32 %v740, 0.001953125
      %v744 = vmul.f32 %v743, %v743
      %746 = vrot.lane.b32.xlu0 %v744, 1
      %v747 = vpop.permute.xlu0 %746
      %v749 = vsub.f32 %v743, %v747
      %v750 = vmax.f32 %v749, 0.0
      %v751 = vadd.f32 %v750, 1e-05
      %v752 = vrsqrt.pop %v751
      %v753 = vmul.f32 %v752, %v751
      %v754 = vmul.f32 %v753, %v752
      %v755 = vmul.f32 0.5, %v754
      %v756 = vsub.f32 1.5, %v755
      %v757 = vmul.f32 %v752, %v756
      %vm758 = vweird.f32 %v751
      %vm759 = vweird.f32 %v752
      %vm760 = vmor %vm758, %vm759
      %v761 = vsel %vm760, %v752, %v757
      %763 = vrot.lane.b32.xlu0 %v761, 127
      %v764 = vpop.permute.xlu0 %763
      %v766 = vmul.f32 %v741, %v764
      %v767 = vmul.f32 %v743, %v766
      %v768 = vsub.f32 %v742, %v767
      %770 = vset.pattern.permute.xlu0 0
      %771 = vperm.xlu0 %770, %v766
      %v772 = vpop.permute.xlu0 %771
      %v774 = vmul.f32 %v734, %v772
      %v775 = vmul.f32 %v735, %v772
      %v776 = vmul.f32 %v736, %v772
      %778 = vset.pattern.permute.xlu0 0
      %779 = vperm.xlu0 %778, %v768
      %v780 = vpop.permute.xlu0 %779
      %v782 = vadd.f32 %v774, %v780
      %v783 = vadd.f32 %v775, %v780
      %v784 = vadd.f32 %v776, %v780
      %vm785 = vcmp.ge.f32.partialorder %v782, 0.0
      %vm786 = vcmp.ge.f32.partialorder %v783, 0.0
      %vm787 = vcmp.ge.f32.partialorder %v784, 0.0
      %v788 = vmul.f32 %v782, 0.01
      %v789 = vmul.f32 %v783, 0.01
      %v790 = vmul.f32 %v784, 0.01
      %v791 = vsel %vm785, %v782, %v788
      %v792 = vsel %vm786, %v783, %v789
      %v793 = vsel %vm787, %v784, %v790
      %v794 = vmul.f32 %v791, %v611
      %v795 = vmul.f32 %v792, %v612
      %v796 = vmul.f32 %v793, %v613
      %v797 = vpack.c.bf16 %v795, %v794
      %v798 = vpack.c.bf16 %v796, %v796
      %799 = vst [vmem:[#allocation2 + $0x6c] sm:$0xff] %v797
      %800 = vst.msk [vmem:[#allocation2 + $0x74] sm:$0xf] %vm623, %v798
      %803 = vrot.lane.b32.xlu0 %v797, 127
      %v804 = vpop.permute.xlu0 %803
      %805 = vrot.lane.b32.xlu0 %v798, 127
      %v806 = vpop.permute.xlu0 %805
      %v807 = vrot.slane %v804, 4
      %v808 = vrot.slane %v806, 4
      %v809 = vsel %vm633, %v807, %v808
      %v810 = vsel %vm635, %v804, %v809
      %813 = vst [vmem:[#allocation2 + $0x78] sm:$0xff] %v810
      %814 = vst.msk [vmem:[#allocation2 + $0x80] sm:$0xf] %vm623, %v806
      %815 = vrot.lane.b32.xlu0 %v797, 126
      %v816 = vpop.permute.xlu0 %815
      %817 = vrot.lane.b32.xlu0 %v798, 126
      %v818 = vpop.permute.xlu0 %817
      %v819 = vrot.slane %v816, 4
      %v820 = vrot.slane %v818, 4
      %v821 = vsel %vm633, %v819, %v820
      %v822 = vsel %vm648, %v816, %v821
      %825 = vst [vmem:[#allocation2 + $0x84] sm:$0xff] %v822
      %826 = vst.msk [vmem:[#allocation2 + $0x8c] sm:$0xf] %vm623, %v818
      %827 = vrot.lane.b32.xlu0 %v797, 110
      %v828 = vpop.permute.xlu0 %827
      %829 = vrot.lane.b32.xlu0 %v798, 110
      %v830 = vpop.permute.xlu0 %829
      %v831 = vrot.slane %v828, 4
      %v832 = vrot.slane %v830, 4
      %v833 = vsel %vm633, %v831, %v832
      %v834 = vsel %vm661, %v828, %v833
      %837 = vst [vmem:[#allocation2 + $0x90] sm:$0xff] %v834
      %838 = vst.msk [vmem:[#allocation2 + $0x98] sm:$0xf] %vm623, %v830
      %839 = vrot.lane.b32.xlu0 %v797, 109
      %v840 = vpop.permute.xlu0 %839
      %841 = vrot.lane.b32.xlu0 %v798, 109
      %v842 = vpop.permute.xlu0 %841
      %v843 = vrot.slane %v840, 4
      %v844 = vrot.slane %v842, 4
      %v845 = vsel %vm633, %v843, %v844
      %v846 = vsel %vm674, %v840, %v845
      %849 = vst [vmem:[#allocation2 + $0x9c] sm:$0xff] %v846
      %850 = vst.msk [vmem:[#allocation2 + $0xa4] sm:$0xf] %vm623, %v842
      %851 = vrot.lane.b32.xlu0 %v797, 108
      %v852 = vpop.permute.xlu0 %851
      %853 = vrot.lane.b32.xlu0 %v798, 108
      %v854 = vpop.permute.xlu0 %853
      %v855 = vrot.slane %v852, 4
      %v856 = vrot.slane %v854, 4
      %v857 = vsel %vm633, %v855, %v856
      %v858 = vsel %vm687, %v852, %v857
      %861 = vst [vmem:[#allocation2 + $0xa8] sm:$0xff] %v858
      %862 = vst.msk [vmem:[#allocation2 + $0xb0] sm:$0xf] %vm623, %v854
      %863 = vrot.lane.b32.xlu0 %v797, 92
      %v864 = vpop.permute.xlu0 %863
      %865 = vrot.lane.b32.xlu0 %v798, 92
      %v866 = vpop.permute.xlu0 %865
      %v867 = vrot.slane %v864, 4
      %v868 = vrot.slane %v866, 4
      %v869 = vsel %vm633, %v867, %v868
      %v870 = vsel %vm700, %v864, %v869
      %873 = vst [vmem:[#allocation2 + $0xb4] sm:$0xff] %v870
      %874 = vst.msk [vmem:[#allocation2 + $0xbc] sm:$0xf] %vm623, %v866
      %875 = vrot.lane.b32.xlu0 %v797, 91
      %v876 = vpop.permute.xlu0 %875
      %877 = vrot.lane.b32.xlu0 %v798, 91
      %v878 = vpop.permute.xlu0 %877
      %v879 = vrot.slane %v876, 4
      %v880 = vrot.slane %v878, 4
      %v881 = vsel %vm633, %v879, %v880
      %v882 = vsel %vm713, %v876, %v881
      %885 = vst [vmem:[#allocation2 + $0xc0] sm:$0xff] %v882
      %886 = vst.msk [vmem:[#allocation2 + $0xc8] sm:$0xf] %vm623, %v878
      %887 = vrot.lane.b32.xlu0 %v797, 90
      %v888 = vpop.permute.xlu0 %887
      %889 = vrot.lane.b32.xlu0 %v798, 90
      %v890 = vpop.permute.xlu0 %889
      %v891 = vrot.slane %v888, 4
      %v892 = vrot.slane %v890, 4
      %v893 = vsel %vm633, %v891, %v892
      %v894 = vsel %vm726, %v888, %v893
      %897 = vst [vmem:[#allocation2 + $0xcc] sm:$0xff] %v894
      %898 = vst.msk [vmem:[#allocation2 + $0xd4] sm:$0xf] %vm623, %v890
      %v899 = vld [vmem:[%s536] sm:$0xff]
      %v900 = vld [vmem:[%s536 + $0x8] sm:$0xf]
      %v901 = vunpack.c.l.bf16 %v899
      %v902 = vunpack.c.h.bf16 %v899
      %v903 = vunpack.c.l.bf16 %v900
      %v904 = vld [vmem:[%s10] sm:$0xff]
      %s905 = scalar_lea.vmem %s10, 8
      %v906 = vld [vmem:[%s905] sm:$0xff]
      %v907 = vadd.f32 %v904, %v906
      %v908 = vld [vmem:[%s11] sm:$0xff]
      %v909 = vld [vmem:[%s12] sm:$0xff]
      %v910 = vmul.f32 %v907, 0.001953125
      %v911 = vmul.f32 %v910, %v910
      %913 = vrot.lane.b32.xlu0 %v911, 1
      %v914 = vpop.permute.xlu0 %913
      %v916 = vsub.f32 %v910, %v914
      %v917 = vmax.f32 %v916, 0.0
      %v918 = vadd.f32 %v917, 1e-05
      %v919 = vrsqrt.pop %v918
      %v920 = vmul.f32 %v919, %v918
      %v921 = vmul.f32 %v920, %v919
      %v922 = vmul.f32 0.5, %v921
      %v923 = vsub.f32 1.5, %v922
      %v924 = vmul.f32 %v919, %v923
      %vm925 = vweird.f32 %v918
      %vm926 = vweird.f32 %v919
      %vm927 = vmor %vm925, %vm926
      %v928 = vsel %vm927, %v919, %v924
      %930 = vrot.lane.b32.xlu0 %v928, 127
      %v931 = vpop.permute.xlu0 %930
      %v933 = vmul.f32 %v908, %v931
      %v934 = vmul.f32 %v910, %v933
      %v935 = vsub.f32 %v909, %v934
      %937 = vset.pattern.permute.xlu0 0
      %938 = vperm.xlu0 %937, %v933
      %v939 = vpop.permute.xlu0 %938
      %v941 = vmul.f32 %v901, %v939
      %v942 = vmul.f32 %v902, %v939
      %v943 = vmul.f32 %v903, %v939
      %945 = vset.pattern.permute.xlu0 0
      %946 = vperm.xlu0 %945, %v935
      %v947 = vpop.permute.xlu0 %946
      %v949 = vadd.f32 %v941, %v947
      %v950 = vadd.f32 %v942, %v947
      %v951 = vadd.f32 %v943, %v947
      %vm952 = vcmp.ge.f32.partialorder %v949, 0.0
      %vm953 = vcmp.ge.f32.partialorder %v950, 0.0
      %vm954 = vcmp.ge.f32.partialorder %v951, 0.0
      %v955 = vmul.f32 %v949, 0.01
      %v956 = vmul.f32 %v950, 0.01
      %v957 = vmul.f32 %v951, 0.01
      %v958 = vsel %vm952, %v949, %v955
      %v959 = vsel %vm953, %v950, %v956
      %v960 = vsel %vm954, %v951, %v957
      %v961 = vmul.f32 %v958, %v611
      %v962 = vmul.f32 %v959, %v612
      %v963 = vmul.f32 %v960, %v613
      %v964 = vpack.c.bf16 %v962, %v961
      %v965 = vpack.c.bf16 %v963, %v963
      %966 = vst [vmem:[#allocation2 + $0xd8] sm:$0xff] %v964
      %967 = vst.msk [vmem:[#allocation2 + $0xe0] sm:$0xf] %vm623, %v965
      %970 = vrot.lane.b32.xlu0 %v964, 127
      %v971 = vpop.permute.xlu0 %970
      %972 = vrot.lane.b32.xlu0 %v965, 127
      %v973 = vpop.permute.xlu0 %972
      %v974 = vrot.slane %v971, 4
      %v975 = vrot.slane %v973, 4
      %v976 = vsel %vm633, %v974, %v975
      %v977 = vsel %vm635, %v971, %v976
      %980 = vst [vmem:[#allocation2 + $0xe4] sm:$0xff] %v977
      %981 = vst.msk [vmem:[#allocation2 + $0xec] sm:$0xf] %vm623, %v973
      %982 = vrot.lane.b32.xlu0 %v964, 126
      %v983 = vpop.permute.xlu0 %982
      %984 = vrot.lane.b32.xlu0 %v965, 126
      %v985 = vpop.permute.xlu0 %984
      %v986 = vrot.slane %v983, 4
      %v987 = vrot.slane %v985, 4
      %v988 = vsel %vm633, %v986, %v987
      %v989 = vsel %vm648, %v983, %v988
      %992 = vst [vmem:[#allocation2 + $0xf0] sm:$0xff] %v989
      %993 = vst.msk [vmem:[#allocation2 + $0xf8] sm:$0xf] %vm623, %v985
      %994 = vrot.lane.b32.xlu0 %v964, 110
      %v995 = vpop.permute.xlu0 %994
      %996 = vrot.lane.b32.xlu0 %v965, 110
      %v997 = vpop.permute.xlu0 %996
      %v998 = vrot.slane %v995, 4
      %v999 = vrot.slane %v997, 4
      %v1000 = vsel %vm633, %v998, %v999
      %v1001 = vsel %vm661, %v995, %v1000
      %1004 = vst [vmem:[#allocation2 + $0xfc] sm:$0xff] %v1001
      %1005 = vst.msk [vmem:[#allocation2 + $0x104] sm:$0xf] %vm623, %v997
      %1006 = vrot.lane.b32.xlu0 %v964, 109
      %v1007 = vpop.permute.xlu0 %1006
      %1008 = vrot.lane.b32.xlu0 %v965, 109
      %v1009 = vpop.permute.xlu0 %1008
      %v1010 = vrot.slane %v1007, 4
      %v1011 = vrot.slane %v1009, 4
      %v1012 = vsel %vm633, %v1010, %v1011
      %v1013 = vsel %vm674, %v1007, %v1012
      %1016 = vst [vmem:[#allocation2 + $0x108] sm:$0xff] %v1013
      %1017 = vst.msk [vmem:[#allocation2 + $0x110] sm:$0xf] %vm623, %v1009
      %1018 = vrot.lane.b32.xlu0 %v964, 108
      %v1019 = vpop.permute.xlu0 %1018
      %1020 = vrot.lane.b32.xlu0 %v965, 108
      %v1021 = vpop.permute.xlu0 %1020
      %v1022 = vrot.slane %v1019, 4
      %v1023 = vrot.slane %v1021, 4
      %v1024 = vsel %vm633, %v1022, %v1023
      %v1025 = vsel %vm687, %v1019, %v1024
      %1028 = vst [vmem:[#allocation2 + $0x114] sm:$0xff] %v1025
      %1029 = vst.msk [vmem:[#allocation2 + $0x11c] sm:$0xf] %vm623, %v1021
      %1030 = vrot.lane.b32.xlu0 %v964, 92
      %v1031 = vpop.permute.xlu0 %1030
      %1032 = vrot.lane.b32.xlu0 %v965, 92
      %v1033 = vpop.permute.xlu0 %1032
      %v1034 = vrot.slane %v1031, 4
      %v1035 = vrot.slane %v1033, 4
      %v1036 = vsel %vm633, %v1034, %v1035
      %v1037 = vsel %vm700, %v1031, %v1036
      %1040 = vst [vmem:[#allocation2 + $0x120] sm:$0xff] %v1037
      %1041 = vst.msk [vmem:[#allocation2 + $0x128] sm:$0xf] %vm623, %v1033
      %1042 = vrot.lane.b32.xlu0 %v964, 91
      %v1043 = vpop.permute.xlu0 %1042
      %1044 = vrot.lane.b32.xlu0 %v965, 91
      %v1045 = vpop.permute.xlu0 %1044
      %v1046 = vrot.slane %v1043, 4
      %v1047 = vrot.slane %v1045, 4
      %v1048 = vsel %vm633, %v1046, %v1047
      %v1049 = vsel %vm713, %v1043, %v1048
      %1052 = vst [vmem:[#allocation2 + $0x12c] sm:$0xff] %v1049
      %1053 = vst.msk [vmem:[#allocation2 + $0x134] sm:$0xf] %vm623, %v1045
      %1054 = vrot.lane.b32.xlu0 %v964, 90
      %v1055 = vpop.permute.xlu0 %1054
      %1056 = vrot.lane.b32.xlu0 %v965, 90
      %v1057 = vpop.permute.xlu0 %1056
      %v1058 = vrot.slane %v1055, 4
      %v1059 = vrot.slane %v1057, 4
      %v1060 = vsel %vm633, %v1058, %v1059
      %v1061 = vsel %vm726, %v1055, %v1060
      %1064 = vst [vmem:[#allocation2 + $0x138] sm:$0xff] %v1061
      %1065 = vst.msk [vmem:[#allocation2 + $0x140] sm:$0xf] %vm623, %v1057
      %v1066 = vld [vmem:[%s3] sm:$0xff]
      %v1067 = vld [vmem:[#allocation2] sm:$0xff]
      %v1068 = vld [vmem:[#allocation2 + $0x8] sm:$0xf]
      %v1069 = vld [vmem:[#allocation2 + $0xc] sm:$0xff]
      %v1070 = vld [vmem:[#allocation2 + $0x14] sm:$0xf]
      %v1071 = vld [vmem:[#allocation2 + $0x18] sm:$0xff]
      %v1072 = vld [vmem:[#allocation2 + $0x20] sm:$0xf]
      %v1073 = vld [vmem:[#allocation2 + $0x24] sm:$0xff]
      %v1074 = vld [vmem:[#allocation2 + $0x2c] sm:$0xf]
      %v1075 = vld [vmem:[#allocation2 + $0x30] sm:$0xff]
      %v1076 = vld [vmem:[#allocation2 + $0x38] sm:$0xf]
      %v1077 = vld [vmem:[#allocation2 + $0x3c] sm:$0xff]
      %v1078 = vld [vmem:[#allocation2 + $0x44] sm:$0xf]
      %v1079 = vld [vmem:[#allocation2 + $0x48] sm:$0xff]
      %v1080 = vld [vmem:[#allocation2 + $0x50] sm:$0xf]
      %v1081 = vld [vmem:[#allocation2 + $0x54] sm:$0xff]
      %v1082 = vld [vmem:[#allocation2 + $0x5c] sm:$0xf]
      %v1083 = vld [vmem:[#allocation2 + $0x60] sm:$0xff]
      %v1084 = vld [vmem:[#allocation2 + $0x68] sm:$0xf]
      %v1085 = vld [vmem:[#allocation2 + $0x6c] sm:$0xff]
      %v1086 = vld [vmem:[#allocation2 + $0x74] sm:$0xf]
      %v1087 = vld [vmem:[#allocation2 + $0x78] sm:$0xff]
      %v1088 = vld [vmem:[#allocation2 + $0x80] sm:$0xf]
      %v1089 = vld [vmem:[#allocation2 + $0x84] sm:$0xff]
      %v1090 = vld [vmem:[#allocation2 + $0x8c] sm:$0xf]
      %v1091 = vld [vmem:[#allocation2 + $0x90] sm:$0xff]
      %v1092 = vld [vmem:[#allocation2 + $0x98] sm:$0xf]
      %v1093 = vld [vmem:[#allocation2 + $0x9c] sm:$0xff]
      %v1094 = vld [vmem:[#allocation2 + $0xa4] sm:$0xf]
      %v1095 = vld [vmem:[#allocation2 + $0xa8] sm:$0xff]
      %v1096 = vld [vmem:[#allocation2 + $0xb0] sm:$0xf]
      %v1097 = vld [vmem:[#allocation2 + $0xb4] sm:$0xff]
      %v1098 = vld [vmem:[#allocation2 + $0xbc] sm:$0xf]
      %v1099 = vld [vmem:[#allocation2 + $0xc0] sm:$0xff]
      %v1100 = vld [vmem:[#allocation2 + $0xc8] sm:$0xf]
      %v1101 = vld [vmem:[#allocation2 + $0xcc] sm:$0xff]
      %v1102 = vld [vmem:[#allocation2 + $0xd4] sm:$0xf]
      %v1103 = vld [vmem:[#allocation2 + $0xd8] sm:$0xff]
      %v1104 = vld [vmem:[#allocation2 + $0xe0] sm:$0xf]
      %v1105 = vld [vmem:[#allocation2 + $0xe4] sm:$0xff]
      %v1106 = vld [vmem:[#allocation2 + $0xec] sm:$0xf]
      %v1107 = vld [vmem:[#allocation2 + $0xf0] sm:$0xff]
      %v1108 = vld [vmem:[#allocation2 + $0xf8] sm:$0xf]
      %v1109 = vld [vmem:[#allocation2 + $0xfc] sm:$0xff]
      %v1110 = vld [vmem:[#allocation2 + $0x104] sm:$0xf]
      %v1111 = vld [vmem:[#allocation2 + $0x108] sm:$0xff]
      %v1112 = vld [vmem:[#allocation2 + $0x110] sm:$0xf]
      %v1113 = vld [vmem:[#allocation2 + $0x114] sm:$0xff]
      %v1114 = vld [vmem:[#allocation2 + $0x11c] sm:$0xf]
      %v1115 = vld [vmem:[#allocation2 + $0x120] sm:$0xff]
      %v1116 = vld [vmem:[#allocation2 + $0x128] sm:$0xf]
      %v1117 = vld [vmem:[#allocation2 + $0x12c] sm:$0xff]
      %v1118 = vld [vmem:[#allocation2 + $0x134] sm:$0xf]
      %v1119 = vld [vmem:[#allocation2 + $0x138] sm:$0xff]
      %v1120 = vld [vmem:[#allocation2 + $0x140] sm:$0xf]
      %v1122 = vunpack.c.l.b16 %v1066
      %v1123 = vunpack.c.h.b16 %v1066
      %v1124 = vpack.c.b16 %v1122, %v1122
      %v1125 = vpack.c.b16 %v1123, %v1123
      %v1181 = vunpack.c.l.b16 %v1067
      %v1182 = vunpack.c.h.b16 %v1067
      %v1183 = vunpack.c.l.b16 %v1068
      %v1184 = vunpack.c.l.b16 %v1069
      %v1185 = vunpack.c.h.b16 %v1069
      %v1186 = vunpack.c.l.b16 %v1070
      %v1187 = vunpack.c.l.b16 %v1071
      %v1188 = vunpack.c.h.b16 %v1071
      %v1189 = vunpack.c.l.b16 %v1072
      %v1190 = vunpack.c.l.b16 %v1073
      %v1191 = vunpack.c.h.b16 %v1073
      %v1192 = vunpack.c.l.b16 %v1074
      %v1193 = vunpack.c.l.b16 %v1075
      %v1194 = vunpack.c.h.b16 %v1075
      %v1195 = vunpack.c.l.b16 %v1076
      %v1196 = vunpack.c.l.b16 %v1077
      %v1197 = vunpack.c.h.b16 %v1077
      %v1198 = vunpack.c.l.b16 %v1078
      %v1199 = vunpack.c.l.b16 %v1079
      %v1200 = vunpack.c.h.b16 %v1079
      %v1201 = vunpack.c.l.b16 %v1080
      %v1202 = vunpack.c.l.b16 %v1081
      %v1203 = vunpack.c.h.b16 %v1081
      %v1204 = vunpack.c.l.b16 %v1082
      %v1205 = vunpack.c.l.b16 %v1083
      %v1206 = vunpack.c.h.b16 %v1083
      %v1207 = vunpack.c.l.b16 %v1084
      %v1208 = vunpack.c.l.b16 %v1085
      %v1209 = vunpack.c.h.b16 %v1085
      %v1210 = vunpack.c.l.b16 %v1086
      %v1211 = vunpack.c.l.b16 %v1087
      %v1212 = vunpack.c.h.b16 %v1087
      %v1213 = vunpack.c.l.b16 %v1088
      %v1214 = vunpack.c.l.b16 %v1089
      %v1215 = vunpack.c.h.b16 %v1089
      %v1216 = vunpack.c.l.b16 %v1090
      %v1217 = vunpack.c.l.b16 %v1091
      %v1218 = vunpack.c.h.b16 %v1091
      %v1219 = vunpack.c.l.b16 %v1092
      %v1220 = vunpack.c.l.b16 %v1093
      %v1221 = vunpack.c.h.b16 %v1093
      %v1222 = vunpack.c.l.b16 %v1094
      %v1223 = vunpack.c.l.b16 %v1095
      %v1224 = vunpack.c.h.b16 %v1095
      %v1225 = vunpack.c.l.b16 %v1096
      %v1226 = vunpack.c.l.b16 %v1097
      %v1227 = vunpack.c.h.b16 %v1097
      %v1228 = vunpack.c.l.b16 %v1098
      %v1229 = vunpack.c.l.b16 %v1099
      %v1230 = vunpack.c.h.b16 %v1099
      %v1231 = vunpack.c.l.b16 %v1100
      %v1232 = vunpack.c.l.b16 %v1101
      %v1233 = vunpack.c.h.b16 %v1101
      %v1234 = vunpack.c.l.b16 %v1102
      %v1235 = vunpack.c.l.b16 %v1103
      %v1236 = vunpack.c.h.b16 %v1103
      %v1237 = vunpack.c.l.b16 %v1104
      %v1238 = vunpack.c.l.b16 %v1105
      %v1239 = vunpack.c.h.b16 %v1105
      %v1240 = vunpack.c.l.b16 %v1106
      %v1241 = vunpack.c.l.b16 %v1107
      %v1242 = vunpack.c.h.b16 %v1107
      %v1243 = vunpack.c.l.b16 %v1108
      %v1244 = vunpack.c.l.b16 %v1109
      %v1245 = vunpack.c.h.b16 %v1109
      %v1246 = vunpack.c.l.b16 %v1110
      %v1247 = vunpack.c.l.b16 %v1111
      %v1248 = vunpack.c.h.b16 %v1111
      %v1249 = vunpack.c.l.b16 %v1112
      %v1250 = vunpack.c.l.b16 %v1113
      %v1251 = vunpack.c.h.b16 %v1113
      %v1252 = vunpack.c.l.b16 %v1114
      %v1253 = vunpack.c.l.b16 %v1115
      %v1254 = vunpack.c.h.b16 %v1115
      %v1255 = vunpack.c.l.b16 %v1116
      %v1256 = vunpack.c.l.b16 %v1117
      %v1257 = vunpack.c.h.b16 %v1117
      %v1258 = vunpack.c.l.b16 %v1118
      %v1259 = vunpack.c.l.b16 %v1119
      %v1260 = vunpack.c.h.b16 %v1119
      %v1261 = vunpack.c.l.b16 %v1120
      %v1262 = vpack.c.b16 %v1184, %v1181
      %v1263 = vpack.c.b16 %v1185, %v1182
      %v1264 = vpack.c.b16 %v1186, %v1183
      %v1265 = vpack.c.b16 %v1190, %v1187
      %v1266 = vpack.c.b16 %v1191, %v1188
      %v1267 = vpack.c.b16 %v1192, %v1189
      %v1268 = vpack.c.b16 %v1196, %v1193
      %v1269 = vpack.c.b16 %v1197, %v1194
      %v1270 = vpack.c.b16 %v1198, %v1195
      %v1271 = vpack.c.b16 %v1202, %v1199
      %v1272 = vpack.c.b16 %v1203, %v1200
      %v1273 = vpack.c.b16 %v1204, %v1201
      %v1274 = vpack.c.b16 %v1208, %v1205
      %v1275 = vpack.c.b16 %v1209, %v1206
      %v1276 = vpack.c.b16 %v1210, %v1207
      %v1277 = vpack.c.b16 %v1214, %v1211
      %v1278 = vpack.c.b16 %v1215, %v1212
      %v1279 = vpack.c.b16 %v1216, %v1213
      %v1280 = vpack.c.b16 %v1220, %v1217
      %v1281 = vpack.c.b16 %v1221, %v1218
      %v1282 = vpack.c.b16 %v1222, %v1219
      %v1283 = vpack.c.b16 %v1226, %v1223
      %v1284 = vpack.c.b16 %v1227, %v1224
      %v1285 = vpack.c.b16 %v1228, %v1225
      %v1286 = vpack.c.b16 %v1232, %v1229
      %v1287 = vpack.c.b16 %v1233, %v1230
      %v1288 = vpack.c.b16 %v1234, %v1231
      %v1289 = vpack.c.b16 %v1238, %v1235
      %v1290 = vpack.c.b16 %v1239, %v1236
      %v1291 = vpack.c.b16 %v1240, %v1237
      %v1292 = vpack.c.b16 %v1244, %v1241
      %v1293 = vpack.c.b16 %v1245, %v1242
      %v1294 = vpack.c.b16 %v1246, %v1243
      %v1295 = vpack.c.b16 %v1250, %v1247
      %v1296 = vpack.c.b16 %v1251, %v1248
      %v1297 = vpack.c.b16 %v1252, %v1249
      %v1298 = vpack.c.b16 %v1256, %v1253
      %v1299 = vpack.c.b16 %v1257, %v1254
      %v1300 = vpack.c.b16 %v1258, %v1255
      %v1301 = vpack.c.b16 %v1259, %v1259
      %v1302 = vpack.c.b16 %v1260, %v1260
      %v1303 = vpack.c.b16 %v1261, %v1261
      %vm1343 = vcmask 719872
      %v1345 = vsel %vm1343, %v1125, 0
      %vm1347 = vcmask 1043456
      %v1349 = vsel %vm1347, %v1301, 0
      %v1352 = vsel %vm1347, %v1302, 0
      %v1355 = vsel %vm1347, %v1303, 0
      %1357 = vmatpush.bf16.msra.mxu0 %v1283
      %1358 = vmatpush.bf16.msra.mxu0 %v1280
      %1359 = vmatpush.bf16.msra.mxu0 %v1277
      %1360 = vmatpush.bf16.msra.mxu0 %v1274
      %1361 = vmatpush.bf16.msra.mxu0 %v1271
      %1362 = vmatpush.bf16.msra.mxu0 %v1268
      %1363 = vmatpush.bf16.msra.mxu0 %v1265
      %1364 = vmatpush.bf16.msra.mxu0 %v1262
      %1365 = vmatmul.bf16.gmra.mxu0 %v1124
      %v1366 = vpop.f32.mrf.mxu0
      %v1367 = vadd.f32 0.0, %v1366
      %v1368 = vpop.f32.mrf.mxu0
      %1369 = vdwg.mxu0
      %1370 = vmatpush.bf16.msra.mxu0 0
      %1371 = vmatpush.bf16.msra.mxu0 0
      %1372 = vmatpush.bf16.msra.mxu0 %v1349
      %1373 = vmatpush.bf16.msra.mxu0 %v1298
      %1374 = vmatpush.bf16.msra.mxu0 %v1295
      %1375 = vmatpush.bf16.msra.mxu0 %v1292
      %1376 = vmatpush.bf16.msra.mxu0 %v1289
      %1377 = vmatpush.bf16.msra.mxu0 %v1286
      %1378 = vmatmul.bf16.gmra.mxu0 %v1345
      %v1379 = vpop.f32.mrf.mxu0
      %v1380 = vadd.f32 %v1367, %v1379
      %v1381 = vpop.f32.mrf.mxu0
      %1382 = vdwg.mxu0
      %1383 = vmatpush.bf16.msra.mxu0 %v1284
      %1384 = vmatpush.bf16.msra.mxu0 %v1281
      %1385 = vmatpush.bf16.msra.mxu0 %v1278
      %1386 = vmatpush.bf16.msra.mxu0 %v1275
      %1387 = vmatpush.bf16.msra.mxu0 %v1272
      %1388 = vmatpush.bf16.msra.mxu0 %v1269
      %1389 = vmatpush.bf16.msra.mxu0 %v1266
      %1390 = vmatpush.bf16.msra.mxu0 %v1263
      %1391 = vmatmul.bf16.gmra.mxu0 %v1124
      %v1392 = vpop.f32.mrf.mxu0
      %v1393 = vadd.f32 0.0, %v1392
      %v1394 = vpop.f32.mrf.mxu0
      %1395 = vdwg.mxu0
      %1396 = vmatpush.bf16.msra.mxu0 0
      %1397 = vmatpush.bf16.msra.mxu0 0
      %1398 = vmatpush.bf16.msra.mxu0 %v1352
      %1399 = vmatpush.bf16.msra.mxu0 %v1299
      %1400 = vmatpush.bf16.msra.mxu0 %v1296
      %1401 = vmatpush.bf16.msra.mxu0 %v1293
      %1402 = vmatpush.bf16.msra.mxu0 %v1290
      %1403 = vmatpush.bf16.msra.mxu0 %v1287
      %1404 = vmatmul.bf16.gmra.mxu0 %v1345
      %v1405 = vpop.f32.mrf.mxu0
      %v1406 = vadd.f32 %v1393, %v1405
      %v1407 = vpop.f32.mrf.mxu0
      %1408 = vdwg.mxu0
      %1409 = vmatpush.bf16.msra.mxu0 %v1285
      %1410 = vmatpush.bf16.msra.mxu0 %v1282
      %1411 = vmatpush.bf16.msra.mxu0 %v1279
      %1412 = vmatpush.bf16.msra.mxu0 %v1276
      %1413 = vmatpush.bf16.msra.mxu0 %v1273
      %1414 = vmatpush.bf16.msra.mxu0 %v1270
      %1415 = vmatpush.bf16.msra.mxu0 %v1267
      %1416 = vmatpush.bf16.msra.mxu0 %v1264
      %1417 = vmatmul.bf16.gmra.mxu0 %v1124
      %v1418 = vpop.f32.mrf.mxu0
      %v1419 = vadd.f32 0.0, %v1418
      %v1420 = vpop.f32.mrf.mxu0
      %1421 = vdwg.mxu0
      %1422 = vmatpush.bf16.msra.mxu0 0
      %1423 = vmatpush.bf16.msra.mxu0 0
      %1424 = vmatpush.bf16.msra.mxu0 %v1355
      %1425 = vmatpush.bf16.msra.mxu0 %v1300
      %1426 = vmatpush.bf16.msra.mxu0 %v1297
      %1427 = vmatpush.bf16.msra.mxu0 %v1294
      %1428 = vmatpush.bf16.msra.mxu0 %v1291
      %1429 = vmatpush.bf16.msra.mxu0 %v1288
      %1430 = vmatmul.bf16.gmra.mxu0 %v1345
      %v1431 = vpop.f32.mrf.mxu0
      %v1432 = vadd.f32 %v1419, %v1431
      %v1433 = vpop.f32.mrf.mxu0
      %1434 = vdwg.mxu0
      %1435 = vrot.lane.b32.xlu0 %v611, 109
      %v1436 = vpop.permute.xlu0 %1435
      %1437 = vrot.lane.b32.xlu0 %v612, 109
      %v1438 = vpop.permute.xlu0 %1437
      %1439 = vrot.lane.b32.xlu0 %v613, 109
      %v1440 = vpop.permute.xlu0 %1439
      %vm1441 = vcmask 891904
      %v1442 = vsel %vm1441, %v1436, %v1438
      %v1443 = vsel %vm1441, %v1438, %v1440
      %v1447 = vmul.f32 %v1380, %v1442
      %v1448 = vmul.f32 %v1406, %v1443
      %v1449 = vmul.f32 %v1432, %v1440
      %v1450 = vadd.f32 %v1447, %v1448
      %vm1451 = vcmask 244736
      %v1452 = vsel %vm1451, %v1449, 0.0
      %v1453 = vadd.f32 %v1450, %v1452
      %1454 = vadd.xlane.f32.xlu0 %v1453
      %v1455 = vpop.xlane.xlu0 %1454
      %vm1456 = vcmask 7168
      %1457 = vst.msk [vmem:[%s545] sm:$0xff] %vm1456, %v1455
      %v1458 = vmul.f32 %v1447, %v1447
      %v1459 = vmul.f32 %v1448, %v1448
      %v1460 = vmul.f32 %v1449, %v1449
      %v1461 = vadd.f32 %v1458, %v1459
      %v1462 = vsel %vm1451, %v1460, 0.0
      %v1463 = vadd.f32 %v1461, %v1462
      %1464 = vadd.xlane.f32.xlu0 %v1463
      %v1465 = vpop.xlane.xlu0 %1464
      %vm1466 = vcmask 15368
      %1467 = vst.msk [vmem:[%s545] sm:$0xff] %vm1466, %v1465
      %v1468 = vpack.c.bf16 %v1448, %v1447
      %v1469 = vpack.c.bf16 %v1449, %v1449
      %vm1470 = vcmask 150528
      %1471 = vst.msk [vmem:[%s541] sm:$0xf] %vm1470, 0
      %1474 = vrot.lane.b32.xlu0 %v1468, 19
      %v1475 = vpop.permute.xlu0 %1474
      %1476 = vrot.lane.b32.xlu0 %v1469, 19
      %v1477 = vpop.permute.xlu0 %1476
      %v1478 = vrot.slane %v1475, 4
      %vm1479 = vcmask 154624
      %v1480 = vsel %vm1479, %v1478, %v1475
      %v1481 = vsel %vm1479, %v1478, %v1477
      %vm1484 = vcmask 1043608
      %vm1485 = vcmask 1047556
      %vm1486 = vmor %vm1485, %vm1484
      %1487 = vst.msk [vmem:[%s541] sm:$0xff] %vm1486, %v1480
      %vm1488 = vcmask 396288
      %1489 = vst.msk [vmem:[%s541 + $0x8] sm:$0xf] %vm1488, %v1481
      %vm1490 = vcmask 1043848
      %1491 = vst.msk [vmem:[%s541 + $0x8] sm:$0xf] %vm1490, 0
      %p1492 = scmp.lt.s32.totalorder %s27, 1
      %s1493 = scalar_select %p1492, %s27, 1
      %s1494 = smul.addr %s1493, 3
      %s1495 = smul.addr %s1494, 4
      %s1496 = scalar_lea.vmem %s14, %s1495
      %p1497 = scmp.lt.s32.totalorder %s27, 1
      %s1498 = scalar_select %p1497, %s27, 1
      %s1499 = smul.addr %s1498, 8
      %s1500 = scalar_lea.vmem %s15, %s1499
      // Predicated region
      $region77: #{discriminator_forward.9} parent=75 // pred_check
        %p1501 = pneg %p354
      $region78: #{discriminator_forward.9} parent=75 // pred_check_branch
        %1503 = sbr.rel (%p1501) target = $region80
      $region79: #{discriminator_forward.9} parent=75 // pred_region
        _
      $region80: #{discriminator_forward.9} parent=75 // pred_fallthru
        _
      // Predicated region
      $region81: #{discriminator_forward.9} parent=75 // pred_check
        %p1504 = pneg %p380
      $region82: #{discriminator_forward.9} parent=75 // pred_check_branch
        %1506 = sbr.rel (%p1504) target = $region84
      $region83: #{discriminator_forward.9} parent=75 // pred_region
        _
      $region84: #{discriminator_forward.9} parent=75 // pred_fallthru
        _
    $region76: #{discriminator_forward.9} parent=5 // pred_fallthru
      _
    %p1507 = scmp.le.s32.totalorder 2, %s22
    // Predicated region
    $region85: #{discriminator_forward.9} parent=5 // pred_check
      %p1508 = pneg %p1507
    $region86: #{discriminator_forward.9} parent=5 // pred_check_branch
      %1510 = sbr.rel (%p1508) target = $region88
    $region87: #{discriminator_forward.9} parent=5 // pred_region
      %s1511 = ssub.s32 %s22, 2
      // Predicated region
      $region89: #{discriminator_forward.9} parent=87 // pred_check
        %p1512 = pneg %p360
      $region90: #{discriminator_forward.9} parent=87 // pred_check_branch
        %1514 = sbr.rel (%p1512) target = $region92
      $region91: #{discriminator_forward.9} parent=87 // pred_region
        %p1515 = scmp.lt.s32.totalorder %s28, 1
        %s1516 = scalar_select %p1515, %s28, 1
        %s1517 = smul.addr %s1516, 3
        %s1518 = smul.addr %s1517, 4
        %s1519 = scalar_lea.vmem %s14, %s1518
      $region92: #{discriminator_forward.9} parent=87 // pred_fallthru
        _
      // Predicated region
      $region93: #{discriminator_forward.9} parent=87 // pred_check
        %p1520 = pneg %p386
      $region94: #{discriminator_forward.9} parent=87 // pred_check_branch
        %1522 = sbr.rel (%p1520) target = $region96
      $region95: #{discriminator_forward.9} parent=87 // pred_region
        %p1523 = scmp.lt.s32.totalorder %s28, 1
        %s1524 = scalar_select %p1523, %s28, 1
        %s1525 = smul.addr %s1524, 8
        %s1526 = scalar_lea.vmem %s15, %s1525
      $region96: #{discriminator_forward.9} parent=87 // pred_fallthru
        _
    $region88: #{discriminator_forward.9} parent=5 // pred_fallthru
      _
  $region6: #{discriminator_forward.9} parent=0 // loop_footer
    %s26 = sadd.s32 1, %s22
  $region7: #{discriminator_forward.9} parent=0 // loop_footer_branch
    %21 = sbr.rel target = $region3
  $region8: #{discriminator_forward.9} parent=0 // loop_exit
    _

</llo_original>
